<compile_context>
chip_gen: v7x
topology: tpu7x:2x2x1
jax: 0.10.0
libtpu: 0.0.40
codegen_flags: <defaults>
</compile_context>

<pallas_src>
import functools

import jax
import jax.numpy as jnp
from jax import lax
from jax.experimental import pallas as pl
from jax.experimental.pallas import tpu as pltpu

_LANE = 128


def _round_up(x, m):
    return ((x + m - 1) // m) * m


def _pick_tile(n, cap, align):
    """Tile size: multiple of `align`, <= cap, and (when possible) >=2 grid steps
    so the 'parallel' axis can be split across TensorCores (v7x megacore)."""
    t = _round_up(max(1, (n + 1) // 2), align)
    return max(align, min(cap, t))


# ----------------------------------------------------------------------------
# Weight / BN folding + lane padding helpers (zero-padding keeps semantics:
# padded scale=bias=0 -> relu(0)=0, padded input rows hit zero weight rows).
# ----------------------------------------------------------------------------
def _pad_bn_layer(w, scale, bias, cin_pad, row_scatter=None, lane=_LANE):
    ci, co = w.shape
    co_pad = _round_up(co, lane)
    w_p = jnp.zeros((cin_pad, co_pad), jnp.float32)
    if row_scatter is None:
        w_p = w_p.at[:ci, :co].set(w)
    else:
        r = 0
        for rw, off in row_scatter:
            w_p = w_p.at[off:off + rw, :co].set(w[r:r + rw])
            r += rw
    s_p = jnp.zeros((co_pad,), jnp.float32).at[:co].set(scale)
    b_p = jnp.zeros((co_pad,), jnp.float32).at[:co].set(bias)
    return {"w": w_p, "scale": s_p, "bias": b_p}, co_pad


def _pad_scale_layers(layers):
    padded = []
    cin_pad = layers[0]["w"].shape[0]      # first layer keeps the real (small) cin
    for layer in layers:
        lay_p, cin_pad = _pad_bn_layer(layer["w"], layer["scale"], layer["bias"], cin_pad)
        padded.append(lay_p)
    return padded


# ----------------------------------------------------------------------------
# Pallas kernel 1: farthest point sampling (xyz + running dists stay in VMEM)
# ----------------------------------------------------------------------------
def _fps_kernel(xt_ref, idx_ref, *, npoint, n_points):
    xs = xt_ref[...]                                            # (3, N) f32
    n = n_points
    lane_n = lax.broadcasted_iota(jnp.int32, (1, n), 1)
    # |x|^2 precomputed once (review: avoid (x - c)^2 per iteration)
    x2 = xs[0:1] * xs[0:1] + xs[1:2] * xs[1:2] + xs[2:3] * xs[2:3]     # (1, N)

    def body(i, state):
        dists, far = state                                      # (1,N) f32, (1,1) i32
        # record selection i with one dynamic sublane store (no npoint-wide select)
        idx_ref[pl.ds(i, 1), :] = far
        sel = (lane_n == far).astype(jnp.float32)               # (1, N) one-hot
        cen = jnp.sum(xs * sel, axis=1, keepdims=True)          # (3, 1) centroid
        xc = (xs[0:1] * cen[0:1] + xs[1:2] * cen[1:2] + xs[2:3] * cen[2:3])    # (1,N)
        c2 = cen[0:1] * cen[0:1] + cen[1:2] * cen[1:2] + cen[2:3] * cen[2:3]   # (1,1)
        d = x2 - 2.0 * xc + c2
        dists = jnp.minimum(dists, d)
        m = jnp.max(dists, axis=1, keepdims=True)               # (1,1)
        cand = jnp.where(dists >= m, lane_n, n)
        far = jnp.min(cand, axis=1, keepdims=True)              # first argmax index
        return dists, far

    dists0 = jnp.full((1, n), 1e10, jnp.float32)
    far0 = jnp.zeros((1, 1), jnp.int32)
    lax.fori_loop(0, npoint, body, (dists0, far0))


def farthest_point_sample(xyz, npoint):
    """xyz: (B, N, 3) -> (B, npoint) int32 (same semantics as the CUDA kernel)."""
    B, N, _ = xyz.shape
    xyz_t = jnp.transpose(xyz, (0, 2, 1)).astype(jnp.float32)   # (B, 3, N)
    idx = pl.pallas_call(
        functools.partial(_fps_kernel, npoint=npoint, n_points=N),
        out_shape=jax.ShapeDtypeStruct((B, npoint, 1), jnp.int32),
        grid_spec=pltpu.PrefetchScalarGridSpec(
            num_scalar_prefetch=0,
            grid=(B,),
            in_specs=[pl.BlockSpec((None, 3, N), lambda b: (b, 0, 0))],
            out_specs=pl.BlockSpec((None, npoint, 1), lambda b: (b, 0, 0)),
        ),
        compiler_params=pltpu.CompilerParams(dimension_semantics=("parallel",)),
    )(xyz_t)
    return idx[..., 0]


# ----------------------------------------------------------------------------
# Pallas kernel 2: ball query (per-batch xyz VMEM-resident, query tiles over M)
# ----------------------------------------------------------------------------
def _ball_query_kernel(xt_ref, q_ref, o_ref, *, radius2, nsample, n_points):
    xs = xt_ref[...]                                            # (3, N) f32
    q = q_ref[...]                                              # (tm, 3) f32
    n = n_points
    x2 = xs[0:1] * xs[0:1] + xs[1:2] * xs[1:2] + xs[2:3] * xs[2:3]         # (1, N)
    q2 = q[:, 0:1] * q[:, 0:1] + q[:, 1:2] * q[:, 1:2] + q[:, 2:3] * q[:, 2:3]  # (tm,1)
    qx = jnp.dot(q, xs, preferred_element_type=jnp.float32)     # (tm, N)
    d2 = q2 + x2 - 2.0 * qx
    lane_n = lax.broadcasted_iota(jnp.int32, d2.shape, 1)
    big = jnp.int32(2 * n)
    # in-radius points keep their index, others get index + N -> picked last
    keys = jnp.where(d2 < radius2, lane_n, lane_n + n)          # (tm, N) int32

    cols = []
    cur = keys
    for _ in range(nsample):                                    # "first nsample in radius"
        sel = jnp.min(cur, axis=1, keepdims=True)               # (tm, 1)
        cols.append(sel)
        cur = jnp.where(cur == sel, big, cur)
    idx = jnp.concatenate(cols, axis=1)                         # (tm, nsample)
    valid = idx < n
    first = idx[:, 0:1]
    first = jnp.where(first < n, first, 0)   # no neighbor -> 0 (matches CUDA zero-init)
    o_ref[...] = jnp.where(valid, idx, first)


def ball_query(xyz, new_xyz, radius, nsample, *, tm_max=128):
    """xyz: (B,N,3), new_xyz: (B,M,3) -> (B,M,nsample) int32 (pointnet2 semantics)."""
    B, N, _ = xyz.shape
    M = new_xyz.shape[1]
    tm = _pick_tile(M, tm_max, 8)
    Mp = _round_up(M, tm)
    nq = new_xyz.astype(jnp.float32)
    if Mp != M:
        nq = jnp.pad(nq, ((0, 0), (0, Mp - M), (0, 0)))
    xyz_t = jnp.transpose(xyz, (0, 2, 1)).astype(jnp.float32)   # (B, 3, N)
    # TODO(synk): for very large N, stream xyz in N-chunks instead of one block.
    idx = pl.pallas_call(
        functools.partial(_ball_query_kernel, radius2=float(radius) * float(radius),
                          nsample=nsample, n_points=N),
        out_shape=jax.ShapeDtypeStruct((B, Mp, nsample), jnp.int32),
        grid_spec=pltpu.PrefetchScalarGridSpec(
            num_scalar_prefetch=0,
            grid=(B, Mp // tm),
            in_specs=[pl.BlockSpec((None, 3, N), lambda b, i: (b, 0, 0)),
                      pl.BlockSpec((None, tm, 3), lambda b, i: (b, i, 0))],
            out_specs=pl.BlockSpec((None, tm, nsample), lambda b, i: (b, i, 0)),
        ),
        compiler_params=pltpu.CompilerParams(
            dimension_semantics=("parallel", "parallel")),
    )(xyz_t, nq)
    return idx[:, :M, :]


# ----------------------------------------------------------------------------
# Pallas kernel 3: fused per-scale MLP chain + max-pool over nsample
# (input is a flat 2D row tile; all channel widths padded to 128 lanes)
# ----------------------------------------------------------------------------
def _fused_mlp_pool_kernel(*refs, num_layers, ns):
    g_ref = refs[0]                                  # (tile_rows, cin) bf16
    lrefs = refs[1:1 + 3 * num_layers]
    o_ref = refs[1 + 3 * num_layers]                 # (tg, co_pad) bf16

    x = g_ref[...]
    y = None
    for k in range(num_layers):
        w = lrefs[3 * k][...]                        # (cin_k, co_k_pad) bf16
        s = lrefs[3 * k + 1][...]                    # (1, co_k_pad) f32
        b = lrefs[3 * k + 2][...]                    # (1, co_k_pad) f32
        y = jnp.dot(x, w, preferred_element_type=jnp.float32)
        y = jnp.maximum(y * s + b, 0.0)
        x = y.astype(jnp.bfloat16)
    rows, co = y.shape
    # pooling view: rows -> (groups, ns); padded groups are whole groups so
    # padding never mixes into a real group's max
    pooled = jnp.max(y.reshape(rows // ns, ns, co), axis=1)
    o_ref[...] = pooled.astype(o_ref.dtype)


def fused_mlp_maxpool(g_rows, layers, *, ns, n_groups, row_tile_max=2048):
    """g_rows: (n_groups*ns, cin) bf16 grouped rows; layers: padded {w,scale,bias}.
    Returns pooled (n_groups, co_pad) bf16 (lane-dense, co_pad multiple of 128)."""
    assert len(layers) >= 1
    rows, cin = g_rows.shape
    co_last = layers[-1]["w"].shape[1]

    tg_cap = max(16, ((row_tile_max // ns) // 16) * 16)
    tg = _pick_tile(n_groups, tg_cap, 16)
    gp = _round_up(n_groups, tg)
    if gp * ns != rows:
        g_rows = jnp.pad(g_rows, ((0, gp * ns - rows), (0, 0)))
    tile_rows = tg * ns

    in_specs = [pl.BlockSpec((tile_rows, cin), lambda i: (i, 0))]
    args = [g_rows]
    for layer in layers:
        ci, co = layer["w"].shape
        in_specs.append(pl.BlockSpec((ci, co), lambda i: (0, 0)))
        in_specs.append(pl.BlockSpec((1, co), lambda i: (0, 0)))
        in_specs.append(pl.BlockSpec((1, co), lambda i: (0, 0)))
        args.append(layer["w"].astype(jnp.bfloat16))
        args.append(layer["scale"].reshape(1, co))
        args.append(layer["bias"].reshape(1, co))

    out = pl.pallas_call(
        functools.partial(_fused_mlp_pool_kernel, num_layers=len(layers), ns=ns),
        out_shape=jax.ShapeDtypeStruct((gp, co_last), jnp.bfloat16),
        grid_spec=pltpu.PrefetchScalarGridSpec(
            num_scalar_prefetch=0,
            grid=(gp // tg,),
            in_specs=in_specs,
            out_specs=pl.BlockSpec((tg, co_last), lambda i: (i, 0)),
        ),
        compiler_params=pltpu.CompilerParams(dimension_semantics=("parallel",)),
    )(*args)
    return out[:n_groups]


# ----------------------------------------------------------------------------
# Pallas kernel 4: fused aggregation MLP + confidence MLP + final Conv1d
# ----------------------------------------------------------------------------
def _fused_head_kernel(*refs, num_agg, num_conf):
    x_ref = refs[0]
    n_layer_refs = 3 * (num_agg + num_conf) + 2
    lrefs = refs[1:1 + n_layer_refs]
    feat_out_ref = refs[1 + n_layer_refs]
    cls_out_ref = refs[2 + n_layer_refs]

    x = x_ref[...]                                   # (tm, cin_pad) bf16
    p = 0
    if num_agg == 0:
        feat_f32 = x.astype(jnp.float32)
    for _ in range(num_agg):
        w = lrefs[p][...]; s = lrefs[p + 1][...]; b = lrefs[p + 2][...]; p += 3
        feat_f32 = jnp.maximum(
            jnp.dot(x, w, preferred_element_type=jnp.float32) * s + b, 0.0)
        x = feat_f32.astype(jnp.bfloat16)
    feat_out_ref[...] = feat_f32

    for _ in range(num_conf):
        w = lrefs[p][...]; s = lrefs[p + 1][...]; b = lrefs[p + 2][...]; p += 3
        y = jnp.maximum(
            jnp.dot(x, w, preferred_element_type=jnp.float32) * s + b, 0.0)
        x = y.astype(jnp.bfloat16)
    wf = lrefs[p][...]; bf = lrefs[p + 1][...]
    cls_out_ref[...] = jnp.dot(x, wf, preferred_element_type=jnp.float32) + bf


def fused_head(feat, agg_layers, conf_layers, final_w, final_b,
               real_widths, pad_widths, *, tm_max=1024):
    """feat: (M, sum(pad_widths)) bf16 (concat of padded per-scale pooled features).
    Returns new_features (M, agg_out_pad) f32 and cls logits (M, nc_pad) f32
    (both lane-dense; caller slices the real widths)."""
    M, cin_pad_total = feat.shape
    offsets, off = [], 0
    for pw in pad_widths:
        offsets.append(off)
        off += pw
    scatter = list(zip(real_widths, offsets))

    padded = []
    cin_pad = cin_pad_total
    first = True
    for layer in list(agg_layers) + list(conf_layers):
        lay_p, cin_pad = _pad_bn_layer(layer["w"], layer["scale"], layer["bias"],
                                       cin_pad, row_scatter=scatter if first else None)
        padded.append(lay_p)
        first = False
    ci_f, num_class = final_w.shape
    nc_pad = _round_up(num_class, _LANE)
    wf_p = jnp.zeros((cin_pad, nc_pad), jnp.float32)
    if first:
        r = 0
        for rw, o in scatter:
            wf_p = wf_p.at[o:o + rw, :num_class].set(final_w[r:r + rw])
            r += rw
    else:
        wf_p = wf_p.at[:ci_f, :num_class].set(final_w)
    bf_p = jnp.zeros((nc_pad,), jnp.float32).at[:num_class].set(final_b)

    num_agg = len(agg_layers)
    num_conf = len(conf_layers)
    agg_out_pad = padded[num_agg - 1]["w"].shape[1] if num_agg else cin_pad_total

    tm = _pick_tile(M, tm_max, 16)
    mp = _round_up(M, tm)
    if mp != M:
        feat = jnp.pad(feat, ((0, mp - M), (0, 0)))

    in_specs = [pl.BlockSpec((tm, cin_pad_total), lambda i: (i, 0))]
    args = [feat]
    for lay in padded:
        ci, co = lay["w"].shape
        in_specs.append(pl.BlockSpec((ci, co), lambda i: (0, 0)))
        in_specs.append(pl.BlockSpec((1, co), lambda i: (0, 0)))
        in_specs.append(pl.BlockSpec((1, co), lambda i: (0, 0)))
        args.append(lay["w"].astype(jnp.bfloat16))
        args.append(lay["scale"].reshape(1, co))
        args.append(lay["bias"].reshape(1, co))
    in_specs.append(pl.BlockSpec((cin_pad, nc_pad), lambda i: (0, 0)))
    in_specs.append(pl.BlockSpec((1, nc_pad), lambda i: (0, 0)))
    args.append(wf_p.astype(jnp.bfloat16))
    args.append(bf_p.reshape(1, nc_pad))

    feat_out, cls_out = pl.pallas_call(
        functools.partial(_fused_head_kernel, num_agg=num_agg, num_conf=num_conf),
        out_shape=(jax.ShapeDtypeStruct((mp, agg_out_pad), jnp.float32),
                   jax.ShapeDtypeStruct((mp, nc_pad), jnp.float32)),
        grid_spec=pltpu.PrefetchScalarGridSpec(
            num_scalar_prefetch=0,
            grid=(mp // tm,),
            in_specs=in_specs,
            out_specs=[pl.BlockSpec((tm, agg_out_pad), lambda i: (i, 0)),
                       pl.BlockSpec((tm, nc_pad), lambda i: (i, 0))],
        ),
        compiler_params=pltpu.CompilerParams(dimension_semantics=("parallel",)),
    )(*args)
    return feat_out[:M], cls_out[:M]


# ----------------------------------------------------------------------------
# Plain-JAX glue: index gathers (data-dependent gather stays in XLA)
# ----------------------------------------------------------------------------
def gather_points(points, idx):
    """points: (B, N, D), idx: (B, ...) -> (B, ..., D)"""
    return jax.vmap(lambda p, i: p[i])(points, idx)


# ----------------------------------------------------------------------------
# Parameter init (deterministic, synthetic; BN folded to scale/bias)
# ----------------------------------------------------------------------------
def _fold_bn(gamma, beta, mean, var, eps=1e-5):
    s = gamma / jnp.sqrt(var + eps)
    return s, beta - mean * s


def _make_bn_layer(key, cin, cout):
    kw, kg, kb, km = jax.random.split(key, 4)
    w = 0.1 * jax.random.normal(kw, (cin, cout), jnp.float32)
    gamma = 1.0 + 0.05 * jax.random.normal(kg, (cout,), jnp.float32)
    beta = 0.05 * jax.random.normal(kb, (cout,), jnp.float32)
    mean = 0.05 * jax.random.normal(km, (cout,), jnp.float32)
    var = jnp.ones((cout,), jnp.float32)
    scale, bias = _fold_bn(gamma, beta, mean, var)
    return {"w": w, "scale": scale, "bias": bias}


def init_params(key, feat_channels, mlps, agg_mlp, conf_mlp, num_class, use_xyz=True):
    params = {"mlps": [], "agg": [], "conf": []}
    out_channels = 0
    for spec in mlps:
        spec = list(spec)
        if use_xyz:
            spec[0] += 3
        layers = []
        for k in range(len(spec) - 1):
            key, sub = jax.random.split(key)
            layers.append(_make_bn_layer(sub, spec[k], spec[k + 1]))
        params["mlps"].append(layers)
        out_channels += spec[-1]

    for c in agg_mlp:
        key, sub = jax.random.split(key)
        params["agg"].append(_make_bn_layer(sub, out_channels, c))
        out_channels = c

    for c in conf_mlp:
        key, sub = jax.random.split(key)
        params["conf"].append(_make_bn_layer(sub, out_channels, c))
        out_channels = c
    key, kw, kb = jax.random.split(key, 3)
    params["conf_final"] = {
        "w": 0.1 * jax.random.normal(kw, (out_channels, num_class), jnp.float32),
        "b": 0.05 * jax.random.normal(kb, (num_class,), jnp.float32),
    }
    return params


# ----------------------------------------------------------------------------
# Forward pass (PointnetSAModuleMSG_WithSampling, D-FPS sampling, max_pool)
# ----------------------------------------------------------------------------
def sa_module_forward(params, xyz, features, *, npoint, radii, nsamples):
    """
    xyz      : (B, N, 3)
    features : (B, C, N)   (PyTorch channels-first convention)
    returns  : new_xyz (B,npoint,3), new_features (B,Cout,npoint),
               cls_features (B,npoint,num_class), sampled_idx (B,npoint) int32
    """
    B, N, _ = xyz.shape

    # --- sampling (D-FPS, sample_range = -1) -> Pallas FPS kernel ---
    sampled_idx = farthest_point_sample(xyz, npoint)             # (B, npoint)
    new_xyz = gather_points(xyz, sampled_idx)                    # (B, npoint, 3)

    feats_t = jnp.transpose(features, (0, 2, 1))                 # (B, N, C)
    G = B * npoint

    real_widths, pad_widths, scale_outs = [], [], []
    for i, (radius, nsample) in enumerate(zip(radii, nsamples)):
        idx = ball_query(xyz, new_xyz, radius, nsample)          # Pallas (B,npoint,ns)
        gx = gather_points(xyz, idx) - new_xyz[:, :, None, :]    # relative xyz
        gf = gather_points(feats_t, idx)                         # (B, npoint, ns, C)
        # TODO(synk): gather still materializes the grouped tensor in HBM; fusing
        # it into the kernel (scalar-prefetch idx + in-kernel gather) is pending.
        g = jnp.concatenate([gx, gf], axis=-1)                   # use_xyz=True
        cin = g.shape[-1]
        g_rows = g.reshape(G * nsample, cin).astype(jnp.bfloat16)

        layers = params["mlps"][i]
        padded_layers = _pad_scale_layers(layers)
        pooled = fused_mlp_maxpool(g_rows, padded_layers, ns=nsample, n_groups=G)
        real_widths.append(layers[-1]["w"].shape[1])
        pad_widths.append(pooled.shape[1])
        scale_outs.append(pooled)                                # (G, co_pad) bf16

    feat = jnp.concatenate(scale_outs, axis=-1)                  # (G, sum co_pad) bf16

    # fused: aggregation Conv1d+BN+ReLU chain, confidence chain, final Conv1d
    fin = params["conf_final"]
    new_feat_p, cls_p = fused_head(feat, params["agg"], params["conf"],
                                   fin["w"], fin["b"], real_widths, pad_widths)
    agg_out = params["agg"][-1]["w"].shape[1] if params["agg"] else sum(real_widths)
    num_class = fin["w"].shape[1]
    new_feat = new_feat_p[:, :agg_out]
    cls = cls_p[:, :num_class]

    new_features = jnp.transpose(new_feat.reshape(B, npoint, agg_out), (0, 2, 1))
    cls_features = cls.reshape(B, npoint, num_class)
    return new_xyz, new_features, cls_features, sampled_idx


# ----------------------------------------------------------------------------
# Demo
# ----------------------------------------------------------------------------
if __name__ == "__main__":
    # Module config (small, consistent with PointnetSAModuleMSG_WithSampling):
    B, N, C = 2, 64, 4
    npoint_list = [16]
    sample_type_list = ["D-FPS"]
    sample_range_list = [-1]
    radii = [0.4, 0.8]
    nsamples = [8, 16]
    mlps = [[C, 8, 16], [C, 8, 16]]        # use_xyz=True -> first becomes C+3
    aggregation_mlp = [32]
    confidence_mlp = [32]
    num_class = 3

    key = jax.random.PRNGKey(0)
    kp, kx, kf = jax.random.split(key, 3)
    params = init_params(kp, C, mlps, aggregation_mlp, confidence_mlp, num_class)

    xyz = jax.random.normal(kx, (B, N, 3), jnp.float32)
    features = jax.random.normal(kf, (B, C, N), jnp.float32)

    fwd = jax.jit(
        functools.partial(
            sa_module_forward,
            npoint=npoint_list[0],
            radii=radii,
            nsamples=nsamples,
        )
    )
    new_xyz, new_features, cls_features, sampled_idx = fwd(params, xyz, features)
    jax.block_until_ready((new_xyz, new_features, cls_features, sampled_idx))

    assert new_xyz.shape == (B, npoint_list[0], 3)
    assert new_features.shape == (B, aggregation_mlp[-1], npoint_list[0])
    assert cls_features.shape == (B, npoint_list[0], num_class)
    assert sampled_idx.shape == (B, npoint_list[0])
    assert bool(jnp.all(jnp.isfinite(new_features)))
    assert bool(jnp.all(jnp.isfinite(cls_features)))
    assert bool(jnp.all((sampled_idx >= 0) & (sampled_idx < N)))
    print("KERNEL_OK")
</pallas_src>

<mosaic_0001>
module attributes {stable_mosaic.version = 11 : i64} {
  func.func @_fps_kernel(%arg0: i32, %arg1: memref<1x3x64xf32, #tpu.memory_space<vmem>>, %arg2: memref<1x16x1xi32, #tpu.memory_space<vmem>>) attributes {dimension_semantics = [#tpu.dimension_semantics<parallel>], iteration_bounds = array<i64: 2>, scalar_prefetch = 0 : i64, scratch_operands = 0 : i64, tpu.core_type = #tpu.core_type<tc>, window_params = [{transform_indices = @transform_0, window_bounds = array<i64: 1, 3, 64>}, {transform_indices = @transform_1, window_bounds = array<i64: 1, 16, 1>}]} {
    %c0 = arith.constant 0 : index
    %c0_0 = arith.constant 0 : index
    %c0_1 = arith.constant 0 : index
    %0 = vector.load %arg1[%c0, %c0_0, %c0_1] : memref<1x3x64xf32, #tpu.memory_space<vmem>>, vector<1x3x64xf32>
    %1 = vector.shape_cast %0 : vector<1x3x64xf32> to vector<3x64xf32>
    %2 = tpu.iota {dimensions = array<i32: 1>} : vector<1x64xi32>
    %3 = vector.extract_strided_slice %1 {offsets = [0, 0], sizes = [1, 64], strides = [1, 1]} : vector<3x64xf32> to vector<1x64xf32>
    %4 = vector.extract_strided_slice %1 {offsets = [0, 0], sizes = [1, 64], strides = [1, 1]} : vector<3x64xf32> to vector<1x64xf32>
    %5 = arith.mulf %3, %4 : vector<1x64xf32>
    %6 = vector.extract_strided_slice %1 {offsets = [1, 0], sizes = [1, 64], strides = [1, 1]} : vector<3x64xf32> to vector<1x64xf32>
    %7 = vector.extract_strided_slice %1 {offsets = [1, 0], sizes = [1, 64], strides = [1, 1]} : vector<3x64xf32> to vector<1x64xf32>
    %8 = arith.mulf %6, %7 : vector<1x64xf32>
    %9 = arith.addf %5, %8 : vector<1x64xf32>
    %10 = vector.extract_strided_slice %1 {offsets = [2, 0], sizes = [1, 64], strides = [1, 1]} : vector<3x64xf32> to vector<1x64xf32>
    %11 = vector.extract_strided_slice %1 {offsets = [2, 0], sizes = [1, 64], strides = [1, 1]} : vector<3x64xf32> to vector<1x64xf32>
    %12 = arith.mulf %10, %11 : vector<1x64xf32>
    %13 = arith.addf %9, %12 : vector<1x64xf32>
    %cst = arith.constant 1.000000e+10 : f32
    %14 = vector.broadcast %cst : f32 to vector<1x64xf32>
    %c0_i32 = arith.constant 0 : i32
    %15 = vector.broadcast %c0_i32 : i32 to vector<1x1xi32>
    %c0_i32_2 = arith.constant 0 : i32
    %c16_i32 = arith.constant 16 : i32
    %16 = arith.addi %c0_i32_2, %c16_i32 : i32
    %c1_i32 = arith.constant 1 : i32
    %17:2 = scf.for %arg3 = %c0_i32_2 to %16 step %c1_i32 iter_args(%arg4 = %14, %arg5 = %15) -> (vector<1x64xf32>, vector<1x1xi32>)  : i32 {
      %c0_4 = arith.constant 0 : index
      %18 = arith.index_cast %arg3 : i32 to index
      %c0_5 = arith.constant 0 : index
      %19 = vector.load %arg2[%c0_4, %18, %c0_5] : memref<1x16x1xi32, #tpu.memory_space<vmem>>, vector<1x1x1xi32>
      %20 = vector.shape_cast %19 : vector<1x1x1xi32> to vector<1x1xi32>
      %21 = vector.shape_cast %arg5 : vector<1x1xi32> to vector<1x1x1xi32>
      tpu.vector_store %arg2[%c0_4, %18, %c0_5], %21 {strides = array<i32>} : memref<1x16x1xi32, #tpu.memory_space<vmem>>, vector<1x1x1xi32>,
      %22 = vector.broadcast %arg5 : vector<1x1xi32> to vector<1x64xi32>
      %23 = arith.cmpi eq, %2, %22 : vector<1x64xi32>
      %24 = arith.extui %23 : vector<1x64xi1> to vector<1x64xi32>
      %25 = arith.sitofp %24 : vector<1x64xi32> to vector<1x64xf32>
      %26 = vector.broadcast %25 : vector<1x64xf32> to vector<3x64xf32>
      %27 = arith.mulf %1, %26 : vector<3x64xf32>
      %cst_6 = arith.constant dense<0.000000e+00> : vector<3xf32>
      %28 = vector.multi_reduction <add>, %27, %cst_6 [1] : vector<3x64xf32> to vector<3xf32>
      %29 = vector.shape_cast %28 : vector<3xf32> to vector<3x1xf32>
      %30 = vector.extract_strided_slice %1 {offsets = [0, 0], sizes = [1, 64], strides = [1, 1]} : vector<3x64xf32> to vector<1x64xf32>
      %31 = vector.extract_strided_slice %29 {offsets = [0, 0], sizes = [1, 1], strides = [1, 1]} : vector<3x1xf32> to vector<1x1xf32>
      %32 = vector.broadcast %31 : vector<1x1xf32> to vector<1x64xf32>
      %33 = arith.mulf %30, %32 : vector<1x64xf32>
      %34 = vector.extract_strided_slice %1 {offsets = [1, 0], sizes = [1, 64], strides = [1, 1]} : vector<3x64xf32> to vector<1x64xf32>
      %35 = vector.extract_strided_slice %29 {offsets = [1, 0], sizes = [1, 1], strides = [1, 1]} : vector<3x1xf32> to vector<1x1xf32>
      %36 = vector.broadcast %35 : vector<1x1xf32> to vector<1x64xf32>
      %37 = arith.mulf %34, %36 : vector<1x64xf32>
      %38 = arith.addf %33, %37 : vector<1x64xf32>
      %39 = vector.extract_strided_slice %1 {offsets = [2, 0], sizes = [1, 64], strides = [1, 1]} : vector<3x64xf32> to vector<1x64xf32>
      %40 = vector.extract_strided_slice %29 {offsets = [2, 0], sizes = [1, 1], strides = [1, 1]} : vector<3x1xf32> to vector<1x1xf32>
      %41 = vector.broadcast %40 : vector<1x1xf32> to vector<1x64xf32>
      %42 = arith.mulf %39, %41 : vector<1x64xf32>
      %43 = arith.addf %38, %42 : vector<1x64xf32>
      %44 = vector.extract_strided_slice %29 {offsets = [0, 0], sizes = [1, 1], strides = [1, 1]} : vector<3x1xf32> to vector<1x1xf32>
      %45 = vector.extract_strided_slice %29 {offsets = [0, 0], sizes = [1, 1], strides = [1, 1]} : vector<3x1xf32> to vector<1x1xf32>
      %46 = arith.mulf %44, %45 : vector<1x1xf32>
      %47 = vector.extract_strided_slice %29 {offsets = [1, 0], sizes = [1, 1], strides = [1, 1]} : vector<3x1xf32> to vector<1x1xf32>
      %48 = vector.extract_strided_slice %29 {offsets = [1, 0], sizes = [1, 1], strides = [1, 1]} : vector<3x1xf32> to vector<1x1xf32>
      %49 = arith.mulf %47, %48 : vector<1x1xf32>
      %50 = arith.addf %46, %49 : vector<1x1xf32>
      %51 = vector.extract_strided_slice %29 {offsets = [2, 0], sizes = [1, 1], strides = [1, 1]} : vector<3x1xf32> to vector<1x1xf32>
      %52 = vector.extract_strided_slice %29 {offsets = [2, 0], sizes = [1, 1], strides = [1, 1]} : vector<3x1xf32> to vector<1x1xf32>
      %53 = arith.mulf %51, %52 : vector<1x1xf32>
      %54 = arith.addf %50, %53 : vector<1x1xf32>
      %cst_7 = arith.constant 2.000000e+00 : f32
      %55 = vector.broadcast %cst_7 : f32 to vector<1x64xf32>
      %56 = arith.mulf %55, %43 : vector<1x64xf32>
      %57 = arith.subf %13, %56 : vector<1x64xf32>
      %58 = vector.broadcast %54 : vector<1x1xf32> to vector<1x64xf32>
      %59 = arith.addf %57, %58 : vector<1x64xf32>
      %60 = arith.minimumf %arg4, %59 : vector<1x64xf32>
      %cst_8 = arith.constant dense<0xFF800000> : vector<1xf32>
      %61 = vector.multi_reduction <maximumf>, %60, %cst_8 [1] : vector<1x64xf32> to vector<1xf32>
      %62 = vector.shape_cast %61 : vector<1xf32> to vector<1x1xf32>
      %63 = vector.broadcast %62 : vector<1x1xf32> to vector<1x64xf32>
      %64 = arith.cmpf oge, %60, %63 : vector<1x64xf32>
      %c64_i32 = arith.constant 64 : i32
      %65 = vector.broadcast %c64_i32 : i32 to vector<1x64xi32>
      %66 = arith.select %64, %2, %65 : vector<1x64xi1>, vector<1x64xi32>
      %cst_9 = arith.constant dense<2147483647> : vector<1xi32>
      %67 = vector.multi_reduction <minsi>, %66, %cst_9 [1] : vector<1x64xi32> to vector<1xi32>
      %68 = vector.shape_cast %67 : vector<1xi32> to vector<1x1xi32>
      scf.yield %60, %68 : vector<1x64xf32>, vector<1x1xi32>
    }
    %c16_i32_3 = arith.constant 16 : i32
    return
  }
  func.func @transform_0(%arg0: i32) -> (i32, i32, i32) {
    %c0_i32 = arith.constant 0 : i32
    %c0_i32_0 = arith.constant 0 : i32
    %c0_i32_1 = arith.constant 0 : i32
    return %arg0, %c0_i32, %c0_i32_0 : i32, i32, i32
  }
  func.func @transform_1(%arg0: i32) -> (i32, i32, i32) {
    %c0_i32 = arith.constant 0 : i32
    %c0_i32_0 = arith.constant 0 : i32
    %c0_i32_1 = arith.constant 0 : i32
    return %arg0, %c0_i32, %c0_i32_0 : i32, i32, i32
  }
}

module attributes {stable_mosaic.version = 11 : i64} {
  func.func @_ball_query_kernel(%arg0: i32, %arg1: i32, %arg2: memref<1x3x64xf32, #tpu.memory_space<vmem>>, %arg3: memref<1x8x3xf32, #tpu.memory_space<vmem>>, %arg4: memref<1x8x8xi32, #tpu.memory_space<vmem>>) attributes {dimension_semantics = [#tpu.dimension_semantics<parallel>, #tpu.dimension_semantics<parallel>], iteration_bounds = array<i64: 2, 2>, scalar_prefetch = 0 : i64, scratch_operands = 0 : i64, tpu.core_type = #tpu.core_type<tc>, window_params = [{transform_indices = @transform_0, window_bounds = array<i64: 1, 3, 64>}, {transform_indices = @transform_1, window_bounds = array<i64: 1, 8, 3>}, {transform_indices = @transform_2, window_bounds = array<i64: 1, 8, 8>}]} {
    %c0 = arith.constant 0 : index
    %c0_0 = arith.constant 0 : index
    %c0_1 = arith.constant 0 : index
    %0 = vector.load %arg2[%c0, %c0_0, %c0_1] : memref<1x3x64xf32, #tpu.memory_space<vmem>>, vector<1x3x64xf32>
    %1 = vector.shape_cast %0 : vector<1x3x64xf32> to vector<3x64xf32>
    %c0_2 = arith.constant 0 : index
    %c0_3 = arith.constant 0 : index
    %c0_4 = arith.constant 0 : index
    %2 = vector.load %arg3[%c0_2, %c0_3, %c0_4] : memref<1x8x3xf32, #tpu.memory_space<vmem>>, vector<1x8x3xf32>
    %3 = vector.shape_cast %2 : vector<1x8x3xf32> to vector<8x3xf32>
    %4 = vector.extract_strided_slice %1 {offsets = [0, 0], sizes = [1, 64], strides = [1, 1]} : vector<3x64xf32> to vector<1x64xf32>
    %5 = vector.extract_strided_slice %1 {offsets = [0, 0], sizes = [1, 64], strides = [1, 1]} : vector<3x64xf32> to vector<1x64xf32>
    %6 = arith.mulf %4, %5 : vector<1x64xf32>
    %7 = vector.extract_strided_slice %1 {offsets = [1, 0], sizes = [1, 64], strides = [1, 1]} : vector<3x64xf32> to vector<1x64xf32>
    %8 = vector.extract_strided_slice %1 {offsets = [1, 0], sizes = [1, 64], strides = [1, 1]} : vector<3x64xf32> to vector<1x64xf32>
    %9 = arith.mulf %7, %8 : vector<1x64xf32>
    %10 = arith.addf %6, %9 : vector<1x64xf32>
    %11 = vector.extract_strided_slice %1 {offsets = [2, 0], sizes = [1, 64], strides = [1, 1]} : vector<3x64xf32> to vector<1x64xf32>
    %12 = vector.extract_strided_slice %1 {offsets = [2, 0], sizes = [1, 64], strides = [1, 1]} : vector<3x64xf32> to vector<1x64xf32>
    %13 = arith.mulf %11, %12 : vector<1x64xf32>
    %14 = arith.addf %10, %13 : vector<1x64xf32>
    %15 = vector.extract_strided_slice %3 {offsets = [0, 0], sizes = [8, 1], strides = [1, 1]} : vector<8x3xf32> to vector<8x1xf32>
    %16 = vector.extract_strided_slice %3 {offsets = [0, 0], sizes = [8, 1], strides = [1, 1]} : vector<8x3xf32> to vector<8x1xf32>
    %17 = arith.mulf %15, %16 : vector<8x1xf32>
    %18 = vector.extract_strided_slice %3 {offsets = [0, 1], sizes = [8, 1], strides = [1, 1]} : vector<8x3xf32> to vector<8x1xf32>
    %19 = vector.extract_strided_slice %3 {offsets = [0, 1], sizes = [8, 1], strides = [1, 1]} : vector<8x3xf32> to vector<8x1xf32>
    %20 = arith.mulf %18, %19 : vector<8x1xf32>
    %21 = arith.addf %17, %20 : vector<8x1xf32>
    %22 = vector.extract_strided_slice %3 {offsets = [0, 2], sizes = [8, 1], strides = [1, 1]} : vector<8x3xf32> to vector<8x1xf32>
    %23 = vector.extract_strided_slice %3 {offsets = [0, 2], sizes = [8, 1], strides = [1, 1]} : vector<8x3xf32> to vector<8x1xf32>
    %24 = arith.mulf %22, %23 : vector<8x1xf32>
    %25 = arith.addf %21, %24 : vector<8x1xf32>
    %cst = arith.constant dense<0.000000e+00> : vector<8x64xf32>
    %26 = tpu.matmul %3, %1, %cst {dimension_numbers = #tpu.dot_dimension_numbers<[1], [0], [0], [1], [0, 0, 1, 1], [], []>} : vector<8x3xf32>, vector<3x64xf32>, vector<8x64xf32> -> vector<8x64xf32>
    %27 = vector.broadcast %25 : vector<8x1xf32> to vector<8x64xf32>
    %28 = vector.broadcast %14 : vector<1x64xf32> to vector<8x64xf32>
    %29 = arith.addf %27, %28 : vector<8x64xf32>
    %cst_5 = arith.constant 2.000000e+00 : f32
    %30 = vector.broadcast %cst_5 : f32 to vector<8x64xf32>
    %31 = arith.mulf %30, %26 : vector<8x64xf32>
    %32 = arith.subf %29, %31 : vector<8x64xf32>
    %33 = tpu.iota {dimensions = array<i32: 1>} : vector<8x64xi32>
    %cst_6 = arith.constant 1.600000e-01 : f32
    %34 = vector.broadcast %cst_6 : f32 to vector<8x64xf32>
    %35 = arith.cmpf olt, %32, %34 : vector<8x64xf32>
    %c64_i32 = arith.constant 64 : i32
    %36 = vector.broadcast %c64_i32 : i32 to vector<8x64xi32>
    %37 = arith.addi %33, %36 : vector<8x64xi32>
    %38 = arith.select %35, %33, %37 : vector<8x64xi1>, vector<8x64xi32>
    %cst_7 = arith.constant dense<2147483647> : vector<8xi32>
    %39 = vector.multi_reduction <minsi>, %38, %cst_7 [1] : vector<8x64xi32> to vector<8xi32>
    %40 = vector.shape_cast %39 : vector<8xi32> to vector<8x1xi32>
    %41 = vector.broadcast %40 : vector<8x1xi32> to vector<8x64xi32>
    %42 = arith.cmpi eq, %38, %41 : vector<8x64xi32>
    %c128_i32 = arith.constant 128 : i32
    %43 = vector.broadcast %c128_i32 : i32 to vector<8x64xi32>
    %44 = arith.select %42, %43, %38 : vector<8x64xi1>, vector<8x64xi32>
    %cst_8 = arith.constant dense<2147483647> : vector<8xi32>
    %45 = vector.multi_reduction <minsi>, %44, %cst_8 [1] : vector<8x64xi32> to vector<8xi32>
    %46 = vector.shape_cast %45 : vector<8xi32> to vector<8x1xi32>
    %47 = vector.broadcast %46 : vector<8x1xi32> to vector<8x64xi32>
    %48 = arith.cmpi eq, %44, %47 : vector<8x64xi32>
    %c128_i32_9 = arith.constant 128 : i32
    %49 = vector.broadcast %c128_i32_9 : i32 to vector<8x64xi32>
    %50 = arith.select %48, %49, %44 : vector<8x64xi1>, vector<8x64xi32>
    %cst_10 = arith.constant dense<2147483647> : vector<8xi32>
    %51 = vector.multi_reduction <minsi>, %50, %cst_10 [1] : vector<8x64xi32> to vector<8xi32>
    %52 = vector.shape_cast %51 : vector<8xi32> to vector<8x1xi32>
    %53 = vector.broadcast %52 : vector<8x1xi32> to vector<8x64xi32>
    %54 = arith.cmpi eq, %50, %53 : vector<8x64xi32>
    %c128_i32_11 = arith.constant 128 : i32
    %55 = vector.broadcast %c128_i32_11 : i32 to vector<8x64xi32>
    %56 = arith.select %54, %55, %50 : vector<8x64xi1>, vector<8x64xi32>
    %cst_12 = arith.constant dense<2147483647> : vector<8xi32>
    %57 = vector.multi_reduction <minsi>, %56, %cst_12 [1] : vector<8x64xi32> to vector<8xi32>
    %58 = vector.shape_cast %57 : vector<8xi32> to vector<8x1xi32>
    %59 = vector.broadcast %58 : vector<8x1xi32> to vector<8x64xi32>
    %60 = arith.cmpi eq, %56, %59 : vector<8x64xi32>
    %c128_i32_13 = arith.constant 128 : i32
    %61 = vector.broadcast %c128_i32_13 : i32 to vector<8x64xi32>
    %62 = arith.select %60, %61, %56 : vector<8x64xi1>, vector<8x64xi32>
    %cst_14 = arith.constant dense<2147483647> : vector<8xi32>
    %63 = vector.multi_reduction <minsi>, %62, %cst_14 [1] : vector<8x64xi32> to vector<8xi32>
    %64 = vector.shape_cast %63 : vector<8xi32> to vector<8x1xi32>
    %65 = vector.broadcast %64 : vector<8x1xi32> to vector<8x64xi32>
    %66 = arith.cmpi eq, %62, %65 : vector<8x64xi32>
    %c128_i32_15 = arith.constant 128 : i32
    %67 = vector.broadcast %c128_i32_15 : i32 to vector<8x64xi32>
    %68 = arith.select %66, %67, %62 : vector<8x64xi1>, vector<8x64xi32>
    %cst_16 = arith.constant dense<2147483647> : vector<8xi32>
    %69 = vector.multi_reduction <minsi>, %68, %cst_16 [1] : vector<8x64xi32> to vector<8xi32>
    %70 = vector.shape_cast %69 : vector<8xi32> to vector<8x1xi32>
    %71 = vector.broadcast %70 : vector<8x1xi32> to vector<8x64xi32>
    %72 = arith.cmpi eq, %68, %71 : vector<8x64xi32>
    %c128_i32_17 = arith.constant 128 : i32
    %73 = vector.broadcast %c128_i32_17 : i32 to vector<8x64xi32>
    %74 = arith.select %72, %73, %68 : vector<8x64xi1>, vector<8x64xi32>
    %cst_18 = arith.constant dense<2147483647> : vector<8xi32>
    %75 = vector.multi_reduction <minsi>, %74, %cst_18 [1] : vector<8x64xi32> to vector<8xi32>
    %76 = vector.shape_cast %75 : vector<8xi32> to vector<8x1xi32>
    %77 = vector.broadcast %76 : vector<8x1xi32> to vector<8x64xi32>
    %78 = arith.cmpi eq, %74, %77 : vector<8x64xi32>
    %c128_i32_19 = arith.constant 128 : i32
    %79 = vector.broadcast %c128_i32_19 : i32 to vector<8x64xi32>
    %80 = arith.select %78, %79, %74 : vector<8x64xi1>, vector<8x64xi32>
    %cst_20 = arith.constant dense<2147483647> : vector<8xi32>
    %81 = vector.multi_reduction <minsi>, %80, %cst_20 [1] : vector<8x64xi32> to vector<8xi32>
    %82 = vector.shape_cast %81 : vector<8xi32> to vector<8x1xi32>
    %83 = tpu.concatenate %40, %46, %52, %58, %64, %70, %76, %82 in 1 : vector<8x1xi32>, vector<8x1xi32>, vector<8x1xi32>, vector<8x1xi32>, vector<8x1xi32>, vector<8x1xi32>, vector<8x1xi32>, vector<8x1xi32> -> vector<8x8xi32>
    %c64_i32_21 = arith.constant 64 : i32
    %84 = vector.broadcast %c64_i32_21 : i32 to vector<8x8xi32>
    %85 = arith.cmpi slt, %83, %84 : vector<8x8xi32>
    %86 = vector.extract_strided_slice %83 {offsets = [0, 0], sizes = [8, 1], strides = [1, 1]} : vector<8x8xi32> to vector<8x1xi32>
    %c64_i32_22 = arith.constant 64 : i32
    %87 = vector.broadcast %c64_i32_22 : i32 to vector<8x1xi32>
    %88 = arith.cmpi slt, %86, %87 : vector<8x1xi32>
    %c0_i32 = arith.constant 0 : i32
    %89 = vector.broadcast %c0_i32 : i32 to vector<8x1xi32>
    %90 = arith.select %88, %86, %89 : vector<8x1xi1>, vector<8x1xi32>
    %91 = vector.shape_cast %90 : vector<8x1xi32> to vector<8x1xi32>
    %92 = vector.broadcast %91 : vector<8x1xi32> to vector<8x8xi32>
    %93 = arith.select %85, %83, %92 : vector<8x8xi1>, vector<8x8xi32>
    %c0_23 = arith.constant 0 : index
    %c0_24 = arith.constant 0 : index
    %c0_25 = arith.constant 0 : index
    %94 = vector.load %arg4[%c0_23, %c0_24, %c0_25] : memref<1x8x8xi32, #tpu.memory_space<vmem>>, vector<1x8x8xi32>
    %95 = vector.shape_cast %94 : vector<1x8x8xi32> to vector<8x8xi32>
    %96 = vector.shape_cast %93 : vector<8x8xi32> to vector<1x8x8xi32>
    tpu.vector_store %arg4[%c0_23, %c0_24, %c0_25], %96 {strides = array<i32>} : memref<1x8x8xi32, #tpu.memory_space<vmem>>, vector<1x8x8xi32>,
    return
  }
  func.func @transform_0(%arg0: i32, %arg1: i32) -> (i32, i32, i32) {
    %c0_i32 = arith.constant 0 : i32
    %c0_i32_0 = arith.constant 0 : i32
    %c0_i32_1 = arith.constant 0 : i32
    return %arg0, %c0_i32, %c0_i32_0 : i32, i32, i32
  }
  func.func @transform_1(%arg0: i32, %arg1: i32) -> (i32, i32, i32) {
    %c0_i32 = arith.constant 0 : i32
    %c0_i32_0 = arith.constant 0 : i32
    return %arg0, %arg1, %c0_i32 : i32, i32, i32
  }
  func.func @transform_2(%arg0: i32, %arg1: i32) -> (i32, i32, i32) {
    %c0_i32 = arith.constant 0 : i32
    %c0_i32_0 = arith.constant 0 : i32
    return %arg0, %arg1, %c0_i32 : i32, i32, i32
  }
}

module attributes {stable_mosaic.version = 11 : i64} {
  func.func @_fused_mlp_pool_kernel(%arg0: i32, %arg1: memref<128x7xbf16, #tpu.memory_space<vmem>>, %arg2: memref<7x128xbf16, #tpu.memory_space<vmem>>, %arg3: memref<1x128xf32, #tpu.memory_space<vmem>>, %arg4: memref<1x128xf32, #tpu.memory_space<vmem>>, %arg5: memref<128x128xbf16, #tpu.memory_space<vmem>>, %arg6: memref<1x128xf32, #tpu.memory_space<vmem>>, %arg7: memref<1x128xf32, #tpu.memory_space<vmem>>, %arg8: memref<16x128xbf16, #tpu.memory_space<vmem>>) attributes {dimension_semantics = [#tpu.dimension_semantics<parallel>], iteration_bounds = array<i64: 2>, scalar_prefetch = 0 : i64, scratch_operands = 0 : i64, tpu.core_type = #tpu.core_type<tc>, window_params = [{transform_indices = @transform_0, window_bounds = array<i64: 128, 7>}, {pipeline_mode = #tpu.pipeline_mode<synchronous>, transform_indices = @transform_1, window_bounds = array<i64: 7, 128>}, {pipeline_mode = #tpu.pipeline_mode<synchronous>, transform_indices = @transform_2, window_bounds = array<i64: 1, 128>}, {pipeline_mode = #tpu.pipeline_mode<synchronous>, transform_indices = @transform_3, window_bounds = array<i64: 1, 128>}, {pipeline_mode = #tpu.pipeline_mode<synchronous>, transform_indices = @transform_4, window_bounds = array<i64: 128, 128>}, {pipeline_mode = #tpu.pipeline_mode<synchronous>, transform_indices = @transform_5, window_bounds = array<i64: 1, 128>}, {pipeline_mode = #tpu.pipeline_mode<synchronous>, transform_indices = @transform_6, window_bounds = array<i64: 1, 128>}, {transform_indices = @transform_7, window_bounds = array<i64: 16, 128>}]} {
    %c0 = arith.constant 0 : index
    %c0_0 = arith.constant 0 : index
    %0 = vector.load %arg1[%c0, %c0_0] : memref<128x7xbf16, #tpu.memory_space<vmem>>, vector<128x7xbf16>
    %c0_1 = arith.constant 0 : index
    %c0_2 = arith.constant 0 : index
    %1 = vector.load %arg2[%c0_1, %c0_2] : memref<7x128xbf16, #tpu.memory_space<vmem>>, vector<7x128xbf16>
    %c0_3 = arith.constant 0 : index
    %c0_4 = arith.constant 0 : index
    %2 = vector.load %arg3[%c0_3, %c0_4] : memref<1x128xf32, #tpu.memory_space<vmem>>, vector<1x128xf32>
    %c0_5 = arith.constant 0 : index
    %c0_6 = arith.constant 0 : index
    %3 = vector.load %arg4[%c0_5, %c0_6] : memref<1x128xf32, #tpu.memory_space<vmem>>, vector<1x128xf32>
    %cst = arith.constant dense<0.000000e+00> : vector<128x128xf32>
    %4 = tpu.matmul %0, %1, %cst {dimension_numbers = #tpu.dot_dimension_numbers<[1], [0], [0], [1], [0, 0, 1, 1], [], []>} : vector<128x7xbf16>, vector<7x128xbf16>, vector<128x128xf32> -> vector<128x128xf32>
    %5 = vector.broadcast %2 : vector<1x128xf32> to vector<128x128xf32>
    %6 = arith.mulf %4, %5 : vector<128x128xf32>
    %7 = vector.broadcast %3 : vector<1x128xf32> to vector<128x128xf32>
    %8 = arith.addf %6, %7 : vector<128x128xf32>
    %cst_7 = arith.constant 0.000000e+00 : f32
    %9 = vector.broadcast %cst_7 : f32 to vector<128x128xf32>
    %10 = arith.maximumf %8, %9 : vector<128x128xf32>
    %11 = arith.truncf %10 : vector<128x128xf32> to vector<128x128xbf16>
    %c0_8 = arith.constant 0 : index
    %c0_9 = arith.constant 0 : index
    %12 = vector.load %arg5[%c0_8, %c0_9] : memref<128x128xbf16, #tpu.memory_space<vmem>>, vector<128x128xbf16>
    %c0_10 = arith.constant 0 : index
    %c0_11 = arith.constant 0 : index
    %13 = vector.load %arg6[%c0_10, %c0_11] : memref<1x128xf32, #tpu.memory_space<vmem>>, vector<1x128xf32>
    %c0_12 = arith.constant 0 : index
    %c0_13 = arith.constant 0 : index
    %14 = vector.load %arg7[%c0_12, %c0_13] : memref<1x128xf32, #tpu.memory_space<vmem>>, vector<1x128xf32>
    %cst_14 = arith.constant dense<0.000000e+00> : vector<128x128xf32>
    %15 = tpu.matmul %11, %12, %cst_14 {dimension_numbers = #tpu.dot_dimension_numbers<[1], [0], [0], [1], [0, 0, 1, 1], [], []>} : vector<128x128xbf16>, vector<128x128xbf16>, vector<128x128xf32> -> vector<128x128xf32>
    %16 = vector.broadcast %13 : vector<1x128xf32> to vector<128x128xf32>
    %17 = arith.mulf %15, %16 : vector<128x128xf32>
    %18 = vector.broadcast %14 : vector<1x128xf32> to vector<128x128xf32>
    %19 = arith.addf %17, %18 : vector<128x128xf32>
    %cst_15 = arith.constant 0.000000e+00 : f32
    %20 = vector.broadcast %cst_15 : f32 to vector<128x128xf32>
    %21 = arith.maximumf %19, %20 : vector<128x128xf32>
    %22 = vector.shape_cast %21 : vector<128x128xf32> to vector<16x8x128xf32>
    %cst_16 = arith.constant dense<0xFF800000> : vector<16x128xf32>
    %23 = vector.multi_reduction <maximumf>, %22, %cst_16 [1] : vector<16x8x128xf32> to vector<16x128xf32>
    %24 = arith.truncf %23 : vector<16x128xf32> to vector<16x128xbf16>
    %c0_17 = arith.constant 0 : index
    %c0_18 = arith.constant 0 : index
    %25 = vector.load %arg8[%c0_17, %c0_18] : memref<16x128xbf16, #tpu.memory_space<vmem>>, vector<16x128xbf16>
    tpu.vector_store %arg8[%c0_17, %c0_18], %24 {strides = array<i32>} : memref<16x128xbf16, #tpu.memory_space<vmem>>, vector<16x128xbf16>,
    return
  }
  func.func @transform_0(%arg0: i32) -> (i32, i32) {
    %c0_i32 = arith.constant 0 : i32
    %c0_i32_0 = arith.constant 0 : i32
    return %arg0, %c0_i32 : i32, i32
  }
  func.func @transform_1(%arg0: i32) -> (i32, i32) {
    %c0_i32 = arith.constant 0 : i32
    %c0_i32_0 = arith.constant 0 : i32
    %c0_i32_1 = arith.constant 0 : i32
    return %c0_i32, %c0_i32_0 : i32, i32
  }
  func.func @transform_2(%arg0: i32) -> (i32, i32) {
    %c0_i32 = arith.constant 0 : i32
    %c0_i32_0 = arith.constant 0 : i32
    %c0_i32_1 = arith.constant 0 : i32
    return %c0_i32, %c0_i32_0 : i32, i32
  }
  func.func @transform_3(%arg0: i32) -> (i32, i32) {
    %c0_i32 = arith.constant 0 : i32
    %c0_i32_0 = arith.constant 0 : i32
    %c0_i32_1 = arith.constant 0 : i32
    return %c0_i32, %c0_i32_0 : i32, i32
  }
  func.func @transform_4(%arg0: i32) -> (i32, i32) {
    %c0_i32 = arith.constant 0 : i32
    %c0_i32_0 = arith.constant 0 : i32
    %c0_i32_1 = arith.constant 0 : i32
    return %c0_i32, %c0_i32_0 : i32, i32
  }
  func.func @transform_5(%arg0: i32) -> (i32, i32) {
    %c0_i32 = arith.constant 0 : i32
    %c0_i32_0 = arith.constant 0 : i32
    %c0_i32_1 = arith.constant 0 : i32
    return %c0_i32, %c0_i32_0 : i32, i32
  }
  func.func @transform_6(%arg0: i32) -> (i32, i32) {
    %c0_i32 = arith.constant 0 : i32
    %c0_i32_0 = arith.constant 0 : i32
    %c0_i32_1 = arith.constant 0 : i32
    return %c0_i32, %c0_i32_0 : i32, i32
  }
  func.func @transform_7(%arg0: i32) -> (i32, i32) {
    %c0_i32 = arith.constant 0 : i32
    %c0_i32_0 = arith.constant 0 : i32
    return %arg0, %c0_i32 : i32, i32
  }
}

module attributes {stable_mosaic.version = 11 : i64} {
  func.func @_ball_query_kernel(%arg0: i32, %arg1: i32, %arg2: memref<1x3x64xf32, #tpu.memory_space<vmem>>, %arg3: memref<1x8x3xf32, #tpu.memory_space<vmem>>, %arg4: memref<1x8x16xi32, #tpu.memory_space<vmem>>) attributes {dimension_semantics = [#tpu.dimension_semantics<parallel>, #tpu.dimension_semantics<parallel>], iteration_bounds = array<i64: 2, 2>, scalar_prefetch = 0 : i64, scratch_operands = 0 : i64, tpu.core_type = #tpu.core_type<tc>, window_params = [{transform_indices = @transform_0, window_bounds = array<i64: 1, 3, 64>}, {transform_indices = @transform_1, window_bounds = array<i64: 1, 8, 3>}, {transform_indices = @transform_2, window_bounds = array<i64: 1, 8, 16>}]} {
    %c0 = arith.constant 0 : index
    %c0_0 = arith.constant 0 : index
    %c0_1 = arith.constant 0 : index
    %0 = vector.load %arg2[%c0, %c0_0, %c0_1] : memref<1x3x64xf32, #tpu.memory_space<vmem>>, vector<1x3x64xf32>
    %1 = vector.shape_cast %0 : vector<1x3x64xf32> to vector<3x64xf32>
    %c0_2 = arith.constant 0 : index
    %c0_3 = arith.constant 0 : index
    %c0_4 = arith.constant 0 : index
    %2 = vector.load %arg3[%c0_2, %c0_3, %c0_4] : memref<1x8x3xf32, #tpu.memory_space<vmem>>, vector<1x8x3xf32>
    %3 = vector.shape_cast %2 : vector<1x8x3xf32> to vector<8x3xf32>
    %4 = vector.extract_strided_slice %1 {offsets = [0, 0], sizes = [1, 64], strides = [1, 1]} : vector<3x64xf32> to vector<1x64xf32>
    %5 = vector.extract_strided_slice %1 {offsets = [0, 0], sizes = [1, 64], strides = [1, 1]} : vector<3x64xf32> to vector<1x64xf32>
    %6 = arith.mulf %4, %5 : vector<1x64xf32>
    %7 = vector.extract_strided_slice %1 {offsets = [1, 0], sizes = [1, 64], strides = [1, 1]} : vector<3x64xf32> to vector<1x64xf32>
    %8 = vector.extract_strided_slice %1 {offsets = [1, 0], sizes = [1, 64], strides = [1, 1]} : vector<3x64xf32> to vector<1x64xf32>
    %9 = arith.mulf %7, %8 : vector<1x64xf32>
    %10 = arith.addf %6, %9 : vector<1x64xf32>
    %11 = vector.extract_strided_slice %1 {offsets = [2, 0], sizes = [1, 64], strides = [1, 1]} : vector<3x64xf32> to vector<1x64xf32>
    %12 = vector.extract_strided_slice %1 {offsets = [2, 0], sizes = [1, 64], strides = [1, 1]} : vector<3x64xf32> to vector<1x64xf32>
    %13 = arith.mulf %11, %12 : vector<1x64xf32>
    %14 = arith.addf %10, %13 : vector<1x64xf32>
    %15 = vector.extract_strided_slice %3 {offsets = [0, 0], sizes = [8, 1], strides = [1, 1]} : vector<8x3xf32> to vector<8x1xf32>
    %16 = vector.extract_strided_slice %3 {offsets = [0, 0], sizes = [8, 1], strides = [1, 1]} : vector<8x3xf32> to vector<8x1xf32>
    %17 = arith.mulf %15, %16 : vector<8x1xf32>
    %18 = vector.extract_strided_slice %3 {offsets = [0, 1], sizes = [8, 1], strides = [1, 1]} : vector<8x3xf32> to vector<8x1xf32>
    %19 = vector.extract_strided_slice %3 {offsets = [0, 1], sizes = [8, 1], strides = [1, 1]} : vector<8x3xf32> to vector<8x1xf32>
    %20 = arith.mulf %18, %19 : vector<8x1xf32>
    %21 = arith.addf %17, %20 : vector<8x1xf32>
    %22 = vector.extract_strided_slice %3 {offsets = [0, 2], sizes = [8, 1], strides = [1, 1]} : vector<8x3xf32> to vector<8x1xf32>
    %23 = vector.extract_strided_slice %3 {offsets = [0, 2], sizes = [8, 1], strides = [1, 1]} : vector<8x3xf32> to vector<8x1xf32>
    %24 = arith.mulf %22, %23 : vector<8x1xf32>
    %25 = arith.addf %21, %24 : vector<8x1xf32>
    %cst = arith.constant dense<0.000000e+00> : vector<8x64xf32>
    %26 = tpu.matmul %3, %1, %cst {dimension_numbers = #tpu.dot_dimension_numbers<[1], [0], [0], [1], [0, 0, 1, 1], [], []>} : vector<8x3xf32>, vector<3x64xf32>, vector<8x64xf32> -> vector<8x64xf32>
    %27 = vector.broadcast %25 : vector<8x1xf32> to vector<8x64xf32>
    %28 = vector.broadcast %14 : vector<1x64xf32> to vector<8x64xf32>
    %29 = arith.addf %27, %28 : vector<8x64xf32>
    %cst_5 = arith.constant 2.000000e+00 : f32
    %30 = vector.broadcast %cst_5 : f32 to vector<8x64xf32>
    %31 = arith.mulf %30, %26 : vector<8x64xf32>
    %32 = arith.subf %29, %31 : vector<8x64xf32>
    %33 = tpu.iota {dimensions = array<i32: 1>} : vector<8x64xi32>
    %cst_6 = arith.constant 6.400000e-01 : f32
    %34 = vector.broadcast %cst_6 : f32 to vector<8x64xf32>
    %35 = arith.cmpf olt, %32, %34 : vector<8x64xf32>
    %c64_i32 = arith.constant 64 : i32
    %36 = vector.broadcast %c64_i32 : i32 to vector<8x64xi32>
    %37 = arith.addi %33, %36 : vector<8x64xi32>
    %38 = arith.select %35, %33, %37 : vector<8x64xi1>, vector<8x64xi32>
    %cst_7 = arith.constant dense<2147483647> : vector<8xi32>
    %39 = vector.multi_reduction <minsi>, %38, %cst_7 [1] : vector<8x64xi32> to vector<8xi32>
    %40 = vector.shape_cast %39 : vector<8xi32> to vector<8x1xi32>
    %41 = vector.broadcast %40 : vector<8x1xi32> to vector<8x64xi32>
    %42 = arith.cmpi eq, %38, %41 : vector<8x64xi32>
    %c128_i32 = arith.constant 128 : i32
    %43 = vector.broadcast %c128_i32 : i32 to vector<8x64xi32>
    %44 = arith.select %42, %43, %38 : vector<8x64xi1>, vector<8x64xi32>
    %cst_8 = arith.constant dense<2147483647> : vector<8xi32>
    %45 = vector.multi_reduction <minsi>, %44, %cst_8 [1] : vector<8x64xi32> to vector<8xi32>
    %46 = vector.shape_cast %45 : vector<8xi32> to vector<8x1xi32>
    %47 = vector.broadcast %46 : vector<8x1xi32> to vector<8x64xi32>
    %48 = arith.cmpi eq, %44, %47 : vector<8x64xi32>
    %c128_i32_9 = arith.constant 128 : i32
    %49 = vector.broadcast %c128_i32_9 : i32 to vector<8x64xi32>
    %50 = arith.select %48, %49, %44 : vector<8x64xi1>, vector<8x64xi32>
    %cst_10 = arith.constant dense<2147483647> : vector<8xi32>
    %51 = vector.multi_reduction <minsi>, %50, %cst_10 [1] : vector<8x64xi32> to vector<8xi32>
    %52 = vector.shape_cast %51 : vector<8xi32> to vector<8x1xi32>
    %53 = vector.broadcast %52 : vector<8x1xi32> to vector<8x64xi32>
    %54 = arith.cmpi eq, %50, %53 : vector<8x64xi32>
    %c128_i32_11 = arith.constant 128 : i32
    %55 = vector.broadcast %c128_i32_11 : i32 to vector<8x64xi32>
    %56 = arith.select %54, %55, %50 : vector<8x64xi1>, vector<8x64xi32>
    %cst_12 = arith.constant dense<2147483647> : vector<8xi32>
    %57 = vector.multi_reduction <minsi>, %56, %cst_12 [1] : vector<8x64xi32> to vector<8xi32>
    %58 = vector.shape_cast %57 : vector<8xi32> to vector<8x1xi32>
    %59 = vector.broadcast %58 : vector<8x1xi32> to vector<8x64xi32>
    %60 = arith.cmpi eq, %56, %59 : vector<8x64xi32>
    %c128_i32_13 = arith.constant 128 : i32
    %61 = vector.broadcast %c128_i32_13 : i32 to vector<8x64xi32>
    %62 = arith.select %60, %61, %56 : vector<8x64xi1>, vector<8x64xi32>
    %cst_14 = arith.constant dense<2147483647> : vector<8xi32>
    %63 = vector.multi_reduction <minsi>, %62, %cst_14 [1] : vector<8x64xi32> to vector<8xi32>
    %64 = vector.shape_cast %63 : vector<8xi32> to vector<8x1xi32>
    %65 = vector.broadcast %64 : vector<8x1xi32> to vector<8x64xi32>
    %66 = arith.cmpi eq, %62, %65 : vector<8x64xi32>
    %c128_i32_15 = arith.constant 128 : i32
    %67 = vector.broadcast %c128_i32_15 : i32 to vector<8x64xi32>
    %68 = arith.select %66, %67, %62 : vector<8x64xi1>, vector<8x64xi32>
    %cst_16 = arith.constant dense<2147483647> : vector<8xi32>
    %69 = vector.multi_reduction <minsi>, %68, %cst_16 [1] : vector<8x64xi32> to vector<8xi32>
    %70 = vector.shape_cast %69 : vector<8xi32> to vector<8x1xi32>
    %71 = vector.broadcast %70 : vector<8x1xi32> to vector<8x64xi32>
    %72 = arith.cmpi eq, %68, %71 : vector<8x64xi32>
    %c128_i32_17 = arith.constant 128 : i32
    %73 = vector.broadcast %c128_i32_17 : i32 to vector<8x64xi32>
    %74 = arith.select %72, %73, %68 : vector<8x64xi1>, vector<8x64xi32>
    %cst_18 = arith.constant dense<2147483647> : vector<8xi32>
    %75 = vector.multi_reduction <minsi>, %74, %cst_18 [1] : vector<8x64xi32> to vector<8xi32>
    %76 = vector.shape_cast %75 : vector<8xi32> to vector<8x1xi32>
    %77 = vector.broadcast %76 : vector<8x1xi32> to vector<8x64xi32>
    %78 = arith.cmpi eq, %74, %77 : vector<8x64xi32>
    %c128_i32_19 = arith.constant 128 : i32
    %79 = vector.broadcast %c128_i32_19 : i32 to vector<8x64xi32>
    %80 = arith.select %78, %79, %74 : vector<8x64xi1>, vector<8x64xi32>
    %cst_20 = arith.constant dense<2147483647> : vector<8xi32>
    %81 = vector.multi_reduction <minsi>, %80, %cst_20 [1] : vector<8x64xi32> to vector<8xi32>
    %82 = vector.shape_cast %81 : vector<8xi32> to vector<8x1xi32>
    %83 = vector.broadcast %82 : vector<8x1xi32> to vector<8x64xi32>
    %84 = arith.cmpi eq, %80, %83 : vector<8x64xi32>
    %c128_i32_21 = arith.constant 128 : i32
    %85 = vector.broadcast %c128_i32_21 : i32 to vector<8x64xi32>
    %86 = arith.select %84, %85, %80 : vector<8x64xi1>, vector<8x64xi32>
    %cst_22 = arith.constant dense<2147483647> : vector<8xi32>
    %87 = vector.multi_reduction <minsi>, %86, %cst_22 [1] : vector<8x64xi32> to vector<8xi32>
    %88 = vector.shape_cast %87 : vector<8xi32> to vector<8x1xi32>
    %89 = vector.broadcast %88 : vector<8x1xi32> to vector<8x64xi32>
    %90 = arith.cmpi eq, %86, %89 : vector<8x64xi32>
    %c128_i32_23 = arith.constant 128 : i32
    %91 = vector.broadcast %c128_i32_23 : i32 to vector<8x64xi32>
    %92 = arith.select %90, %91, %86 : vector<8x64xi1>, vector<8x64xi32>
    %cst_24 = arith.constant dense<2147483647> : vector<8xi32>
    %93 = vector.multi_reduction <minsi>, %92, %cst_24 [1] : vector<8x64xi32> to vector<8xi32>
    %94 = vector.shape_cast %93 : vector<8xi32> to vector<8x1xi32>
    %95 = vector.broadcast %94 : vector<8x1xi32> to vector<8x64xi32>
    %96 = arith.cmpi eq, %92, %95 : vector<8x64xi32>
    %c128_i32_25 = arith.constant 128 : i32
    %97 = vector.broadcast %c128_i32_25 : i32 to vector<8x64xi32>
    %98 = arith.select %96, %97, %92 : vector<8x64xi1>, vector<8x64xi32>
    %cst_26 = arith.constant dense<2147483647> : vector<8xi32>
    %99 = vector.multi_reduction <minsi>, %98, %cst_26 [1] : vector<8x64xi32> to vector<8xi32>
    %100 = vector.shape_cast %99 : vector<8xi32> to vector<8x1xi32>
    %101 = vector.broadcast %100 : vector<8x1xi32> to vector<8x64xi32>
    %102 = arith.cmpi eq, %98, %101 : vector<8x64xi32>
    %c128_i32_27 = arith.constant 128 : i32
    %103 = vector.broadcast %c128_i32_27 : i32 to vector<8x64xi32>
    %104 = arith.select %102, %103, %98 : vector<8x64xi1>, vector<8x64xi32>
    %cst_28 = arith.constant dense<2147483647> : vector<8xi32>
    %105 = vector.multi_reduction <minsi>, %104, %cst_28 [1] : vector<8x64xi32> to vector<8xi32>
    %106 = vector.shape_cast %105 : vector<8xi32> to vector<8x1xi32>
    %107 = vector.broadcast %106 : vector<8x1xi32> to vector<8x64xi32>
    %108 = arith.cmpi eq, %104, %107 : vector<8x64xi32>
    %c128_i32_29 = arith.constant 128 : i32
    %109 = vector.broadcast %c128_i32_29 : i32 to vector<8x64xi32>
    %110 = arith.select %108, %109, %104 : vector<8x64xi1>, vector<8x64xi32>
    %cst_30 = arith.constant dense<2147483647> : vector<8xi32>
    %111 = vector.multi_reduction <minsi>, %110, %cst_30 [1] : vector<8x64xi32> to vector<8xi32>
    %112 = vector.shape_cast %111 : vector<8xi32> to vector<8x1xi32>
    %113 = vector.broadcast %112 : vector<8x1xi32> to vector<8x64xi32>
    %114 = arith.cmpi eq, %110, %113 : vector<8x64xi32>
    %c128_i32_31 = arith.constant 128 : i32
    %115 = vector.broadcast %c128_i32_31 : i32 to vector<8x64xi32>
    %116 = arith.select %114, %115, %110 : vector<8x64xi1>, vector<8x64xi32>
    %cst_32 = arith.constant dense<2147483647> : vector<8xi32>
    %117 = vector.multi_reduction <minsi>, %116, %cst_32 [1] : vector<8x64xi32> to vector<8xi32>
    %118 = vector.shape_cast %117 : vector<8xi32> to vector<8x1xi32>
    %119 = vector.broadcast %118 : vector<8x1xi32> to vector<8x64xi32>
    %120 = arith.cmpi eq, %116, %119 : vector<8x64xi32>
    %c128_i32_33 = arith.constant 128 : i32
    %121 = vector.broadcast %c128_i32_33 : i32 to vector<8x64xi32>
    %122 = arith.select %120, %121, %116 : vector<8x64xi1>, vector<8x64xi32>
    %cst_34 = arith.constant dense<2147483647> : vector<8xi32>
    %123 = vector.multi_reduction <minsi>, %122, %cst_34 [1] : vector<8x64xi32> to vector<8xi32>
    %124 = vector.shape_cast %123 : vector<8xi32> to vector<8x1xi32>
    %125 = vector.broadcast %124 : vector<8x1xi32> to vector<8x64xi32>
    %126 = arith.cmpi eq, %122, %125 : vector<8x64xi32>
    %c128_i32_35 = arith.constant 128 : i32
    %127 = vector.broadcast %c128_i32_35 : i32 to vector<8x64xi32>
    %128 = arith.select %126, %127, %122 : vector<8x64xi1>, vector<8x64xi32>
    %cst_36 = arith.constant dense<2147483647> : vector<8xi32>
    %129 = vector.multi_reduction <minsi>, %128, %cst_36 [1] : vector<8x64xi32> to vector<8xi32>
    %130 = vector.shape_cast %129 : vector<8xi32> to vector<8x1xi32>
    %131 = tpu.concatenate %40, %46, %52, %58, %64, %70, %76, %82, %88, %94, %100, %106, %112, %118, %124, %130 in 1 : vector<8x1xi32>, vector<8x1xi32>, vector<8x1xi32>, vector<8x1xi32>, vector<8x1xi32>, vector<8x1xi32>, vector<8x1xi32>, vector<8x1xi32>, vector<8x1xi32>, vector<8x1xi32>, vector<8x1xi32>, vector<8x1xi32>, vector<8x1xi32>, vector<8x1xi32>, vector<8x1xi32>, vector<8x1xi32> -> vector<8x16xi32>
    %c64_i32_37 = arith.constant 64 : i32
    %132 = vector.broadcast %c64_i32_37 : i32 to vector<8x16xi32>
    %133 = arith.cmpi slt, %131, %132 : vector<8x16xi32>
    %134 = vector.extract_strided_slice %131 {offsets = [0, 0], sizes = [8, 1], strides = [1, 1]} : vector<8x16xi32> to vector<8x1xi32>
    %c64_i32_38 = arith.constant 64 : i32
    %135 = vector.broadcast %c64_i32_38 : i32 to vector<8x1xi32>
    %136 = arith.cmpi slt, %134, %135 : vector<8x1xi32>
    %c0_i32 = arith.constant 0 : i32
    %137 = vector.broadcast %c0_i32 : i32 to vector<8x1xi32>
    %138 = arith.select %136, %134, %137 : vector<8x1xi1>, vector<8x1xi32>
    %139 = vector.shape_cast %138 : vector<8x1xi32> to vector<8x1xi32>
    %140 = vector.broadcast %139 : vector<8x1xi32> to vector<8x16xi32>
    %141 = arith.select %133, %131, %140 : vector<8x16xi1>, vector<8x16xi32>
    %c0_39 = arith.constant 0 : index
    %c0_40 = arith.constant 0 : index
    %c0_41 = arith.constant 0 : index
    %142 = vector.load %arg4[%c0_39, %c0_40, %c0_41] : memref<1x8x16xi32, #tpu.memory_space<vmem>>, vector<1x8x16xi32>
    %143 = vector.shape_cast %142 : vector<1x8x16xi32> to vector<8x16xi32>
    %144 = vector.shape_cast %141 : vector<8x16xi32> to vector<1x8x16xi32>
    tpu.vector_store %arg4[%c0_39, %c0_40, %c0_41], %144 {strides = array<i32>} : memref<1x8x16xi32, #tpu.memory_space<vmem>>, vector<1x8x16xi32>,
    return
  }
  func.func @transform_0(%arg0: i32, %arg1: i32) -> (i32, i32, i32) {
    %c0_i32 = arith.constant 0 : i32
    %c0_i32_0 = arith.constant 0 : i32
    %c0_i32_1 = arith.constant 0 : i32
    return %arg0, %c0_i32, %c0_i32_0 : i32, i32, i32
  }
  func.func @transform_1(%arg0: i32, %arg1: i32) -> (i32, i32, i32) {
    %c0_i32 = arith.constant 0 : i32
    %c0_i32_0 = arith.constant 0 : i32
    return %arg0, %arg1, %c0_i32 : i32, i32, i32
  }
  func.func @transform_2(%arg0: i32, %arg1: i32) -> (i32, i32, i32) {
    %c0_i32 = arith.constant 0 : i32
    %c0_i32_0 = arith.constant 0 : i32
    return %arg0, %arg1, %c0_i32 : i32, i32, i32
  }
}

module attributes {stable_mosaic.version = 11 : i64} {
  func.func @_fused_mlp_pool_kernel(%arg0: i32, %arg1: memref<256x7xbf16, #tpu.memory_space<vmem>>, %arg2: memref<7x128xbf16, #tpu.memory_space<vmem>>, %arg3: memref<1x128xf32, #tpu.memory_space<vmem>>, %arg4: memref<1x128xf32, #tpu.memory_space<vmem>>, %arg5: memref<128x128xbf16, #tpu.memory_space<vmem>>, %arg6: memref<1x128xf32, #tpu.memory_space<vmem>>, %arg7: memref<1x128xf32, #tpu.memory_space<vmem>>, %arg8: memref<16x128xbf16, #tpu.memory_space<vmem>>) attributes {dimension_semantics = [#tpu.dimension_semantics<parallel>], iteration_bounds = array<i64: 2>, scalar_prefetch = 0 : i64, scratch_operands = 0 : i64, tpu.core_type = #tpu.core_type<tc>, window_params = [{transform_indices = @transform_0, window_bounds = array<i64: 256, 7>}, {pipeline_mode = #tpu.pipeline_mode<synchronous>, transform_indices = @transform_1, window_bounds = array<i64: 7, 128>}, {pipeline_mode = #tpu.pipeline_mode<synchronous>, transform_indices = @transform_2, window_bounds = array<i64: 1, 128>}, {pipeline_mode = #tpu.pipeline_mode<synchronous>, transform_indices = @transform_3, window_bounds = array<i64: 1, 128>}, {pipeline_mode = #tpu.pipeline_mode<synchronous>, transform_indices = @transform_4, window_bounds = array<i64: 128, 128>}, {pipeline_mode = #tpu.pipeline_mode<synchronous>, transform_indices = @transform_5, window_bounds = array<i64: 1, 128>}, {pipeline_mode = #tpu.pipeline_mode<synchronous>, transform_indices = @transform_6, window_bounds = array<i64: 1, 128>}, {transform_indices = @transform_7, window_bounds = array<i64: 16, 128>}]} {
    %c0 = arith.constant 0 : index
    %c0_0 = arith.constant 0 : index
    %0 = vector.load %arg1[%c0, %c0_0] : memref<256x7xbf16, #tpu.memory_space<vmem>>, vector<256x7xbf16>
    %c0_1 = arith.constant 0 : index
    %c0_2 = arith.constant 0 : index
    %1 = vector.load %arg2[%c0_1, %c0_2] : memref<7x128xbf16, #tpu.memory_space<vmem>>, vector<7x128xbf16>
    %c0_3 = arith.constant 0 : index
    %c0_4 = arith.constant 0 : index
    %2 = vector.load %arg3[%c0_3, %c0_4] : memref<1x128xf32, #tpu.memory_space<vmem>>, vector<1x128xf32>
    %c0_5 = arith.constant 0 : index
    %c0_6 = arith.constant 0 : index
    %3 = vector.load %arg4[%c0_5, %c0_6] : memref<1x128xf32, #tpu.memory_space<vmem>>, vector<1x128xf32>
    %cst = arith.constant dense<0.000000e+00> : vector<256x128xf32>
    %4 = tpu.matmul %0, %1, %cst {dimension_numbers = #tpu.dot_dimension_numbers<[1], [0], [0], [1], [0, 0, 1, 1], [], []>} : vector<256x7xbf16>, vector<7x128xbf16>, vector<256x128xf32> -> vector<256x128xf32>
    %5 = vector.broadcast %2 : vector<1x128xf32> to vector<256x128xf32>
    %6 = arith.mulf %4, %5 : vector<256x128xf32>
    %7 = vector.broadcast %3 : vector<1x128xf32> to vector<256x128xf32>
    %8 = arith.addf %6, %7 : vector<256x128xf32>
    %cst_7 = arith.constant 0.000000e+00 : f32
    %9 = vector.broadcast %cst_7 : f32 to vector<256x128xf32>
    %10 = arith.maximumf %8, %9 : vector<256x128xf32>
    %11 = arith.truncf %10 : vector<256x128xf32> to vector<256x128xbf16>
    %c0_8 = arith.constant 0 : index
    %c0_9 = arith.constant 0 : index
    %12 = vector.load %arg5[%c0_8, %c0_9] : memref<128x128xbf16, #tpu.memory_space<vmem>>, vector<128x128xbf16>
    %c0_10 = arith.constant 0 : index
    %c0_11 = arith.constant 0 : index
    %13 = vector.load %arg6[%c0_10, %c0_11] : memref<1x128xf32, #tpu.memory_space<vmem>>, vector<1x128xf32>
    %c0_12 = arith.constant 0 : index
    %c0_13 = arith.constant 0 : index
    %14 = vector.load %arg7[%c0_12, %c0_13] : memref<1x128xf32, #tpu.memory_space<vmem>>, vector<1x128xf32>
    %cst_14 = arith.constant dense<0.000000e+00> : vector<256x128xf32>
    %15 = tpu.matmul %11, %12, %cst_14 {dimension_numbers = #tpu.dot_dimension_numbers<[1], [0], [0], [1], [0, 0, 1, 1], [], []>} : vector<256x128xbf16>, vector<128x128xbf16>, vector<256x128xf32> -> vector<256x128xf32>
    %16 = vector.broadcast %13 : vector<1x128xf32> to vector<256x128xf32>
    %17 = arith.mulf %15, %16 : vector<256x128xf32>
    %18 = vector.broadcast %14 : vector<1x128xf32> to vector<256x128xf32>
    %19 = arith.addf %17, %18 : vector<256x128xf32>
    %cst_15 = arith.constant 0.000000e+00 : f32
    %20 = vector.broadcast %cst_15 : f32 to vector<256x128xf32>
    %21 = arith.maximumf %19, %20 : vector<256x128xf32>
    %22 = vector.shape_cast %21 : vector<256x128xf32> to vector<16x16x128xf32>
    %cst_16 = arith.constant dense<0xFF800000> : vector<16x128xf32>
    %23 = vector.multi_reduction <maximumf>, %22, %cst_16 [1] : vector<16x16x128xf32> to vector<16x128xf32>
    %24 = arith.truncf %23 : vector<16x128xf32> to vector<16x128xbf16>
    %c0_17 = arith.constant 0 : index
    %c0_18 = arith.constant 0 : index
    %25 = vector.load %arg8[%c0_17, %c0_18] : memref<16x128xbf16, #tpu.memory_space<vmem>>, vector<16x128xbf16>
    tpu.vector_store %arg8[%c0_17, %c0_18], %24 {strides = array<i32>} : memref<16x128xbf16, #tpu.memory_space<vmem>>, vector<16x128xbf16>,
    return
  }
  func.func @transform_0(%arg0: i32) -> (i32, i32) {
    %c0_i32 = arith.constant 0 : i32
    %c0_i32_0 = arith.constant 0 : i32
    return %arg0, %c0_i32 : i32, i32
  }
  func.func @transform_1(%arg0: i32) -> (i32, i32) {
    %c0_i32 = arith.constant 0 : i32
    %c0_i32_0 = arith.constant 0 : i32
    %c0_i32_1 = arith.constant 0 : i32
    return %c0_i32, %c0_i32_0 : i32, i32
  }
  func.func @transform_2(%arg0: i32) -> (i32, i32) {
    %c0_i32 = arith.constant 0 : i32
    %c0_i32_0 = arith.constant 0 : i32
    %c0_i32_1 = arith.constant 0 : i32
    return %c0_i32, %c0_i32_0 : i32, i32
  }
  func.func @transform_3(%arg0: i32) -> (i32, i32) {
    %c0_i32 = arith.constant 0 : i32
    %c0_i32_0 = arith.constant 0 : i32
    %c0_i32_1 = arith.constant 0 : i32
    return %c0_i32, %c0_i32_0 : i32, i32
  }
  func.func @transform_4(%arg0: i32) -> (i32, i32) {
    %c0_i32 = arith.constant 0 : i32
    %c0_i32_0 = arith.constant 0 : i32
    %c0_i32_1 = arith.constant 0 : i32
    return %c0_i32, %c0_i32_0 : i32, i32
  }
  func.func @transform_5(%arg0: i32) -> (i32, i32) {
    %c0_i32 = arith.constant 0 : i32
    %c0_i32_0 = arith.constant 0 : i32
    %c0_i32_1 = arith.constant 0 : i32
    return %c0_i32, %c0_i32_0 : i32, i32
  }
  func.func @transform_6(%arg0: i32) -> (i32, i32) {
    %c0_i32 = arith.constant 0 : i32
    %c0_i32_0 = arith.constant 0 : i32
    %c0_i32_1 = arith.constant 0 : i32
    return %c0_i32, %c0_i32_0 : i32, i32
  }
  func.func @transform_7(%arg0: i32) -> (i32, i32) {
    %c0_i32 = arith.constant 0 : i32
    %c0_i32_0 = arith.constant 0 : i32
    return %arg0, %c0_i32 : i32, i32
  }
}

module attributes {stable_mosaic.version = 11 : i64} {
  func.func @_fused_head_kernel(%arg0: i32, %arg1: memref<16x256xbf16, #tpu.memory_space<vmem>>, %arg2: memref<256x128xbf16, #tpu.memory_space<vmem>>, %arg3: memref<1x128xf32, #tpu.memory_space<vmem>>, %arg4: memref<1x128xf32, #tpu.memory_space<vmem>>, %arg5: memref<128x128xbf16, #tpu.memory_space<vmem>>, %arg6: memref<1x128xf32, #tpu.memory_space<vmem>>, %arg7: memref<1x128xf32, #tpu.memory_space<vmem>>, %arg8: memref<128x128xbf16, #tpu.memory_space<vmem>>, %arg9: memref<1x128xf32, #tpu.memory_space<vmem>>, %arg10: memref<16x128xf32, #tpu.memory_space<vmem>>, %arg11: memref<16x128xf32, #tpu.memory_space<vmem>>) attributes {dimension_semantics = [#tpu.dimension_semantics<parallel>], iteration_bounds = array<i64: 2>, scalar_prefetch = 0 : i64, scratch_operands = 0 : i64, tpu.core_type = #tpu.core_type<tc>, window_params = [{transform_indices = @transform_0, window_bounds = array<i64: 16, 256>}, {pipeline_mode = #tpu.pipeline_mode<synchronous>, transform_indices = @transform_1, window_bounds = array<i64: 256, 128>}, {pipeline_mode = #tpu.pipeline_mode<synchronous>, transform_indices = @transform_2, window_bounds = array<i64: 1, 128>}, {pipeline_mode = #tpu.pipeline_mode<synchronous>, transform_indices = @transform_3, window_bounds = array<i64: 1, 128>}, {pipeline_mode = #tpu.pipeline_mode<synchronous>, transform_indices = @transform_4, window_bounds = array<i64: 128, 128>}, {pipeline_mode = #tpu.pipeline_mode<synchronous>, transform_indices = @transform_5, window_bounds = array<i64: 1, 128>}, {pipeline_mode = #tpu.pipeline_mode<synchronous>, transform_indices = @transform_6, window_bounds = array<i64: 1, 128>}, {pipeline_mode = #tpu.pipeline_mode<synchronous>, transform_indices = @transform_7, window_bounds = array<i64: 128, 128>}, {pipeline_mode = #tpu.pipeline_mode<synchronous>, transform_indices = @transform_8, window_bounds = array<i64: 1, 128>}, {transform_indices = @transform_9, window_bounds = array<i64: 16, 128>}, {transform_indices = @transform_10, window_bounds = array<i64: 16, 128>}]} {
    %c0 = arith.constant 0 : index
    %c0_0 = arith.constant 0 : index
    %0 = vector.load %arg1[%c0, %c0_0] : memref<16x256xbf16, #tpu.memory_space<vmem>>, vector<16x256xbf16>
    %c0_1 = arith.constant 0 : index
    %c0_2 = arith.constant 0 : index
    %1 = vector.load %arg2[%c0_1, %c0_2] : memref<256x128xbf16, #tpu.memory_space<vmem>>, vector<256x128xbf16>
    %c0_3 = arith.constant 0 : index
    %c0_4 = arith.constant 0 : index
    %2 = vector.load %arg3[%c0_3, %c0_4] : memref<1x128xf32, #tpu.memory_space<vmem>>, vector<1x128xf32>
    %c0_5 = arith.constant 0 : index
    %c0_6 = arith.constant 0 : index
    %3 = vector.load %arg4[%c0_5, %c0_6] : memref<1x128xf32, #tpu.memory_space<vmem>>, vector<1x128xf32>
    %cst = arith.constant dense<0.000000e+00> : vector<16x128xf32>
    %4 = tpu.matmul %0, %1, %cst {dimension_numbers = #tpu.dot_dimension_numbers<[1], [0], [0], [1], [0, 0, 1, 1], [], []>} : vector<16x256xbf16>, vector<256x128xbf16>, vector<16x128xf32> -> vector<16x128xf32>
    %5 = vector.broadcast %2 : vector<1x128xf32> to vector<16x128xf32>
    %6 = arith.mulf %4, %5 : vector<16x128xf32>
    %7 = vector.broadcast %3 : vector<1x128xf32> to vector<16x128xf32>
    %8 = arith.addf %6, %7 : vector<16x128xf32>
    %cst_7 = arith.constant 0.000000e+00 : f32
    %9 = vector.broadcast %cst_7 : f32 to vector<16x128xf32>
    %10 = arith.maximumf %8, %9 : vector<16x128xf32>
    %11 = arith.truncf %10 : vector<16x128xf32> to vector<16x128xbf16>
    %c0_8 = arith.constant 0 : index
    %c0_9 = arith.constant 0 : index
    %12 = vector.load %arg10[%c0_8, %c0_9] : memref<16x128xf32, #tpu.memory_space<vmem>>, vector<16x128xf32>
    tpu.vector_store %arg10[%c0_8, %c0_9], %10 {strides = array<i32>} : memref<16x128xf32, #tpu.memory_space<vmem>>, vector<16x128xf32>,
    %c0_10 = arith.constant 0 : index
    %c0_11 = arith.constant 0 : index
    %13 = vector.load %arg5[%c0_10, %c0_11] : memref<128x128xbf16, #tpu.memory_space<vmem>>, vector<128x128xbf16>
    %c0_12 = arith.constant 0 : index
    %c0_13 = arith.constant 0 : index
    %14 = vector.load %arg6[%c0_12, %c0_13] : memref<1x128xf32, #tpu.memory_space<vmem>>, vector<1x128xf32>
    %c0_14 = arith.constant 0 : index
    %c0_15 = arith.constant 0 : index
    %15 = vector.load %arg7[%c0_14, %c0_15] : memref<1x128xf32, #tpu.memory_space<vmem>>, vector<1x128xf32>
    %cst_16 = arith.constant dense<0.000000e+00> : vector<16x128xf32>
    %16 = tpu.matmul %11, %13, %cst_16 {dimension_numbers = #tpu.dot_dimension_numbers<[1], [0], [0], [1], [0, 0, 1, 1], [], []>} : vector<16x128xbf16>, vector<128x128xbf16>, vector<16x128xf32> -> vector<16x128xf32>
    %17 = vector.broadcast %14 : vector<1x128xf32> to vector<16x128xf32>
    %18 = arith.mulf %16, %17 : vector<16x128xf32>
    %19 = vector.broadcast %15 : vector<1x128xf32> to vector<16x128xf32>
    %20 = arith.addf %18, %19 : vector<16x128xf32>
    %cst_17 = arith.constant 0.000000e+00 : f32
    %21 = vector.broadcast %cst_17 : f32 to vector<16x128xf32>
    %22 = arith.maximumf %20, %21 : vector<16x128xf32>
    %23 = arith.truncf %22 : vector<16x128xf32> to vector<16x128xbf16>
    %c0_18 = arith.constant 0 : index
    %c0_19 = arith.constant 0 : index
    %24 = vector.load %arg8[%c0_18, %c0_19] : memref<128x128xbf16, #tpu.memory_space<vmem>>, vector<128x128xbf16>
    %c0_20 = arith.constant 0 : index
    %c0_21 = arith.constant 0 : index
    %25 = vector.load %arg9[%c0_20, %c0_21] : memref<1x128xf32, #tpu.memory_space<vmem>>, vector<1x128xf32>
    %cst_22 = arith.constant dense<0.000000e+00> : vector<16x128xf32>
    %26 = tpu.matmul %23, %24, %cst_22 {dimension_numbers = #tpu.dot_dimension_numbers<[1], [0], [0], [1], [0, 0, 1, 1], [], []>} : vector<16x128xbf16>, vector<128x128xbf16>, vector<16x128xf32> -> vector<16x128xf32>
    %27 = vector.broadcast %25 : vector<1x128xf32> to vector<16x128xf32>
    %28 = arith.addf %26, %27 : vector<16x128xf32>
    %c0_23 = arith.constant 0 : index
    %c0_24 = arith.constant 0 : index
    %29 = vector.load %arg11[%c0_23, %c0_24] : memref<16x128xf32, #tpu.memory_space<vmem>>, vector<16x128xf32>
    tpu.vector_store %arg11[%c0_23, %c0_24], %28 {strides = array<i32>} : memref<16x128xf32, #tpu.memory_space<vmem>>, vector<16x128xf32>,
    return
  }
  func.func @transform_0(%arg0: i32) -> (i32, i32) {
    %c0_i32 = arith.constant 0 : i32
    %c0_i32_0 = arith.constant 0 : i32
    return %arg0, %c0_i32 : i32, i32
  }
  func.func @transform_1(%arg0: i32) -> (i32, i32) {
    %c0_i32 = arith.constant 0 : i32
    %c0_i32_0 = arith.constant 0 : i32
    %c0_i32_1 = arith.constant 0 : i32
    return %c0_i32, %c0_i32_0 : i32, i32
  }
  func.func @transform_2(%arg0: i32) -> (i32, i32) {
    %c0_i32 = arith.constant 0 : i32
    %c0_i32_0 = arith.constant 0 : i32
    %c0_i32_1 = arith.constant 0 : i32
    return %c0_i32, %c0_i32_0 : i32, i32
  }
  func.func @transform_3(%arg0: i32) -> (i32, i32) {
    %c0_i32 = arith.constant 0 : i32
    %c0_i32_0 = arith.constant 0 : i32
    %c0_i32_1 = arith.constant 0 : i32
    return %c0_i32, %c0_i32_0 : i32, i32
  }
  func.func @transform_4(%arg0: i32) -> (i32, i32) {
    %c0_i32 = arith.constant 0 : i32
    %c0_i32_0 = arith.constant 0 : i32
    %c0_i32_1 = arith.constant 0 : i32
    return %c0_i32, %c0_i32_0 : i32, i32
  }
  func.func @transform_5(%arg0: i32) -> (i32, i32) {
    %c0_i32 = arith.constant 0 : i32
    %c0_i32_0 = arith.constant 0 : i32
    %c0_i32_1 = arith.constant 0 : i32
    return %c0_i32, %c0_i32_0 : i32, i32
  }
  func.func @transform_6(%arg0: i32) -> (i32, i32) {
    %c0_i32 = arith.constant 0 : i32
    %c0_i32_0 = arith.constant 0 : i32
    %c0_i32_1 = arith.constant 0 : i32
    return %c0_i32, %c0_i32_0 : i32, i32
  }
  func.func @transform_7(%arg0: i32) -> (i32, i32) {
    %c0_i32 = arith.constant 0 : i32
    %c0_i32_0 = arith.constant 0 : i32
    %c0_i32_1 = arith.constant 0 : i32
    return %c0_i32, %c0_i32_0 : i32, i32
  }
  func.func @transform_8(%arg0: i32) -> (i32, i32) {
    %c0_i32 = arith.constant 0 : i32
    %c0_i32_0 = arith.constant 0 : i32
    %c0_i32_1 = arith.constant 0 : i32
    return %c0_i32, %c0_i32_0 : i32, i32
  }
  func.func @transform_9(%arg0: i32) -> (i32, i32) {
    %c0_i32 = arith.constant 0 : i32
    %c0_i32_0 = arith.constant 0 : i32
    return %arg0, %c0_i32 : i32, i32
  }
  func.func @transform_10(%arg0: i32) -> (i32, i32) {
    %c0_i32 = arith.constant 0 : i32
    %c0_i32_0 = arith.constant 0 : i32
    return %arg0, %c0_i32 : i32, i32
  }
}

</mosaic_0001>

<llo_original>
// kernel: sa_module_forward.7
$region0: #{sa_module_forward.7}
  #allocation0 [shape = 'u32[]', space=smem, size = 0x4, offset = 0x4, fixed_abs, tag = 'smem constant byte address 0x4 - core index']
  #allocation1 [shape = 'u32[144,128]{1,0:T(1,128)}', space=vmem, size = 0x12000, scoped, tag = 'internal scratch']
  %s0 = inlined_call_operand.vmem [shape: f32[2,3,64], index: 0, kind: input, shape index: {}]
  %s1 = inlined_call_operand.vmem [shape: f32[2,16,3], index: 1, kind: input, shape index: {}]
  %s2 = inlined_call_operand.vmem [shape: s32[2,16,8], index: 2, kind: output, shape index: {}]
  %s3 = sld [smem:[#allocation0]]
  $region41: #{sa_module_forward.7} parent=0
    _
  %s5 = ssub.s32 1, %s3
  %s6 = scalar_select 0, %s5, %s3
  loop: start=0, step=1, limit=6
  $region2: #{sa_module_forward.7} parent=0 // loop_pre_header
    _
  $region3: #{sa_module_forward.7} parent=0 // loop_header
    %s8 = sphi 0, %s12
    %p9 = scmp.ge.s32.totalorder %s8, 6
    %s15 = sphi 0, %s27
    %s16 = sphi 0, %s23
    %s17 = sphi 0, %s15
    %s18 = sphi 0, %s16
    %s19 = sphi 0, %s17
    %s20 = sphi 0, %s18
    %s30 = sphi 0, %s32
    %s33 = sphi 0, %s30
    %s34 = sphi 0, %s33
    %s50 = sphi 0, %s34
    %s58 = sphi 0, %s60
    %s61 = sphi 0, %s58
    %s62 = sphi 0, %s61
    %s78 = sphi 0, %s62
    %s86 = sphi 0, %s88
    %s89 = sphi 0, %s86
    %s90 = sphi 0, %s89
    %s106 = sphi 0, %s90
  $region4: #{sa_module_forward.7} parent=0 // loop_header_branch
    %11 = sbr.rel (%p9) target = $region8
  $region5: #{sa_module_forward.7} parent=0 // loop_body
    %s13 = ssub.s32 %s8, 1
    %s14 = ssub.s32 %s8, 2
    %s21 = sadd.s32 1, %s16
    %p22 = scmp.ge.s32.totalorder %s21, 2
    %s23 = scalar_select %p22, 0, %s21
    %s24 = sadd.s32 1, %s15
    %s25 = scalar_select %p22, %s24, %s15
    %p26 = scmp.ge.s32.totalorder %s25, 2
    %s27 = scalar_select %p26, 0, %s25
    %s28 = ssub.s32 %s15, %s27
    %p29 = scmp.eq.s32.totalorder %s28, 0
    %s31 = sadd.s32 %s30, 1
    %s32 = scalar_select %p29, %s30, %s31
    %p35 = pneg %p29
    %p36 = scmp.eq.s32.totalorder %s8, 3
    %p37 = por %p35, %p36
    %p38 = scmp.ne.s32.totalorder %s30, %s33
    %p39 = scmp.eq.s32.totalorder %s8, 0
    %p40 = por %p38, %p39
    %p41 = scmp.ne.s32.totalorder %s30, %s33
    %p42 = scmp.eq.s32.totalorder %s13, 3
    %p43 = por %p41, %p42
    %p44 = scmp.ne.s32.totalorder %s33, %s34
    %p45 = scmp.eq.s32.totalorder %s13, 0
    %p46 = por %p44, %p45
    %p47 = scmp.ne.s32.totalorder %s33, %s34
    %p48 = scmp.eq.s32.totalorder %s14, 3
    %p49 = por %p47, %p48
    %p51 = scmp.ne.s32.totalorder %s34, %s50
    %p52 = scmp.eq.s32.totalorder %s14, 0
    %p53 = por %p51, %p52
    %s54 = ssub.s32 %s15, %s27
    %s55 = ssub.s32 %s16, %s23
    %s56 = sor.u32 %s54, %s55
    %p57 = scmp.eq.s32.totalorder %s56, 0
    %s59 = sadd.s32 %s58, 1
    %s60 = scalar_select %p57, %s58, %s59
    %p63 = pneg %p57
    %p64 = scmp.eq.s32.totalorder %s8, 3
    %p65 = por %p63, %p64
    %p66 = scmp.ne.s32.totalorder %s58, %s61
    %p67 = scmp.eq.s32.totalorder %s8, 0
    %p68 = por %p66, %p67
    %p69 = scmp.ne.s32.totalorder %s58, %s61
    %p70 = scmp.eq.s32.totalorder %s13, 3
    %p71 = por %p69, %p70
    %p72 = scmp.ne.s32.totalorder %s61, %s62
    %p73 = scmp.eq.s32.totalorder %s13, 0
    %p74 = por %p72, %p73
    %p75 = scmp.ne.s32.totalorder %s61, %s62
    %p76 = scmp.eq.s32.totalorder %s14, 3
    %p77 = por %p75, %p76
    %p79 = scmp.ne.s32.totalorder %s62, %s78
    %p80 = scmp.eq.s32.totalorder %s14, 0
    %p81 = por %p79, %p80
    %s82 = ssub.s32 %s15, %s27
    %s83 = ssub.s32 %s16, %s23
    %s84 = sor.u32 %s82, %s83
    %p85 = scmp.eq.s32.totalorder %s84, 0
    %s87 = sadd.s32 %s86, 1
    %s88 = scalar_select %p85, %s86, %s87
    %p91 = pneg %p85
    %p92 = scmp.eq.s32.totalorder %s8, 3
    %p93 = por %p91, %p92
    %p94 = scmp.ne.s32.totalorder %s86, %s89
    %p95 = scmp.eq.s32.totalorder %s8, 0
    %p96 = por %p94, %p95
    %p97 = scmp.ne.s32.totalorder %s86, %s89
    %p98 = scmp.eq.s32.totalorder %s13, 3
    %p99 = por %p97, %p98
    %p100 = scmp.ne.s32.totalorder %s89, %s90
    %p101 = scmp.eq.s32.totalorder %s13, 0
    %p102 = por %p100, %p101
    %p103 = scmp.ne.s32.totalorder %s89, %s90
    %p104 = scmp.eq.s32.totalorder %s14, 3
    %p105 = por %p103, %p104
    %p107 = scmp.ne.s32.totalorder %s90, %s106
    %p108 = scmp.eq.s32.totalorder %s14, 0
    %p109 = por %p107, %p108
    %p110 = scmp.le.s32.totalorder 1, %s8
    %p111 = scmp.lt.s32.totalorder %s8, 5
    %p112 = pnand %p110, %p111
    %p113 = pneg %p112
    // Predicated region
    $region9: #{sa_module_forward.7} parent=5 // pred_check
      _
    $region10: #{sa_module_forward.7} parent=5 // pred_check_branch
      %115 = sbr.rel (%p112) target = $region12
    $region11: #{sa_module_forward.7} parent=5 // pred_region
      %s116 = ssub.s32 %s8, 1
    $region12: #{sa_module_forward.7} parent=5 // pred_fallthru
      _
    %p117 = scmp.lt.s32.totalorder %s8, 4
    // Predicated region
    $region13: #{sa_module_forward.7} parent=5 // pred_check
      %p118 = pneg %p117
    $region14: #{sa_module_forward.7} parent=5 // pred_check_branch
      %120 = sbr.rel (%p118) target = $region16
    $region15: #{sa_module_forward.7} parent=5 // pred_region
      // Predicated region
      $region17: #{sa_module_forward.7} parent=15 // pred_check
        %p121 = pneg %p40
      $region18: #{sa_module_forward.7} parent=15 // pred_check_branch
        %123 = sbr.rel (%p121) target = $region20
      $region19: #{sa_module_forward.7} parent=15 // pred_region
        %p124 = scmp.lt.s32.totalorder %s15, 1
        %s125 = scalar_select %p124, %s15, 1
        %s126 = smul.addr %s125, 4
        %s127 = scalar_lea.vmem %s0, %s126
      $region20: #{sa_module_forward.7} parent=15 // pred_fallthru
        _
      // Predicated region
      $region21: #{sa_module_forward.7} parent=15 // pred_check
        %p128 = pneg %p68
      $region22: #{sa_module_forward.7} parent=15 // pred_check_branch
        %130 = sbr.rel (%p128) target = $region24
      $region23: #{sa_module_forward.7} parent=15 // pred_region
        %p131 = scmp.lt.s32.totalorder %s15, 1
        %s132 = scalar_select %p131, %s15, 1
        %p133 = scmp.lt.s32.totalorder %s16, 1
        %s134 = scalar_select %p133, %s16, 1
        %s135 = smul.addr %s132, 2
        %s136 = sadd.s32 %s134, %s135
        %s137 = smul.addr %s136, 8
        %s138 = scalar_lea.vmem %s1, %s137
      $region24: #{sa_module_forward.7} parent=15 // pred_fallthru
        _
    $region16: #{sa_module_forward.7} parent=5 // pred_fallthru
      _
    %p139 = scmp.le.s32.totalorder 1, %s8
    %p140 = scmp.lt.s32.totalorder %s8, 5
    %p141 = pnand %p139, %p140
    %p142 = pneg %p141
    // Predicated region
    $region25: #{sa_module_forward.7} parent=5 // pred_check
      _
    $region26: #{sa_module_forward.7} parent=5 // pred_check_branch
      %144 = sbr.rel (%p141) target = $region28
    $region27: #{sa_module_forward.7} parent=5 // pred_region
      %s145 = ssub.s32 %s8, 1
      %p146 = scmp.lt.s32.totalorder %s17, 1
      %s147 = scalar_select %p146, %s17, 1
      %s148 = smul.addr %s147, 4
      %s149 = scalar_lea.vmem %s0, %s148
      %p150 = pneg %p46
      %p151 = pneg %p43
      %p152 = scmp.lt.s32.totalorder %s17, 1
      %s153 = scalar_select %p152, %s17, 1
      %p154 = scmp.lt.s32.totalorder %s18, 1
      %s155 = scalar_select %p154, %s18, 1
      %s156 = smul.addr %s153, 2
      %s157 = sadd.s32 %s155, %s156
      %s158 = smul.addr %s157, 8
      %s159 = scalar_lea.vmem %s1, %s158
      %p160 = pneg %p74
      %p161 = pneg %p71
      %p162 = pneg %p102
      %p163 = pneg %p99
      %p164 = scmp.lt.s32.totalorder %s17, 1
      %s165 = scalar_select %p164, %s17, 1
      %p166 = scmp.lt.s32.totalorder %s18, 1
      %s167 = scalar_select %p166, %s18, 1
      %s168 = smul.addr %s165, 2
      %s169 = sadd.s32 %s167, %s168
      %s170 = smul.addr %s169, 8
      %s171 = scalar_lea.vmem %s2, %s170
      %p172 = scmp.lt.s32.totalorder %s17, 1
      %s173 = scalar_select %p172, %s17, 1
      %s174 = smul.addr %s173, 4
      %s175 = scalar_lea.vmem %s0, %s174
      %p176 = scmp.lt.s32.totalorder %s17, 1
      %s177 = scalar_select %p176, %s17, 1
      %p178 = scmp.lt.s32.totalorder %s18, 1
      %s179 = scalar_select %p178, %s18, 1
      %s180 = smul.addr %s177, 2
      %s181 = sadd.s32 %s179, %s180
      %s182 = smul.addr %s181, 8
      %s183 = scalar_lea.vmem %s1, %s182
      %p184 = scmp.lt.s32.totalorder %s17, 1
      %s185 = scalar_select %p184, %s17, 1
      %p186 = scmp.lt.s32.totalorder %s18, 1
      %s187 = scalar_select %p186, %s18, 1
      %s188 = smul.addr %s185, 2
      %s189 = sadd.s32 %s187, %s188
      %s190 = smul.addr %s189, 8
      %s191 = scalar_lea.vmem %s2, %s190
      %v192 = vld [vmem:[%s175] sm:$0x7]
      %v193 = vld [vmem:[%s183] sm:$0xff]
      %v194 = vmul.f32 %v192, %v192
      %v196 = vrot.slane %v194, 1
      %v198 = vadd.f32 %v194, %v196
      %v199 = vrot.slane %v194, 2
      %v201 = vadd.f32 %v198, %v199
      %v202 = vmul.f32 %v193, %v193
      %204 = vrot.lane.b32.xlu0 %v202, 127
      %v205 = vpop.permute.xlu0 %204
      %v207 = vadd.f32 %v202, %v205
      %208 = vrot.lane.b32.xlu0 %v202, 126
      %v209 = vpop.permute.xlu0 %208
      %v211 = vadd.f32 %v207, %v209
      %vm212 = vcmask 23552
      %v214 = vsel %vm212, %v193, 0
      %vm216 = vcmask 1042432
      %v218 = vsel %vm216, %v192, 0
      %220 = vmatprep.subr.mxu0 0.0
      %221 = vmatpush1.msra.mxu0 %v218
      %222 = vmatprep.subr.mxu0 0.0
      %223 = vmatpush1.msra.mxu0 0.0
      %224 = vmatprep.subr.mxu0 0.0
      %225 = vmatpush1.msra.mxu0 0.0
      %226 = vmatprep.subr.mxu0 0.0
      %227 = vmatpush1.msra.mxu0 0.0
      %228 = vmatprep.subr.mxu0 0.0
      %229 = vmatpush1.msra.mxu0 0.0
      %230 = vmatprep.subr.mxu0 0.0
      %231 = vmatpush1.msra.mxu0 0.0
      %232 = vmatprep.subr.mxu0 0.0
      %233 = vmatpush1.msra.mxu0 0.0
      %234 = vmatprep.subr.mxu0 0.0
      %235 = vmatpush1.msra.mxu0 0.0
      %236 = vmatprep.subr.mxu0 0.0
      %237 = vmatpush1.msra.mxu0 0.0
      %238 = vmatprep.subr.mxu0 0.0
      %239 = vmatpush1.msra.mxu0 0.0
      %240 = vmatprep.subr.mxu0 0.0
      %241 = vmatpush1.msra.mxu0 0.0
      %242 = vmatprep.subr.mxu0 0.0
      %243 = vmatpush1.msra.mxu0 0.0
      %244 = vmatprep.subr.mxu0 0.0
      %245 = vmatpush1.msra.mxu0 0.0
      %246 = vmatprep.subr.mxu0 0.0
      %247 = vmatpush1.msra.mxu0 0.0
      %248 = vmatprep.subr.mxu0 0.0
      %249 = vmatpush1.msra.mxu0 0.0
      %250 = vmatprep.subr.mxu0 0.0
      %251 = vmatpush1.msra.mxu0 0.0
      %252 = vmatprep.subr.mxu0 0.0
      %253 = vmatpush1.msra.mxu0 0.0
      %254 = vmatprep.subr.mxu0 0.0
      %255 = vmatpush1.msra.mxu0 0.0
      %256 = vmatprep.subr.mxu0 0.0
      %257 = vmatpush1.msra.mxu0 0.0
      %258 = vmatprep.subr.mxu0 0.0
      %259 = vmatpush1.msra.mxu0 0.0
      %260 = vmatprep.subr.mxu0 0.0
      %261 = vmatpush1.msra.mxu0 0.0
      %262 = vmatprep.subr.mxu0 0.0
      %263 = vmatpush1.msra.mxu0 0.0
      %264 = vmatprep.subr.mxu0 0.0
      %265 = vmatpush1.msra.mxu0 0.0
      %266 = vmatprep.subr.mxu0 0.0
      %267 = vmatpush1.msra.mxu0 0.0
      %268 = vmatprep.subr.mxu0 0.0
      %269 = vmatpush1.msra.mxu0 0.0
      %270 = vmatprep.subr.mxu0 0.0
      %271 = vmatpush1.msra.mxu0 0.0
      %272 = vmatprep.subr.mxu0 0.0
      %273 = vmatpush1.msra.mxu0 0.0
      %274 = vmatprep.subr.mxu0 0.0
      %275 = vmatpush1.msra.mxu0 0.0
      %276 = vmatprep.subr.mxu0 0.0
      %277 = vmatpush1.msra.mxu0 0.0
      %278 = vmatprep.subr.mxu0 0.0
      %279 = vmatpush1.msra.mxu0 0.0
      %280 = vmatprep.subr.mxu0 0.0
      %281 = vmatpush1.msra.mxu0 0.0
      %282 = vmatprep.subr.mxu0 0.0
      %283 = vmatpush1.msra.mxu0 0.0
      %284 = vmatprep.mubr.f32.mxu0 0.0
      %285 = vmatmul.mubr.f32.gmra.mrb[0].mxu0 %v214
      %v286 = vpop.f32.mrb[0].mxu0
      %v287 = vadd.f32 0.0, %v286
      %v288 = vpop.f32.mrb[0].mxu0
      %289 = vdwg.mxu0
      %291 = vset.pattern.permute.xlu0 0
      %292 = vperm.xlu0 %291, %v211
      %v293 = vpop.permute.xlu0 %292
      %v295 = vlaneseq
      %v296 = vshrl.u32 %v295, 7
      %v297 = vsub.s32 0, %v296
      %v298 = vrot.slane %v201, %v297
      %v299 = vadd.f32 %v293, %v298
      %v300 = vmul.f32 %v287, 2.0
      %v301 = vsub.f32 %v299, %v300
      %v302 = vlaneseq
      %v303 = vand.u32 %v302, 127
      %vm304 = vcmp.lt.f32.partialorder %v301, 0.16
      %v305 = vadd.s32 %v303, 64
      %v306 = vsel %vm304, %v303, %v305
      %vm307 = vcmask 523264
      %v308 = vsel %vm307, %v306, 2147483647
      %v309 = vand.u32 %v308, 65535
      %v310 = vshra.s32 %v308, 16
      %v311 = vcvt.s32.f32 %v309
      %v312 = vcvt.s32.f32 %v310
      %313 = vmin.xlane.f32.xlu0 %v312
      %v314 = vpop.xlane.xlu0 %313
      %vm315 = vcmp.eq.f32.partialorder %v312, %v314
      %v316 = vsel %vm315, %v311, inf
      %317 = vmin.xlane.f32.xlu0 %v316
      %v318 = vpop.xlane.xlu0 %317
      %v319 = vcvt.f32.s32 %v318
      %v320 = vcvt.f32.s32 %v314
      %v321 = vshll.u32 %v320, 16
      %v322 = vadd.s32 %v321, %v319
      %vm323 = vcmp.eq.s32.totalorder %v306, %v322
      %v324 = vsel %vm323, 128, %v306
      %v325 = vsel %vm307, %v324, 2147483647
      %v326 = vand.u32 %v325, 65535
      %v327 = vshra.s32 %v325, 16
      %v328 = vcvt.s32.f32 %v326
      %v329 = vcvt.s32.f32 %v327
      %330 = vmin.xlane.f32.xlu0 %v329
      %v331 = vpop.xlane.xlu0 %330
      %vm332 = vcmp.eq.f32.partialorder %v329, %v331
      %v333 = vsel %vm332, %v328, inf
      %334 = vmin.xlane.f32.xlu0 %v333
      %v335 = vpop.xlane.xlu0 %334
      %v336 = vcvt.f32.s32 %v335
      %v337 = vcvt.f32.s32 %v331
      %v338 = vshll.u32 %v337, 16
      %v339 = vadd.s32 %v338, %v336
      %vm340 = vcmp.eq.s32.totalorder %v324, %v339
      %v341 = vsel %vm340, 128, %v324
      %v342 = vsel %vm307, %v341, 2147483647
      %v343 = vand.u32 %v342, 65535
      %v344 = vshra.s32 %v342, 16
      %v345 = vcvt.s32.f32 %v343
      %v346 = vcvt.s32.f32 %v344
      %347 = vmin.xlane.f32.xlu0 %v346
      %v348 = vpop.xlane.xlu0 %347
      %vm349 = vcmp.eq.f32.partialorder %v346, %v348
      %v350 = vsel %vm349, %v345, inf
      %351 = vmin.xlane.f32.xlu0 %v350
      %v352 = vpop.xlane.xlu0 %351
      %v353 = vcvt.f32.s32 %v352
      %v354 = vcvt.f32.s32 %v348
      %v355 = vshll.u32 %v354, 16
      %v356 = vadd.s32 %v355, %v353
      %vm357 = vcmp.eq.s32.totalorder %v341, %v356
      %v358 = vsel %vm357, 128, %v341
      %v359 = vsel %vm307, %v358, 2147483647
      %v360 = vand.u32 %v359, 65535
      %v361 = vshra.s32 %v359, 16
      %v362 = vcvt.s32.f32 %v360
      %v363 = vcvt.s32.f32 %v361
      %364 = vmin.xlane.f32.xlu0 %v363
      %v365 = vpop.xlane.xlu0 %364
      %vm366 = vcmp.eq.f32.partialorder %v363, %v365
      %v367 = vsel %vm366, %v362, inf
      %368 = vmin.xlane.f32.xlu0 %v367
      %v369 = vpop.xlane.xlu0 %368
      %v370 = vcvt.f32.s32 %v369
      %v371 = vcvt.f32.s32 %v365
      %v372 = vshll.u32 %v371, 16
      %v373 = vadd.s32 %v372, %v370
      %vm374 = vcmp.eq.s32.totalorder %v358, %v373
      %v375 = vsel %vm374, 128, %v358
      %v376 = vsel %vm307, %v375, 2147483647
      %v377 = vand.u32 %v376, 65535
      %v378 = vshra.s32 %v376, 16
      %v379 = vcvt.s32.f32 %v377
      %v380 = vcvt.s32.f32 %v378
      %381 = vmin.xlane.f32.xlu0 %v380
      %v382 = vpop.xlane.xlu0 %381
      %vm383 = vcmp.eq.f32.partialorder %v380, %v382
      %v384 = vsel %vm383, %v379, inf
      %385 = vmin.xlane.f32.xlu0 %v384
      %v386 = vpop.xlane.xlu0 %385
      %v387 = vcvt.f32.s32 %v386
      %v388 = vcvt.f32.s32 %v382
      %v389 = vshll.u32 %v388, 16
      %v390 = vadd.s32 %v389, %v387
      %vm391 = vcmp.eq.s32.totalorder %v375, %v390
      %v392 = vsel %vm391, 128, %v375
      %v393 = vsel %vm307, %v392, 2147483647
      %v394 = vand.u32 %v393, 65535
      %v395 = vshra.s32 %v393, 16
      %v396 = vcvt.s32.f32 %v394
      %v397 = vcvt.s32.f32 %v395
      %398 = vmin.xlane.f32.xlu0 %v397
      %v399 = vpop.xlane.xlu0 %398
      %vm400 = vcmp.eq.f32.partialorder %v397, %v399
      %v401 = vsel %vm400, %v396, inf
      %402 = vmin.xlane.f32.xlu0 %v401
      %v403 = vpop.xlane.xlu0 %402
      %v404 = vcvt.f32.s32 %v403
      %v405 = vcvt.f32.s32 %v399
      %v406 = vshll.u32 %v405, 16
      %v407 = vadd.s32 %v406, %v404
      %vm408 = vcmp.eq.s32.totalorder %v392, %v407
      %v409 = vsel %vm408, 128, %v392
      %v410 = vsel %vm307, %v409, 2147483647
      %v411 = vand.u32 %v410, 65535
      %v412 = vshra.s32 %v410, 16
      %v413 = vcvt.s32.f32 %v411
      %v414 = vcvt.s32.f32 %v412
      %415 = vmin.xlane.f32.xlu0 %v414
      %v416 = vpop.xlane.xlu0 %415
      %vm417 = vcmp.eq.f32.partialorder %v414, %v416
      %v418 = vsel %vm417, %v413, inf
      %419 = vmin.xlane.f32.xlu0 %v418
      %v420 = vpop.xlane.xlu0 %419
      %v421 = vcvt.f32.s32 %v420
      %v422 = vcvt.f32.s32 %v416
      %v423 = vshll.u32 %v422, 16
      %v424 = vadd.s32 %v423, %v421
      %vm425 = vcmp.eq.s32.totalorder %v409, %v424
      %v426 = vsel %vm425, 128, %v409
      %v427 = vsel %vm307, %v426, 2147483647
      %v428 = vand.u32 %v427, 65535
      %v429 = vshra.s32 %v427, 16
      %v430 = vcvt.s32.f32 %v428
      %v431 = vcvt.s32.f32 %v429
      %432 = vmin.xlane.f32.xlu0 %v431
      %v433 = vpop.xlane.xlu0 %432
      %vm434 = vcmp.eq.f32.partialorder %v431, %v433
      %v435 = vsel %vm434, %v430, inf
      %436 = vmin.xlane.f32.xlu0 %v435
      %v437 = vpop.xlane.xlu0 %436
      %v438 = vcvt.f32.s32 %v437
      %v439 = vcvt.f32.s32 %v433
      %v440 = vshll.u32 %v439, 16
      %v441 = vadd.s32 %v440, %v438
      %vm442 = vcmask 7168
      %v443 = vsel %vm442, %v322, %v339
      %vm444 = vcmask 15360
      %v445 = vsel %vm444, %v443, %v356
      %v446 = vsel %vm212, %v445, %v373
      %vm447 = vcmask 31744
      %v448 = vsel %vm447, %v446, %v390
      %vm449 = vcmask 39936
      %v450 = vsel %vm449, %v448, %v407
      %vm451 = vcmask 48128
      %v452 = vsel %vm451, %v450, %v424
      %vm453 = vcmask 56320
      %v454 = vsel %vm453, %v452, %v441
      %vm455 = vcmp.lt.s32.totalorder %v454, 64
      %v456 = vsel %vm455, %v454, 0
      %457 = vset.pattern.permute.xlu0 0
      %458 = vperm.xlu0 %457, %v456
      %v459 = vpop.permute.xlu0 %458
      %v460 = vsel %vm455, %v454, %v459
      %vm461 = vcmask 64512
      %462 = vst.msk [vmem:[%s191] sm:$0xff] %vm461, %v460
      %p463 = scmp.lt.s32.totalorder %s17, 1
      %s464 = scalar_select %p463, %s17, 1
      %p465 = scmp.lt.s32.totalorder %s18, 1
      %s466 = scalar_select %p465, %s18, 1
      %s467 = smul.addr %s464, 2
      %s468 = sadd.s32 %s466, %s467
      %s469 = smul.addr %s468, 8
      %s470 = scalar_lea.vmem %s2, %s469
      // Predicated region
      $region29: #{sa_module_forward.7} parent=27 // pred_check
        %p471 = pneg %p99
      $region30: #{sa_module_forward.7} parent=27 // pred_check_branch
        %473 = sbr.rel (%p471) target = $region32
      $region31: #{sa_module_forward.7} parent=27 // pred_region
        _
      $region32: #{sa_module_forward.7} parent=27 // pred_fallthru
        _
    $region28: #{sa_module_forward.7} parent=5 // pred_fallthru
      _
    %p474 = scmp.le.s32.totalorder 2, %s8
    // Predicated region
    $region33: #{sa_module_forward.7} parent=5 // pred_check
      %p475 = pneg %p474
    $region34: #{sa_module_forward.7} parent=5 // pred_check_branch
      %477 = sbr.rel (%p475) target = $region36
    $region35: #{sa_module_forward.7} parent=5 // pred_region
      %s478 = ssub.s32 %s8, 2
      // Predicated region
      $region37: #{sa_module_forward.7} parent=35 // pred_check
        %p479 = pneg %p105
      $region38: #{sa_module_forward.7} parent=35 // pred_check_branch
        %481 = sbr.rel (%p479) target = $region40
      $region39: #{sa_module_forward.7} parent=35 // pred_region
        %p482 = scmp.lt.s32.totalorder %s19, 1
        %s483 = scalar_select %p482, %s19, 1
        %p484 = scmp.lt.s32.totalorder %s20, 1
        %s485 = scalar_select %p484, %s20, 1
        %s486 = smul.addr %s483, 2
        %s487 = sadd.s32 %s485, %s486
        %s488 = smul.addr %s487, 8
        %s489 = scalar_lea.vmem %s2, %s488
      $region40: #{sa_module_forward.7} parent=35 // pred_fallthru
        _
    $region36: #{sa_module_forward.7} parent=5 // pred_fallthru
      _
  $region6: #{sa_module_forward.7} parent=0 // loop_footer
    %s12 = sadd.s32 1, %s8
  $region7: #{sa_module_forward.7} parent=0 // loop_footer_branch
    %7 = sbr.rel target = $region3
  $region8: #{sa_module_forward.7} parent=0 // loop_exit
    _

// kernel: sa_module_forward.6
$region0: #{sa_module_forward.6}
  #allocation0 [shape = 'u32[]', space=smem, size = 0x4, offset = 0x4, fixed_abs, tag = 'smem constant byte address 0x4 - core index']
  #allocation1 [shape = 'u32[144,128]{1,0:T(1,128)}', space=vmem, size = 0x12000, scoped, tag = 'internal scratch']
  %s0 = inlined_call_operand.vmem [shape: f32[2,3,64], index: 0, kind: input, shape index: {}]
  %s1 = inlined_call_operand.vmem [shape: s32[2,16,1], index: 1, kind: output, shape index: {}]
  %s2 = sld [smem:[#allocation0]]
  $region44: #{sa_module_forward.6} parent=0
    _
  %s4 = ssub.s32 1, %s2
  %s5 = scalar_select 0, %s4, %s2
  loop: start=0, step=1, limit=4
  $region2: #{sa_module_forward.6} parent=0 // loop_pre_header
    _
  $region3: #{sa_module_forward.6} parent=0 // loop_header
    %s7 = sphi 0, %s11
    %p8 = scmp.ge.s32.totalorder %s7, 4
    %s17 = sphi 0, %s19
    %s20 = sphi 0, %s17
    %s21 = sphi 0, %s20
    %s37 = sphi 0, %s21
    %s43 = sphi 0, %s45
    %s46 = sphi 0, %s43
    %s47 = sphi 0, %s46
    %s63 = sphi 0, %s47
  $region4: #{sa_module_forward.6} parent=0 // loop_header_branch
    %10 = sbr.rel (%p8) target = $region8
  $region5: #{sa_module_forward.6} parent=0 // loop_body
    %s12 = ssub.s32 %s7, 1
    %s13 = ssub.s32 %s7, 2
    %s14 = sadd.s32 %s7, 1
    %s15 = ssub.s32 %s7, %s14
    %p16 = scmp.eq.s32.totalorder %s15, 0
    %s18 = sadd.s32 %s17, 1
    %s19 = scalar_select %p16, %s17, %s18
    %p22 = pneg %p16
    %p23 = scmp.eq.s32.totalorder %s7, 1
    %p24 = por %p22, %p23
    %p25 = scmp.ne.s32.totalorder %s17, %s20
    %p26 = scmp.eq.s32.totalorder %s7, 0
    %p27 = por %p25, %p26
    %p28 = scmp.ne.s32.totalorder %s17, %s20
    %p29 = scmp.eq.s32.totalorder %s12, 1
    %p30 = por %p28, %p29
    %p31 = scmp.ne.s32.totalorder %s20, %s21
    %p32 = scmp.eq.s32.totalorder %s12, 0
    %p33 = por %p31, %p32
    %p34 = scmp.ne.s32.totalorder %s20, %s21
    %p35 = scmp.eq.s32.totalorder %s13, 1
    %p36 = por %p34, %p35
    %p38 = scmp.ne.s32.totalorder %s21, %s37
    %p39 = scmp.eq.s32.totalorder %s13, 0
    %p40 = por %p38, %p39
    %s41 = ssub.s32 %s7, %s14
    %p42 = scmp.eq.s32.totalorder %s41, 0
    %s44 = sadd.s32 %s43, 1
    %s45 = scalar_select %p42, %s43, %s44
    %p48 = pneg %p42
    %p49 = scmp.eq.s32.totalorder %s7, 1
    %p50 = por %p48, %p49
    %p51 = scmp.ne.s32.totalorder %s43, %s46
    %p52 = scmp.eq.s32.totalorder %s7, 0
    %p53 = por %p51, %p52
    %p54 = scmp.ne.s32.totalorder %s43, %s46
    %p55 = scmp.eq.s32.totalorder %s12, 1
    %p56 = por %p54, %p55
    %p57 = scmp.ne.s32.totalorder %s46, %s47
    %p58 = scmp.eq.s32.totalorder %s12, 0
    %p59 = por %p57, %p58
    %p60 = scmp.ne.s32.totalorder %s46, %s47
    %p61 = scmp.eq.s32.totalorder %s13, 1
    %p62 = por %p60, %p61
    %p64 = scmp.ne.s32.totalorder %s47, %s63
    %p65 = scmp.eq.s32.totalorder %s13, 0
    %p66 = por %p64, %p65
    %p67 = scmp.le.s32.totalorder 1, %s7
    %p68 = scmp.lt.s32.totalorder %s7, 3
    %p69 = pnand %p67, %p68
    %p70 = pneg %p69
    // Predicated region
    $region9: #{sa_module_forward.6} parent=5 // pred_check
      _
    $region10: #{sa_module_forward.6} parent=5 // pred_check_branch
      %72 = sbr.rel (%p69) target = $region12
    $region11: #{sa_module_forward.6} parent=5 // pred_region
      %s73 = ssub.s32 %s7, 1
    $region12: #{sa_module_forward.6} parent=5 // pred_fallthru
      _
    %p74 = scmp.lt.s32.totalorder %s7, 2
    // Predicated region
    $region13: #{sa_module_forward.6} parent=5 // pred_check
      %p75 = pneg %p74
    $region14: #{sa_module_forward.6} parent=5 // pred_check_branch
      %77 = sbr.rel (%p75) target = $region16
    $region15: #{sa_module_forward.6} parent=5 // pred_region
      // Predicated region
      $region17: #{sa_module_forward.6} parent=15 // pred_check
        %p78 = pneg %p27
      $region18: #{sa_module_forward.6} parent=15 // pred_check_branch
        %80 = sbr.rel (%p78) target = $region20
      $region19: #{sa_module_forward.6} parent=15 // pred_region
        %p81 = scmp.lt.s32.totalorder %s7, 1
        %s82 = scalar_select %p81, %s7, 1
        %s83 = smul.addr %s82, 4
        %s84 = scalar_lea.vmem %s0, %s83
      $region20: #{sa_module_forward.6} parent=15 // pred_fallthru
        _
    $region16: #{sa_module_forward.6} parent=5 // pred_fallthru
      _
    %p85 = scmp.le.s32.totalorder 1, %s7
    %p86 = scmp.lt.s32.totalorder %s7, 3
    %p87 = pnand %p85, %p86
    %p88 = pneg %p87
    // Predicated region
    $region21: #{sa_module_forward.6} parent=5 // pred_check
      _
    $region22: #{sa_module_forward.6} parent=5 // pred_check_branch
      %90 = sbr.rel (%p87) target = $region24
    $region23: #{sa_module_forward.6} parent=5 // pred_region
      %s91 = ssub.s32 %s7, 1
      %p92 = scmp.lt.s32.totalorder %s12, 1
      %s93 = scalar_select %p92, %s12, 1
      %s94 = smul.addr %s93, 4
      %s95 = scalar_lea.vmem %s0, %s94
      %p96 = pneg %p33
      %p97 = pneg %p30
      %p98 = pneg %p59
      %p99 = pneg %p56
      %p100 = scmp.lt.s32.totalorder %s12, 1
      %s101 = scalar_select %p100, %s12, 1
      %s102 = smul.addr %s101, 2
      %s103 = smul.addr %s102, 8
      %s104 = scalar_lea.vmem %s1, %s103
      %p105 = scmp.lt.s32.totalorder %s12, 1
      %s106 = scalar_select %p105, %s12, 1
      %s107 = smul.addr %s106, 4
      %s108 = scalar_lea.vmem %s0, %s107
      %p109 = scmp.lt.s32.totalorder %s12, 1
      %s110 = scalar_select %p109, %s12, 1
      %s111 = smul.addr %s110, 2
      %s112 = smul.addr %s111, 8
      %s113 = scalar_lea.vmem %s1, %s112
      %v114 = vld [vmem:[%s108] sm:$0x7]
      %v115 = vlaneseq
      %v116 = vand.u32 %v115, 127
      %v117 = vmul.f32 %v114, %v114
      %v119 = vrot.slane %v117, 1
      %v121 = vadd.f32 %v117, %v119
      %v122 = vrot.slane %v117, 2
      %v124 = vadd.f32 %v121, %v122
      loop: start=0, step=1, limit=16
      $region25: #{sa_module_forward.6} parent=23 // loop_pre_header
        _
      $region26: #{sa_module_forward.6} parent=23 // loop_header
        %s126 = sphi 0, %s130
        %p127 = scmp.ge.s32.totalorder %s126, 16
        %v131 = vphi 1e+10, %v172
        %v132 = vphi 0, %v193
      $region27: #{sa_module_forward.6} parent=23 // loop_header_branch
        %129 = sbr.rel (%p127) target = $region31
      $region28: #{sa_module_forward.6} parent=23 // loop_body
        %s133 = scalar_lea.vmem %s113, %s126
        %vm134 = vcmask 0
        %135 = vst.msk [vmem:[%s133] sm:$0x1] %vm134, %v132
        %vm136 = vcmp.eq.s32.totalorder %v116, %v132
        %v137 = vsel %vm136, 1, 0
        %v138 = vcvt.s32.f32 %v137
        %v139 = vlaneseq
        %v140 = vshrl.u32 %v139, 7
        %v141 = vsub.s32 0, %v140
        %v142 = vrot.slane %v138, %v141
        %v143 = vmul.f32 %v114, %v142
        %vm144 = vcmask 518144
        %v145 = vsel %vm144, %v143, 0.0
        %146 = vadd.xlane.f32.xlu0 %v145
        %v147 = vpop.xlane.xlu0 %146
        %v148 = vmul.f32 %v114, %v147
        %v150 = vrot.slane %v148, 1
        %v152 = vadd.f32 %v148, %v150
        %v153 = vrot.slane %v148, 2
        %v155 = vadd.f32 %v152, %v153
        %v156 = vmul.f32 %v147, %v147
        %v158 = vrot.slane %v156, 1
        %v160 = vadd.f32 %v156, %v158
        %v161 = vrot.slane %v156, 2
        %v163 = vadd.f32 %v160, %v161
        %v164 = vmul.f32 %v155, 2.0
        %v165 = vsub.f32 %v124, %v164
        %167 = vset.pattern.permute.xlu0 0
        %168 = vperm.xlu0 %167, %v163
        %v169 = vpop.permute.xlu0 %168
        %v171 = vadd.f32 %v165, %v169
        %v172 = vmin.f32 %v131, %v171
        %vm173 = vcmask 516096
        %v174 = vsel %vm173, %v172, -inf
        %175 = vmax.xlane.f32.xlu0 %v174
        %v176 = vpop.xlane.xlu0 %175
        %vm177 = vcmp.ge.f32.partialorder %v172, %v176
        %v178 = vsel %vm177, %v116, 64
        %v179 = vsel %vm173, %v178, 2147483647
        %v180 = vand.u32 %v179, 65535
        %v181 = vshra.s32 %v179, 16
        %v182 = vcvt.s32.f32 %v180
        %v183 = vcvt.s32.f32 %v181
        %184 = vmin.xlane.f32.xlu0 %v183
        %v185 = vpop.xlane.xlu0 %184
        %vm186 = vcmp.eq.f32.partialorder %v183, %v185
        %v187 = vsel %vm186, %v182, inf
        %188 = vmin.xlane.f32.xlu0 %v187
        %v189 = vpop.xlane.xlu0 %188
        %v190 = vcvt.f32.s32 %v189
        %v191 = vcvt.f32.s32 %v185
        %v192 = vshll.u32 %v191, 16
        %v193 = vadd.s32 %v192, %v190
      $region29: #{sa_module_forward.6} parent=23 // loop_footer
        %s130 = sadd.s32 1, %s126
      $region30: #{sa_module_forward.6} parent=23 // loop_footer_branch
        %125 = sbr.rel target = $region26
      $region31: #{sa_module_forward.6} parent=23 // loop_exit
        _
      %p194 = scmp.lt.s32.totalorder %s12, 1
      %s195 = scalar_select %p194, %s12, 1
      %s196 = smul.addr %s195, 2
      %s197 = smul.addr %s196, 8
      %s198 = scalar_lea.vmem %s1, %s197
      // Predicated region
      $region32: #{sa_module_forward.6} parent=23 // pred_check
        %p199 = pneg %p56
      $region33: #{sa_module_forward.6} parent=23 // pred_check_branch
        %201 = sbr.rel (%p199) target = $region35
      $region34: #{sa_module_forward.6} parent=23 // pred_region
        _
      $region35: #{sa_module_forward.6} parent=23 // pred_fallthru
        _
    $region24: #{sa_module_forward.6} parent=5 // pred_fallthru
      _
    %p202 = scmp.le.s32.totalorder 2, %s7
    // Predicated region
    $region36: #{sa_module_forward.6} parent=5 // pred_check
      %p203 = pneg %p202
    $region37: #{sa_module_forward.6} parent=5 // pred_check_branch
      %205 = sbr.rel (%p203) target = $region39
    $region38: #{sa_module_forward.6} parent=5 // pred_region
      %s206 = ssub.s32 %s7, 2
      // Predicated region
      $region40: #{sa_module_forward.6} parent=38 // pred_check
        %p207 = pneg %p62
      $region41: #{sa_module_forward.6} parent=38 // pred_check_branch
        %209 = sbr.rel (%p207) target = $region43
      $region42: #{sa_module_forward.6} parent=38 // pred_region
        %p210 = scmp.lt.s32.totalorder %s13, 1
        %s211 = scalar_select %p210, %s13, 1
        %s212 = smul.addr %s211, 2
        %s213 = smul.addr %s212, 8
        %s214 = scalar_lea.vmem %s1, %s213
      $region43: #{sa_module_forward.6} parent=38 // pred_fallthru
        _
    $region39: #{sa_module_forward.6} parent=5 // pred_fallthru
      _
  $region6: #{sa_module_forward.6} parent=0 // loop_footer
    %s11 = sadd.s32 1, %s7
  $region7: #{sa_module_forward.6} parent=0 // loop_footer_branch
    %6 = sbr.rel target = $region3
  $region8: #{sa_module_forward.6} parent=0 // loop_exit
    _

// kernel: sa_module_forward.8
$region0: #{sa_module_forward.8}
  #allocation0 [shape = 'u32[]', space=smem, size = 0x4, offset = 0x4, fixed_abs, tag = 'smem constant byte address 0x4 - core index']
  #allocation1 [shape = 'u32[144,128]{1,0:T(1,128)}', space=vmem, size = 0x12000, scoped, tag = 'internal scratch']
  %s0 = inlined_call_operand.vmem [shape: bf16[256,7], index: 0, kind: input, shape index: {}]
  %s1 = inlined_call_operand.vmem [shape: bf16[7,128], index: 1, kind: input, shape index: {}]
  %s2 = inlined_call_operand.vmem [shape: f32[1,128], index: 2, kind: input, shape index: {}]
  %s3 = inlined_call_operand.vmem [shape: f32[1,128], index: 3, kind: input, shape index: {}]
  %s4 = inlined_call_operand.vmem [shape: bf16[128,128], index: 4, kind: input, shape index: {}]
  %s5 = inlined_call_operand.vmem [shape: f32[1,128], index: 5, kind: input, shape index: {}]
  %s6 = inlined_call_operand.vmem [shape: f32[1,128], index: 6, kind: input, shape index: {}]
  %s7 = inlined_call_operand.vmem [shape: bf16[32,128], index: 7, kind: output, shape index: {}]
  %s8 = sld [smem:[#allocation0]]
  $region61: #{sa_module_forward.8} parent=0
    _
  %s10 = ssub.s32 1, %s8
  %s11 = scalar_select 0, %s10, %s8
  loop: start=0, step=1, limit=4
  $region2: #{sa_module_forward.8} parent=0 // loop_pre_header
    _
  $region3: #{sa_module_forward.8} parent=0 // loop_header
    %s13 = sphi 0, %s17
    %p14 = scmp.ge.s32.totalorder %s13, 4
    %s23 = sphi 0, %s25
    %s26 = sphi 0, %s23
    %s27 = sphi 0, %s26
    %s43 = sphi 0, %s27
    %s47 = sphi 0, %s47
    %s49 = sphi 0, %s47
    %s50 = sphi 0, %s49
    %s64 = sphi 0, %s50
    %s68 = sphi 0, %s68
    %s70 = sphi 0, %s68
    %s71 = sphi 0, %s70
    %s85 = sphi 0, %s71
    %s89 = sphi 0, %s89
    %s91 = sphi 0, %s89
    %s92 = sphi 0, %s91
    %s106 = sphi 0, %s92
    %s110 = sphi 0, %s110
    %s112 = sphi 0, %s110
    %s113 = sphi 0, %s112
    %s127 = sphi 0, %s113
    %s131 = sphi 0, %s131
    %s133 = sphi 0, %s131
    %s134 = sphi 0, %s133
    %s148 = sphi 0, %s134
    %s152 = sphi 0, %s152
    %s154 = sphi 0, %s152
    %s155 = sphi 0, %s154
    %s169 = sphi 0, %s155
    %s175 = sphi 0, %s177
    %s178 = sphi 0, %s175
    %s179 = sphi 0, %s178
    %s195 = sphi 0, %s179
  $region4: #{sa_module_forward.8} parent=0 // loop_header_branch
    %16 = sbr.rel (%p14) target = $region8
  $region5: #{sa_module_forward.8} parent=0 // loop_body
    %s18 = ssub.s32 %s13, 1
    %s19 = ssub.s32 %s13, 2
    %s20 = sadd.s32 %s13, 1
    %s21 = ssub.s32 %s13, %s20
    %p22 = scmp.eq.s32.totalorder %s21, 0
    %s24 = sadd.s32 %s23, 1
    %s25 = scalar_select %p22, %s23, %s24
    %p28 = pneg %p22
    %p29 = scmp.eq.s32.totalorder %s13, 1
    %p30 = por %p28, %p29
    %p31 = scmp.ne.s32.totalorder %s23, %s26
    %p32 = scmp.eq.s32.totalorder %s13, 0
    %p33 = por %p31, %p32
    %p34 = scmp.ne.s32.totalorder %s23, %s26
    %p35 = scmp.eq.s32.totalorder %s18, 1
    %p36 = por %p34, %p35
    %p37 = scmp.ne.s32.totalorder %s26, %s27
    %p38 = scmp.eq.s32.totalorder %s18, 0
    %p39 = por %p37, %p38
    %p40 = scmp.ne.s32.totalorder %s26, %s27
    %p41 = scmp.eq.s32.totalorder %s19, 1
    %p42 = por %p40, %p41
    %p44 = scmp.ne.s32.totalorder %s27, %s43
    %p45 = scmp.eq.s32.totalorder %s19, 0
    %p46 = por %p44, %p45
    %s48 = sadd.s32 %s47, 1
    %p51 = scmp.eq.s32.totalorder %s13, 1
    %p52 = scmp.ne.s32.totalorder %s47, %s49
    %p53 = scmp.eq.s32.totalorder %s13, 0
    %p54 = por %p52, %p53
    %p55 = scmp.ne.s32.totalorder %s47, %s49
    %p56 = scmp.eq.s32.totalorder %s18, 1
    %p57 = por %p55, %p56
    %p58 = scmp.ne.s32.totalorder %s49, %s50
    %p59 = scmp.eq.s32.totalorder %s18, 0
    %p60 = por %p58, %p59
    %p61 = scmp.ne.s32.totalorder %s49, %s50
    %p62 = scmp.eq.s32.totalorder %s19, 1
    %p63 = por %p61, %p62
    %p65 = scmp.ne.s32.totalorder %s50, %s64
    %p66 = scmp.eq.s32.totalorder %s19, 0
    %p67 = por %p65, %p66
    %s69 = sadd.s32 %s68, 1
    %p72 = scmp.eq.s32.totalorder %s13, 1
    %p73 = scmp.ne.s32.totalorder %s68, %s70
    %p74 = scmp.eq.s32.totalorder %s13, 0
    %p75 = por %p73, %p74
    %p76 = scmp.ne.s32.totalorder %s68, %s70
    %p77 = scmp.eq.s32.totalorder %s18, 1
    %p78 = por %p76, %p77
    %p79 = scmp.ne.s32.totalorder %s70, %s71
    %p80 = scmp.eq.s32.totalorder %s18, 0
    %p81 = por %p79, %p80
    %p82 = scmp.ne.s32.totalorder %s70, %s71
    %p83 = scmp.eq.s32.totalorder %s19, 1
    %p84 = por %p82, %p83
    %p86 = scmp.ne.s32.totalorder %s71, %s85
    %p87 = scmp.eq.s32.totalorder %s19, 0
    %p88 = por %p86, %p87
    %s90 = sadd.s32 %s89, 1
    %p93 = scmp.eq.s32.totalorder %s13, 1
    %p94 = scmp.ne.s32.totalorder %s89, %s91
    %p95 = scmp.eq.s32.totalorder %s13, 0
    %p96 = por %p94, %p95
    %p97 = scmp.ne.s32.totalorder %s89, %s91
    %p98 = scmp.eq.s32.totalorder %s18, 1
    %p99 = por %p97, %p98
    %p100 = scmp.ne.s32.totalorder %s91, %s92
    %p101 = scmp.eq.s32.totalorder %s18, 0
    %p102 = por %p100, %p101
    %p103 = scmp.ne.s32.totalorder %s91, %s92
    %p104 = scmp.eq.s32.totalorder %s19, 1
    %p105 = por %p103, %p104
    %p107 = scmp.ne.s32.totalorder %s92, %s106
    %p108 = scmp.eq.s32.totalorder %s19, 0
    %p109 = por %p107, %p108
    %s111 = sadd.s32 %s110, 1
    %p114 = scmp.eq.s32.totalorder %s13, 1
    %p115 = scmp.ne.s32.totalorder %s110, %s112
    %p116 = scmp.eq.s32.totalorder %s13, 0
    %p117 = por %p115, %p116
    %p118 = scmp.ne.s32.totalorder %s110, %s112
    %p119 = scmp.eq.s32.totalorder %s18, 1
    %p120 = por %p118, %p119
    %p121 = scmp.ne.s32.totalorder %s112, %s113
    %p122 = scmp.eq.s32.totalorder %s18, 0
    %p123 = por %p121, %p122
    %p124 = scmp.ne.s32.totalorder %s112, %s113
    %p125 = scmp.eq.s32.totalorder %s19, 1
    %p126 = por %p124, %p125
    %p128 = scmp.ne.s32.totalorder %s113, %s127
    %p129 = scmp.eq.s32.totalorder %s19, 0
    %p130 = por %p128, %p129
    %s132 = sadd.s32 %s131, 1
    %p135 = scmp.eq.s32.totalorder %s13, 1
    %p136 = scmp.ne.s32.totalorder %s131, %s133
    %p137 = scmp.eq.s32.totalorder %s13, 0
    %p138 = por %p136, %p137
    %p139 = scmp.ne.s32.totalorder %s131, %s133
    %p140 = scmp.eq.s32.totalorder %s18, 1
    %p141 = por %p139, %p140
    %p142 = scmp.ne.s32.totalorder %s133, %s134
    %p143 = scmp.eq.s32.totalorder %s18, 0
    %p144 = por %p142, %p143
    %p145 = scmp.ne.s32.totalorder %s133, %s134
    %p146 = scmp.eq.s32.totalorder %s19, 1
    %p147 = por %p145, %p146
    %p149 = scmp.ne.s32.totalorder %s134, %s148
    %p150 = scmp.eq.s32.totalorder %s19, 0
    %p151 = por %p149, %p150
    %s153 = sadd.s32 %s152, 1
    %p156 = scmp.eq.s32.totalorder %s13, 1
    %p157 = scmp.ne.s32.totalorder %s152, %s154
    %p158 = scmp.eq.s32.totalorder %s13, 0
    %p159 = por %p157, %p158
    %p160 = scmp.ne.s32.totalorder %s152, %s154
    %p161 = scmp.eq.s32.totalorder %s18, 1
    %p162 = por %p160, %p161
    %p163 = scmp.ne.s32.totalorder %s154, %s155
    %p164 = scmp.eq.s32.totalorder %s18, 0
    %p165 = por %p163, %p164
    %p166 = scmp.ne.s32.totalorder %s154, %s155
    %p167 = scmp.eq.s32.totalorder %s19, 1
    %p168 = por %p166, %p167
    %p170 = scmp.ne.s32.totalorder %s155, %s169
    %p171 = scmp.eq.s32.totalorder %s19, 0
    %p172 = por %p170, %p171
    %s173 = ssub.s32 %s13, %s20
    %p174 = scmp.eq.s32.totalorder %s173, 0
    %s176 = sadd.s32 %s175, 1
    %s177 = scalar_select %p174, %s175, %s176
    %p180 = pneg %p174
    %p181 = scmp.eq.s32.totalorder %s13, 1
    %p182 = por %p180, %p181
    %p183 = scmp.ne.s32.totalorder %s175, %s178
    %p184 = scmp.eq.s32.totalorder %s13, 0
    %p185 = por %p183, %p184
    %p186 = scmp.ne.s32.totalorder %s175, %s178
    %p187 = scmp.eq.s32.totalorder %s18, 1
    %p188 = por %p186, %p187
    %p189 = scmp.ne.s32.totalorder %s178, %s179
    %p190 = scmp.eq.s32.totalorder %s18, 0
    %p191 = por %p189, %p190
    %p192 = scmp.ne.s32.totalorder %s178, %s179
    %p193 = scmp.eq.s32.totalorder %s19, 1
    %p194 = por %p192, %p193
    %p196 = scmp.ne.s32.totalorder %s179, %s195
    %p197 = scmp.eq.s32.totalorder %s19, 0
    %p198 = por %p196, %p197
    %p199 = scmp.le.s32.totalorder 1, %s13
    %p200 = scmp.lt.s32.totalorder %s13, 3
    %p201 = pnand %p199, %p200
    %p202 = pneg %p201
    // Predicated region
    $region9: #{sa_module_forward.8} parent=5 // pred_check
      _
    $region10: #{sa_module_forward.8} parent=5 // pred_check_branch
      %204 = sbr.rel (%p201) target = $region12
    $region11: #{sa_module_forward.8} parent=5 // pred_region
      %s205 = ssub.s32 %s13, 1
      // Predicated region
      $region13: #{sa_module_forward.8} parent=11 // pred_check
        %p206 = pneg %p60
      $region14: #{sa_module_forward.8} parent=11 // pred_check_branch
        %208 = sbr.rel (%p206) target = $region16
      $region15: #{sa_module_forward.8} parent=11 // pred_region
        _
      $region16: #{sa_module_forward.8} parent=11 // pred_fallthru
        _
      // Predicated region
      $region17: #{sa_module_forward.8} parent=11 // pred_check
        %p209 = pneg %p81
      $region18: #{sa_module_forward.8} parent=11 // pred_check_branch
        %211 = sbr.rel (%p209) target = $region20
      $region19: #{sa_module_forward.8} parent=11 // pred_region
        _
      $region20: #{sa_module_forward.8} parent=11 // pred_fallthru
        _
      // Predicated region
      $region21: #{sa_module_forward.8} parent=11 // pred_check
        %p212 = pneg %p102
      $region22: #{sa_module_forward.8} parent=11 // pred_check_branch
        %214 = sbr.rel (%p212) target = $region24
      $region23: #{sa_module_forward.8} parent=11 // pred_region
        _
      $region24: #{sa_module_forward.8} parent=11 // pred_fallthru
        _
      // Predicated region
      $region25: #{sa_module_forward.8} parent=11 // pred_check
        %p215 = pneg %p123
      $region26: #{sa_module_forward.8} parent=11 // pred_check_branch
        %217 = sbr.rel (%p215) target = $region28
      $region27: #{sa_module_forward.8} parent=11 // pred_region
        _
      $region28: #{sa_module_forward.8} parent=11 // pred_fallthru
        _
      // Predicated region
      $region29: #{sa_module_forward.8} parent=11 // pred_check
        %p218 = pneg %p144
      $region30: #{sa_module_forward.8} parent=11 // pred_check_branch
        %220 = sbr.rel (%p218) target = $region32
      $region31: #{sa_module_forward.8} parent=11 // pred_region
        _
      $region32: #{sa_module_forward.8} parent=11 // pred_fallthru
        _
      // Predicated region
      $region33: #{sa_module_forward.8} parent=11 // pred_check
        %p221 = pneg %p165
      $region34: #{sa_module_forward.8} parent=11 // pred_check_branch
        %223 = sbr.rel (%p221) target = $region36
      $region35: #{sa_module_forward.8} parent=11 // pred_region
        _
      $region36: #{sa_module_forward.8} parent=11 // pred_fallthru
        _
    $region12: #{sa_module_forward.8} parent=5 // pred_fallthru
      _
    %p224 = scmp.lt.s32.totalorder %s13, 2
    // Predicated region
    $region37: #{sa_module_forward.8} parent=5 // pred_check
      %p225 = pneg %p224
    $region38: #{sa_module_forward.8} parent=5 // pred_check_branch
      %227 = sbr.rel (%p225) target = $region40
    $region39: #{sa_module_forward.8} parent=5 // pred_region
      // Predicated region
      $region41: #{sa_module_forward.8} parent=39 // pred_check
        %p228 = pneg %p33
      $region42: #{sa_module_forward.8} parent=39 // pred_check_branch
        %230 = sbr.rel (%p228) target = $region44
      $region43: #{sa_module_forward.8} parent=39 // pred_region
        %s231 = smul.u32 16, %s13
        %p232 = scmp.lt.s32.totalorder %s231, 31
        %s233 = scalar_select %p232, %s231, 31
        %s234 = smul.addr %s233, 4
        %s235 = scalar_lea.vmem %s0, %s234
        %s236 = smul.u32 16, %s13
      $region44: #{sa_module_forward.8} parent=39 // pred_fallthru
        _
    $region40: #{sa_module_forward.8} parent=5 // pred_fallthru
      _
    %p237 = scmp.le.s32.totalorder 1, %s13
    %p238 = scmp.lt.s32.totalorder %s13, 3
    %p239 = pnand %p237, %p238
    %p240 = pneg %p239
    // Predicated region
    $region45: #{sa_module_forward.8} parent=5 // pred_check
      _
    $region46: #{sa_module_forward.8} parent=5 // pred_check_branch
      %242 = sbr.rel (%p239) target = $region48
    $region47: #{sa_module_forward.8} parent=5 // pred_region
      %s243 = ssub.s32 %s13, 1
      %s244 = smul.u32 16, %s18
      %p245 = scmp.lt.s32.totalorder %s244, 31
      %s246 = scalar_select %p245, %s244, 31
      %s247 = smul.addr %s246, 4
      %s248 = scalar_lea.vmem %s0, %s247
      %p249 = pneg %p39
      %p250 = pneg %p36
      %p251 = pneg %p60
      %p252 = pneg %p57
      %p253 = pneg %p81
      %p254 = pneg %p78
      %p255 = pneg %p102
      %p256 = pneg %p99
      %p257 = pneg %p123
      %p258 = pneg %p120
      %p259 = pneg %p144
      %p260 = pneg %p141
      %p261 = pneg %p165
      %p262 = pneg %p162
      %p263 = pneg %p191
      %p264 = pneg %p188
      %s265 = smul.u32 2, %s18
      %p266 = scmp.lt.s32.totalorder %s265, 3
      %s267 = scalar_select %p266, %s265, 3
      %s268 = smul.addr %s267, 4
      %s269 = scalar_lea.vmem %s7, %s268
      %s270 = smul.u32 16, %s18
      %p271 = scmp.lt.s32.totalorder %s270, 31
      %s272 = scalar_select %p271, %s270, 31
      %s273 = smul.addr %s272, 4
      %s274 = scalar_lea.vmem %s0, %s273
      %s275 = smul.u32 16, %s18
      %s276 = smul.u32 2, %s18
      %p277 = scmp.lt.s32.totalorder %s276, 3
      %s278 = scalar_select %p277, %s276, 3
      %s279 = smul.addr %s278, 4
      %s280 = scalar_lea.vmem %s7, %s279
      %s281 = smul.u32 2, %s18
      %v283 = vld [vmem:[%s274] sm:$0xf]
      %v284 = vld [vmem:[%s274 + $0x4] sm:$0xf]
      %v285 = vld [vmem:[%s274 + $0x8] sm:$0xf]
      %v286 = vld [vmem:[%s274 + $0xc] sm:$0xf]
      %v287 = vld [vmem:[%s274 + $0x10] sm:$0xf]
      %v288 = vld [vmem:[%s274 + $0x14] sm:$0xf]
      %v289 = vld [vmem:[%s274 + $0x18] sm:$0xf]
      %v290 = vld [vmem:[%s274 + $0x1c] sm:$0xf]
      %v291 = vld [vmem:[%s274 + $0x20] sm:$0xf]
      %v292 = vld [vmem:[%s274 + $0x24] sm:$0xf]
      %v293 = vld [vmem:[%s274 + $0x28] sm:$0xf]
      %v294 = vld [vmem:[%s274 + $0x2c] sm:$0xf]
      %v295 = vld [vmem:[%s274 + $0x30] sm:$0xf]
      %v296 = vld [vmem:[%s274 + $0x34] sm:$0xf]
      %v297 = vld [vmem:[%s274 + $0x38] sm:$0xf]
      %v298 = vld [vmem:[%s274 + $0x3c] sm:$0xf]
      %v299 = vld [vmem:[%s1] sm:$0xf]
      %v300 = vld [vmem:[%s2] sm:$0x1]
      %v301 = vld [vmem:[%s3] sm:$0x1]
      %v318 = vunpack.c.l.b16 %v283
      %v319 = vunpack.c.l.b16 %v284
      %v320 = vunpack.c.l.b16 %v285
      %v321 = vunpack.c.l.b16 %v286
      %v322 = vunpack.c.l.b16 %v287
      %v323 = vunpack.c.l.b16 %v288
      %v324 = vunpack.c.l.b16 %v289
      %v325 = vunpack.c.l.b16 %v290
      %v326 = vunpack.c.l.b16 %v291
      %v327 = vunpack.c.l.b16 %v292
      %v328 = vunpack.c.l.b16 %v293
      %v329 = vunpack.c.l.b16 %v294
      %v330 = vunpack.c.l.b16 %v295
      %v331 = vunpack.c.l.b16 %v296
      %v332 = vunpack.c.l.b16 %v297
      %v333 = vunpack.c.l.b16 %v298
      %v334 = vpack.c.b16 %v319, %v318
      %v335 = vpack.c.b16 %v321, %v320
      %v336 = vpack.c.b16 %v323, %v322
      %v337 = vpack.c.b16 %v325, %v324
      %v338 = vpack.c.b16 %v327, %v326
      %v339 = vpack.c.b16 %v329, %v328
      %v340 = vpack.c.b16 %v331, %v330
      %v341 = vpack.c.b16 %v333, %v332
      %vm342 = vcmask 56320
      %v344 = vsel %vm342, %v334, 0
      %v347 = vsel %vm342, %v335, 0
      %v350 = vsel %vm342, %v336, 0
      %v353 = vsel %vm342, %v337, 0
      %v356 = vsel %vm342, %v338, 0
      %v359 = vsel %vm342, %v339, 0
      %v362 = vsel %vm342, %v340, 0
      %v365 = vsel %vm342, %v341, 0
      %vm367 = vcmask 1042432
      %vm368 = vcmask 1043456
      %v369 = vsel %vm367, 4294967295, 65535
      %v370 = vsel %vm368, %v369, 0
      %v372 = vand.u32 %v299, %v370
      %374 = vmatprep.subr.bf16.mxu0 0
      %375 = vmatpush1.bf16.msra.mxu0 %v372
      %376 = vmatprep.subr.bf16.mxu0 0
      %377 = vmatpush1.bf16.msra.mxu0 0
      %378 = vmatprep.subr.bf16.mxu0 0
      %379 = vmatpush1.bf16.msra.mxu0 0
      %380 = vmatprep.subr.bf16.mxu0 0
      %381 = vmatpush1.bf16.msra.mxu0 0
      %382 = vmatprep.subr.bf16.mxu0 0
      %383 = vmatpush1.bf16.msra.mxu0 0
      %384 = vmatprep.subr.bf16.mxu0 0
      %385 = vmatpush1.bf16.msra.mxu0 0
      %386 = vmatprep.subr.bf16.mxu0 0
      %387 = vmatpush1.bf16.msra.mxu0 0
      %388 = vmatprep.subr.bf16.mxu0 0
      %389 = vmatpush1.bf16.msra.mxu0 0
      %390 = vmatprep.subr.bf16.mxu0 0
      %391 = vmatpush1.bf16.msra.mxu0 0
      %392 = vmatprep.subr.bf16.mxu0 0
      %393 = vmatpush1.bf16.msra.mxu0 0
      %394 = vmatprep.subr.bf16.mxu0 0
      %395 = vmatpush1.bf16.msra.mxu0 0
      %396 = vmatprep.subr.bf16.mxu0 0
      %397 = vmatpush1.bf16.msra.mxu0 0
      %398 = vmatprep.subr.bf16.mxu0 0
      %399 = vmatpush1.bf16.msra.mxu0 0
      %400 = vmatprep.subr.bf16.mxu0 0
      %401 = vmatpush1.bf16.msra.mxu0 0
      %402 = vmatprep.subr.bf16.mxu0 0
      %403 = vmatpush1.bf16.msra.mxu0 0
      %404 = vmatprep.subr.bf16.mxu0 0
      %405 = vmatpush1.bf16.msra.mxu0 0
      %406 = vmatprep.mubr.bf16.mxu0 0
      %407 = vmatmul.mubr.bf16.gmra.mrb[0].mxu0 %v344
      %v408 = vpop.f32.mrb[0].mxu0
      %v409 = vadd.f32 0.0, %v408
      %v410 = vpop.f32.mrb[0].mxu0
      %v411 = vpop.f32.mrb[0].mxu0
      %v412 = vadd.f32 0.0, %v411
      %v413 = vpop.f32.mrb[0].mxu0
      %414 = vmatprep.mubr.bf16.mxu0 0
      %415 = vmatmul.mubr.bf16.gmra.mrb[0].mxu0 %v347
      %v416 = vpop.f32.mrb[0].mxu0
      %v417 = vadd.f32 0.0, %v416
      %v418 = vpop.f32.mrb[0].mxu0
      %v419 = vpop.f32.mrb[0].mxu0
      %v420 = vadd.f32 0.0, %v419
      %v421 = vpop.f32.mrb[0].mxu0
      %422 = vmatprep.mubr.bf16.mxu0 0
      %423 = vmatmul.mubr.bf16.gmra.mrb[0].mxu0 %v350
      %v424 = vpop.f32.mrb[0].mxu0
      %v425 = vadd.f32 0.0, %v424
      %v426 = vpop.f32.mrb[0].mxu0
      %v427 = vpop.f32.mrb[0].mxu0
      %v428 = vadd.f32 0.0, %v427
      %v429 = vpop.f32.mrb[0].mxu0
      %430 = vmatprep.mubr.bf16.mxu0 0
      %431 = vmatmul.mubr.bf16.gmra.mrb[0].mxu0 %v353
      %v432 = vpop.f32.mrb[0].mxu0
      %v433 = vadd.f32 0.0, %v432
      %v434 = vpop.f32.mrb[0].mxu0
      %v435 = vpop.f32.mrb[0].mxu0
      %v436 = vadd.f32 0.0, %v435
      %v437 = vpop.f32.mrb[0].mxu0
      %438 = vmatprep.mubr.bf16.mxu0 0
      %439 = vmatmul.mubr.bf16.gmra.mrb[0].mxu0 %v356
      %v440 = vpop.f32.mrb[0].mxu0
      %v441 = vadd.f32 0.0, %v440
      %v442 = vpop.f32.mrb[0].mxu0
      %v443 = vpop.f32.mrb[0].mxu0
      %v444 = vadd.f32 0.0, %v443
      %v445 = vpop.f32.mrb[0].mxu0
      %446 = vmatprep.mubr.bf16.mxu0 0
      %447 = vmatmul.mubr.bf16.gmra.mrb[0].mxu0 %v359
      %v448 = vpop.f32.mrb[0].mxu0
      %v449 = vadd.f32 0.0, %v448
      %v450 = vpop.f32.mrb[0].mxu0
      %v451 = vpop.f32.mrb[0].mxu0
      %v452 = vadd.f32 0.0, %v451
      %v453 = vpop.f32.mrb[0].mxu0
      %454 = vmatprep.mubr.bf16.mxu0 0
      %455 = vmatmul.mubr.bf16.gmra.mrb[0].mxu0 %v362
      %v456 = vpop.f32.mrb[0].mxu0
      %v457 = vadd.f32 0.0, %v456
      %v458 = vpop.f32.mrb[0].mxu0
      %v459 = vpop.f32.mrb[0].mxu0
      %v460 = vadd.f32 0.0, %v459
      %v461 = vpop.f32.mrb[0].mxu0
      %462 = vmatprep.mubr.bf16.mxu0 0
      %463 = vmatmul.mubr.bf16.gmra.mrb[0].mxu0 %v365
      %v464 = vpop.f32.mrb[0].mxu0
      %v465 = vadd.f32 0.0, %v464
      %v466 = vpop.f32.mrb[0].mxu0
      %v467 = vpop.f32.mrb[0].mxu0
      %v468 = vadd.f32 0.0, %v467
      %v469 = vpop.f32.mrb[0].mxu0
      %470 = vdwg.mxu0
      %v472 = vlaneseq
      %v473 = vshrl.u32 %v472, 7
      %v474 = vsub.s32 0, %v473
      %v475 = vrot.slane %v300, %v474
      %v477 = vmul.f32 %v409, %v475
      %v478 = vmul.f32 %v412, %v475
      %v479 = vmul.f32 %v417, %v475
      %v480 = vmul.f32 %v420, %v475
      %v481 = vmul.f32 %v425, %v475
      %v482 = vmul.f32 %v428, %v475
      %v483 = vmul.f32 %v433, %v475
      %v484 = vmul.f32 %v436, %v475
      %v485 = vmul.f32 %v441, %v475
      %v486 = vmul.f32 %v444, %v475
      %v487 = vmul.f32 %v449, %v475
      %v488 = vmul.f32 %v452, %v475
      %v489 = vmul.f32 %v457, %v475
      %v490 = vmul.f32 %v460, %v475
      %v491 = vmul.f32 %v465, %v475
      %v492 = vmul.f32 %v468, %v475
      %v494 = vlaneseq
      %v495 = vshrl.u32 %v494, 7
      %v496 = vsub.s32 0, %v495
      %v497 = vrot.slane %v301, %v496
      %v499 = vadd.f32 %v477, %v497
      %v500 = vadd.f32 %v478, %v497
      %v501 = vadd.f32 %v479, %v497
      %v502 = vadd.f32 %v480, %v497
      %v503 = vadd.f32 %v481, %v497
      %v504 = vadd.f32 %v482, %v497
      %v505 = vadd.f32 %v483, %v497
      %v506 = vadd.f32 %v484, %v497
      %v507 = vadd.f32 %v485, %v497
      %v508 = vadd.f32 %v486, %v497
      %v509 = vadd.f32 %v487, %v497
      %v510 = vadd.f32 %v488, %v497
      %v511 = vadd.f32 %v489, %v497
      %v512 = vadd.f32 %v490, %v497
      %v513 = vadd.f32 %v491, %v497
      %v514 = vadd.f32 %v492, %v497
      %v515 = vmax.f32 %v499, 0.0
      %v516 = vmax.f32 %v500, 0.0
      %v517 = vmax.f32 %v501, 0.0
      %v518 = vmax.f32 %v502, 0.0
      %v519 = vmax.f32 %v503, 0.0
      %v520 = vmax.f32 %v504, 0.0
      %v521 = vmax.f32 %v505, 0.0
      %v522 = vmax.f32 %v506, 0.0
      %v523 = vmax.f32 %v507, 0.0
      %v524 = vmax.f32 %v508, 0.0
      %v525 = vmax.f32 %v509, 0.0
      %v526 = vmax.f32 %v510, 0.0
      %v527 = vmax.f32 %v511, 0.0
      %v528 = vmax.f32 %v512, 0.0
      %v529 = vmax.f32 %v513, 0.0
      %v530 = vmax.f32 %v514, 0.0
      %v531 = vpack.c.bf16 %v516, %v515
      %v532 = vpack.c.bf16 %v518, %v517
      %v533 = vpack.c.bf16 %v520, %v519
      %v534 = vpack.c.bf16 %v522, %v521
      %v535 = vpack.c.bf16 %v524, %v523
      %v536 = vpack.c.bf16 %v526, %v525
      %v537 = vpack.c.bf16 %v528, %v527
      %v538 = vpack.c.bf16 %v530, %v529
      %v539 = vld [vmem:[%s4] sm:$0xf]
      %v540 = vld [vmem:[%s4 + $0x4] sm:$0xf]
      %v541 = vld [vmem:[%s4 + $0x8] sm:$0xf]
      %v542 = vld [vmem:[%s4 + $0xc] sm:$0xf]
      %v543 = vld [vmem:[%s4 + $0x10] sm:$0xf]
      %v544 = vld [vmem:[%s4 + $0x14] sm:$0xf]
      %v545 = vld [vmem:[%s4 + $0x18] sm:$0xf]
      %v546 = vld [vmem:[%s4 + $0x1c] sm:$0xf]
      %v547 = vld [vmem:[%s4 + $0x20] sm:$0xf]
      %v548 = vld [vmem:[%s4 + $0x24] sm:$0xf]
      %v549 = vld [vmem:[%s4 + $0x28] sm:$0xf]
      %v550 = vld [vmem:[%s4 + $0x2c] sm:$0xf]
      %v551 = vld [vmem:[%s4 + $0x30] sm:$0xf]
      %v552 = vld [vmem:[%s4 + $0x34] sm:$0xf]
      %v553 = vld [vmem:[%s4 + $0x38] sm:$0xf]
      %v554 = vld [vmem:[%s4 + $0x3c] sm:$0xf]
      %v555 = vld [vmem:[%s5] sm:$0x1]
      %v556 = vld [vmem:[%s6] sm:$0x1]
      %v573 = vunpack.c.l.b16 %v539
      %v574 = vunpack.c.l.b16 %v540
      %v575 = vunpack.c.l.b16 %v541
      %v576 = vunpack.c.l.b16 %v542
      %v577 = vunpack.c.l.b16 %v543
      %v578 = vunpack.c.l.b16 %v544
      %v579 = vunpack.c.l.b16 %v545
      %v580 = vunpack.c.l.b16 %v546
      %v581 = vunpack.c.l.b16 %v547
      %v582 = vunpack.c.l.b16 %v548
      %v583 = vunpack.c.l.b16 %v549
      %v584 = vunpack.c.l.b16 %v550
      %v585 = vunpack.c.l.b16 %v551
      %v586 = vunpack.c.l.b16 %v552
      %v587 = vunpack.c.l.b16 %v553
      %v588 = vunpack.c.l.b16 %v554
      %v589 = vpack.c.b16 %v574, %v573
      %v590 = vpack.c.b16 %v576, %v575
      %v591 = vpack.c.b16 %v578, %v577
      %v592 = vpack.c.b16 %v580, %v579
      %v593 = vpack.c.b16 %v582, %v581
      %v594 = vpack.c.b16 %v584, %v583
      %v595 = vpack.c.b16 %v586, %v585
      %v596 = vpack.c.b16 %v588, %v587
      %605 = vmatprep.subr.bf16.mxu0 0
      %606 = vmatpush1.bf16.msra.mxu0 %v589
      %607 = vmatprep.subr.bf16.mxu0 0
      %608 = vmatpush1.bf16.msra.mxu0 %v590
      %609 = vmatprep.subr.bf16.mxu0 0
      %610 = vmatpush1.bf16.msra.mxu0 %v591
      %611 = vmatprep.subr.bf16.mxu0 0
      %612 = vmatpush1.bf16.msra.mxu0 %v592
      %613 = vmatprep.subr.bf16.mxu0 0
      %614 = vmatpush1.bf16.msra.mxu0 %v593
      %615 = vmatprep.subr.bf16.mxu0 0
      %616 = vmatpush1.bf16.msra.mxu0 %v594
      %617 = vmatprep.subr.bf16.mxu0 0
      %618 = vmatpush1.bf16.msra.mxu0 %v595
      %619 = vmatprep.subr.bf16.mxu0 0
      %620 = vmatpush1.bf16.msra.mxu0 %v596
      %621 = vmatprep.subr.bf16.mxu0 0
      %622 = vmatpush1.bf16.msra.mxu0 0
      %623 = vmatprep.subr.bf16.mxu0 0
      %624 = vmatpush1.bf16.msra.mxu0 0
      %625 = vmatprep.subr.bf16.mxu0 0
      %626 = vmatpush1.bf16.msra.mxu0 0
      %627 = vmatprep.subr.bf16.mxu0 0
      %628 = vmatpush1.bf16.msra.mxu0 0
      %629 = vmatprep.subr.bf16.mxu0 0
      %630 = vmatpush1.bf16.msra.mxu0 0
      %631 = vmatprep.subr.bf16.mxu0 0
      %632 = vmatpush1.bf16.msra.mxu0 0
      %633 = vmatprep.subr.bf16.mxu0 0
      %634 = vmatpush1.bf16.msra.mxu0 0
      %635 = vmatprep.subr.bf16.mxu0 0
      %636 = vmatpush1.bf16.msra.mxu0 0
      %637 = vmatprep.mubr.bf16.mxu0 0
      %638 = vmatmul.mubr.bf16.gmra.mrb[0].mxu0 %v531
      %v639 = vpop.f32.mrb[0].mxu0
      %v640 = vadd.f32 0.0, %v639
      %v641 = vpop.f32.mrb[0].mxu0
      %v642 = vpop.f32.mrb[0].mxu0
      %v643 = vadd.f32 0.0, %v642
      %v644 = vpop.f32.mrb[0].mxu0
      %645 = vmatprep.mubr.bf16.mxu0 0
      %646 = vmatmul.mubr.bf16.gmra.mrb[0].mxu0 %v532
      %v647 = vpop.f32.mrb[0].mxu0
      %v648 = vadd.f32 0.0, %v647
      %v649 = vpop.f32.mrb[0].mxu0
      %v650 = vpop.f32.mrb[0].mxu0
      %v651 = vadd.f32 0.0, %v650
      %v652 = vpop.f32.mrb[0].mxu0
      %653 = vmatprep.mubr.bf16.mxu0 0
      %654 = vmatmul.mubr.bf16.gmra.mrb[0].mxu0 %v533
      %v655 = vpop.f32.mrb[0].mxu0
      %v656 = vadd.f32 0.0, %v655
      %v657 = vpop.f32.mrb[0].mxu0
      %v658 = vpop.f32.mrb[0].mxu0
      %v659 = vadd.f32 0.0, %v658
      %v660 = vpop.f32.mrb[0].mxu0
      %661 = vmatprep.mubr.bf16.mxu0 0
      %662 = vmatmul.mubr.bf16.gmra.mrb[0].mxu0 %v534
      %v663 = vpop.f32.mrb[0].mxu0
      %v664 = vadd.f32 0.0, %v663
      %v665 = vpop.f32.mrb[0].mxu0
      %v666 = vpop.f32.mrb[0].mxu0
      %v667 = vadd.f32 0.0, %v666
      %v668 = vpop.f32.mrb[0].mxu0
      %669 = vmatprep.mubr.bf16.mxu0 0
      %670 = vmatmul.mubr.bf16.gmra.mrb[0].mxu0 %v535
      %v671 = vpop.f32.mrb[0].mxu0
      %v672 = vadd.f32 0.0, %v671
      %v673 = vpop.f32.mrb[0].mxu0
      %v674 = vpop.f32.mrb[0].mxu0
      %v675 = vadd.f32 0.0, %v674
      %v676 = vpop.f32.mrb[0].mxu0
      %677 = vmatprep.mubr.bf16.mxu0 0
      %678 = vmatmul.mubr.bf16.gmra.mrb[0].mxu0 %v536
      %v679 = vpop.f32.mrb[0].mxu0
      %v680 = vadd.f32 0.0, %v679
      %v681 = vpop.f32.mrb[0].mxu0
      %v682 = vpop.f32.mrb[0].mxu0
      %v683 = vadd.f32 0.0, %v682
      %v684 = vpop.f32.mrb[0].mxu0
      %685 = vmatprep.mubr.bf16.mxu0 0
      %686 = vmatmul.mubr.bf16.gmra.mrb[0].mxu0 %v537
      %v687 = vpop.f32.mrb[0].mxu0
      %v688 = vadd.f32 0.0, %v687
      %v689 = vpop.f32.mrb[0].mxu0
      %v690 = vpop.f32.mrb[0].mxu0
      %v691 = vadd.f32 0.0, %v690
      %v692 = vpop.f32.mrb[0].mxu0
      %693 = vmatprep.mubr.bf16.mxu0 0
      %694 = vmatmul.mubr.bf16.gmra.mrb[0].mxu0 %v538
      %v695 = vpop.f32.mrb[0].mxu0
      %v696 = vadd.f32 0.0, %v695
      %v697 = vpop.f32.mrb[0].mxu0
      %v698 = vpop.f32.mrb[0].mxu0
      %v699 = vadd.f32 0.0, %v698
      %v700 = vpop.f32.mrb[0].mxu0
      %701 = vdwg.mxu0
      %v703 = vlaneseq
      %v704 = vshrl.u32 %v703, 7
      %v705 = vsub.s32 0, %v704
      %v706 = vrot.slane %v555, %v705
      %v708 = vmul.f32 %v640, %v706
      %v709 = vmul.f32 %v643, %v706
      %v710 = vmul.f32 %v648, %v706
      %v711 = vmul.f32 %v651, %v706
      %v712 = vmul.f32 %v656, %v706
      %v713 = vmul.f32 %v659, %v706
      %v714 = vmul.f32 %v664, %v706
      %v715 = vmul.f32 %v667, %v706
      %v716 = vmul.f32 %v672, %v706
      %v717 = vmul.f32 %v675, %v706
      %v718 = vmul.f32 %v680, %v706
      %v719 = vmul.f32 %v683, %v706
      %v720 = vmul.f32 %v688, %v706
      %v721 = vmul.f32 %v691, %v706
      %v722 = vmul.f32 %v696, %v706
      %v723 = vmul.f32 %v699, %v706
      %v725 = vlaneseq
      %v726 = vshrl.u32 %v725, 7
      %v727 = vsub.s32 0, %v726
      %v728 = vrot.slane %v556, %v727
      %v730 = vadd.f32 %v708, %v728
      %v731 = vadd.f32 %v709, %v728
      %v732 = vadd.f32 %v710, %v728
      %v733 = vadd.f32 %v711, %v728
      %v734 = vadd.f32 %v712, %v728
      %v735 = vadd.f32 %v713, %v728
      %v736 = vadd.f32 %v714, %v728
      %v737 = vadd.f32 %v715, %v728
      %v738 = vadd.f32 %v716, %v728
      %v739 = vadd.f32 %v717, %v728
      %v740 = vadd.f32 %v718, %v728
      %v741 = vadd.f32 %v719, %v728
      %v742 = vadd.f32 %v720, %v728
      %v743 = vadd.f32 %v721, %v728
      %v744 = vadd.f32 %v722, %v728
      %v745 = vadd.f32 %v723, %v728
      %v746 = vmax.f32 %v730, 0.0
      %v747 = vmax.f32 %v731, 0.0
      %v748 = vmax.f32 %v732, 0.0
      %v749 = vmax.f32 %v733, 0.0
      %v750 = vmax.f32 %v734, 0.0
      %v751 = vmax.f32 %v735, 0.0
      %v752 = vmax.f32 %v736, 0.0
      %v753 = vmax.f32 %v737, 0.0
      %v754 = vmax.f32 %v738, 0.0
      %v755 = vmax.f32 %v739, 0.0
      %v756 = vmax.f32 %v740, 0.0
      %v757 = vmax.f32 %v741, 0.0
      %v758 = vmax.f32 %v742, 0.0
      %v759 = vmax.f32 %v743, 0.0
      %v760 = vmax.f32 %v744, 0.0
      %v761 = vmax.f32 %v745, 0.0
      %v762 = vrot.slane %v746, 4
      %v763 = vmax.f32 %v746, %v762
      %v764 = vrot.slane %v763, 2
      %v765 = vmax.f32 %v763, %v764
      %v766 = vrot.slane %v765, 1
      %v767 = vmax.f32 %v765, %v766
      %v768 = vrot.slane %v747, 4
      %v769 = vmax.f32 %v747, %v768
      %v770 = vrot.slane %v769, 2
      %v771 = vmax.f32 %v769, %v770
      %v772 = vrot.slane %v771, 1
      %v773 = vmax.f32 %v771, %v772
      %v774 = vrot.slane %v748, 4
      %v775 = vmax.f32 %v748, %v774
      %v776 = vrot.slane %v775, 2
      %v777 = vmax.f32 %v775, %v776
      %v778 = vrot.slane %v777, 1
      %v779 = vmax.f32 %v777, %v778
      %v780 = vrot.slane %v749, 4
      %v781 = vmax.f32 %v749, %v780
      %v782 = vrot.slane %v781, 2
      %v783 = vmax.f32 %v781, %v782
      %v784 = vrot.slane %v783, 1
      %v785 = vmax.f32 %v783, %v784
      %v786 = vrot.slane %v750, 4
      %v787 = vmax.f32 %v750, %v786
      %v788 = vrot.slane %v787, 2
      %v789 = vmax.f32 %v787, %v788
      %v790 = vrot.slane %v789, 1
      %v791 = vmax.f32 %v789, %v790
      %v792 = vrot.slane %v751, 4
      %v793 = vmax.f32 %v751, %v792
      %v794 = vrot.slane %v793, 2
      %v795 = vmax.f32 %v793, %v794
      %v796 = vrot.slane %v795, 1
      %v797 = vmax.f32 %v795, %v796
      %v798 = vrot.slane %v752, 4
      %v799 = vmax.f32 %v752, %v798
      %v800 = vrot.slane %v799, 2
      %v801 = vmax.f32 %v799, %v800
      %v802 = vrot.slane %v801, 1
      %v803 = vmax.f32 %v801, %v802
      %v804 = vrot.slane %v753, 4
      %v805 = vmax.f32 %v753, %v804
      %v806 = vrot.slane %v805, 2
      %v807 = vmax.f32 %v805, %v806
      %v808 = vrot.slane %v807, 1
      %v809 = vmax.f32 %v807, %v808
      %v810 = vrot.slane %v754, 4
      %v811 = vmax.f32 %v754, %v810
      %v812 = vrot.slane %v811, 2
      %v813 = vmax.f32 %v811, %v812
      %v814 = vrot.slane %v813, 1
      %v815 = vmax.f32 %v813, %v814
      %v816 = vrot.slane %v755, 4
      %v817 = vmax.f32 %v755, %v816
      %v818 = vrot.slane %v817, 2
      %v819 = vmax.f32 %v817, %v818
      %v820 = vrot.slane %v819, 1
      %v821 = vmax.f32 %v819, %v820
      %v822 = vrot.slane %v756, 4
      %v823 = vmax.f32 %v756, %v822
      %v824 = vrot.slane %v823, 2
      %v825 = vmax.f32 %v823, %v824
      %v826 = vrot.slane %v825, 1
      %v827 = vmax.f32 %v825, %v826
      %v828 = vrot.slane %v757, 4
      %v829 = vmax.f32 %v757, %v828
      %v830 = vrot.slane %v829, 2
      %v831 = vmax.f32 %v829, %v830
      %v832 = vrot.slane %v831, 1
      %v833 = vmax.f32 %v831, %v832
      %v834 = vrot.slane %v758, 4
      %v835 = vmax.f32 %v758, %v834
      %v836 = vrot.slane %v835, 2
      %v837 = vmax.f32 %v835, %v836
      %v838 = vrot.slane %v837, 1
      %v839 = vmax.f32 %v837, %v838
      %v840 = vrot.slane %v759, 4
      %v841 = vmax.f32 %v759, %v840
      %v842 = vrot.slane %v841, 2
      %v843 = vmax.f32 %v841, %v842
      %v844 = vrot.slane %v843, 1
      %v845 = vmax.f32 %v843, %v844
      %v846 = vrot.slane %v760, 4
      %v847 = vmax.f32 %v760, %v846
      %v848 = vrot.slane %v847, 2
      %v849 = vmax.f32 %v847, %v848
      %v850 = vrot.slane %v849, 1
      %v851 = vmax.f32 %v849, %v850
      %v852 = vrot.slane %v761, 4
      %v853 = vmax.f32 %v761, %v852
      %v854 = vrot.slane %v853, 2
      %v855 = vmax.f32 %v853, %v854
      %v856 = vrot.slane %v855, 1
      %v857 = vmax.f32 %v855, %v856
      %v858 = vpack.c.bf16 %v767, %v767
      %v859 = vpack.c.bf16 %v773, %v773
      %v860 = vpack.c.bf16 %v779, %v779
      %v861 = vpack.c.bf16 %v785, %v785
      %v862 = vpack.c.bf16 %v791, %v791
      %v863 = vpack.c.bf16 %v797, %v797
      %v864 = vpack.c.bf16 %v803, %v803
      %v865 = vpack.c.bf16 %v809, %v809
      %v866 = vpack.c.bf16 %v815, %v815
      %v867 = vpack.c.bf16 %v821, %v821
      %v868 = vpack.c.bf16 %v827, %v827
      %v869 = vpack.c.bf16 %v833, %v833
      %v870 = vpack.c.bf16 %v839, %v839
      %v871 = vpack.c.bf16 %v845, %v845
      %v872 = vpack.c.bf16 %v851, %v851
      %v873 = vpack.c.bf16 %v857, %v857
      %v890 = vunpack.c.l.b16 %v858
      %v891 = vunpack.c.l.b16 %v859
      %v892 = vunpack.c.l.b16 %v860
      %v893 = vunpack.c.l.b16 %v861
      %v894 = vunpack.c.l.b16 %v862
      %v895 = vunpack.c.l.b16 %v863
      %v896 = vunpack.c.l.b16 %v864
      %v897 = vunpack.c.l.b16 %v865
      %v898 = vunpack.c.l.b16 %v866
      %v899 = vunpack.c.l.b16 %v867
      %v900 = vunpack.c.l.b16 %v868
      %v901 = vunpack.c.l.b16 %v869
      %v902 = vunpack.c.l.b16 %v870
      %v903 = vunpack.c.l.b16 %v871
      %v904 = vunpack.c.l.b16 %v872
      %v905 = vunpack.c.l.b16 %v873
      %v906 = vpack.c.b16 %v890, %v890
      %v907 = vpack.c.b16 %v891, %v891
      %v908 = vpack.c.b16 %v892, %v892
      %v909 = vpack.c.b16 %v893, %v893
      %v910 = vpack.c.b16 %v894, %v894
      %v911 = vpack.c.b16 %v895, %v895
      %v912 = vpack.c.b16 %v896, %v896
      %v913 = vpack.c.b16 %v897, %v897
      %v914 = vpack.c.b16 %v898, %v898
      %v915 = vpack.c.b16 %v899, %v899
      %v916 = vpack.c.b16 %v900, %v900
      %v917 = vpack.c.b16 %v901, %v901
      %v918 = vpack.c.b16 %v902, %v902
      %v919 = vpack.c.b16 %v903, %v903
      %v920 = vpack.c.b16 %v904, %v904
      %v921 = vpack.c.b16 %v905, %v905
      %v922 = vunpack.c.l.b16 %v906
      %v923 = vunpack.c.l.b16 %v907
      %v924 = vunpack.c.l.b16 %v908
      %v925 = vunpack.c.l.b16 %v909
      %v926 = vunpack.c.l.b16 %v910
      %v927 = vunpack.c.l.b16 %v911
      %v928 = vunpack.c.l.b16 %v912
      %v929 = vunpack.c.l.b16 %v913
      %v930 = vunpack.c.l.b16 %v914
      %v931 = vunpack.c.l.b16 %v915
      %v932 = vunpack.c.l.b16 %v916
      %v933 = vunpack.c.l.b16 %v917
      %v934 = vunpack.c.l.b16 %v918
      %v935 = vunpack.c.l.b16 %v919
      %v936 = vunpack.c.l.b16 %v920
      %v937 = vunpack.c.l.b16 %v921
      %vm938 = vcmask 1041409
      %v939 = vsel %vm938, %v923, %v922
      %vm940 = vcmask 1042434
      %v941 = vsel %vm940, %v924, %v939
      %vm942 = vcmask 1043459
      %v943 = vsel %vm942, %v925, %v941
      %vm944 = vcmask 1044484
      %v945 = vsel %vm944, %v926, %v943
      %vm946 = vcmask 1045509
      %v947 = vsel %vm946, %v927, %v945
      %vm948 = vcmask 1046534
      %v949 = vsel %vm948, %v928, %v947
      %vm950 = vcmask 1047559
      %v951 = vsel %vm950, %v929, %v949
      %v952 = vsel %vm938, %v931, %v930
      %v953 = vsel %vm940, %v932, %v952
      %v954 = vsel %vm942, %v933, %v953
      %v955 = vsel %vm944, %v934, %v954
      %v956 = vsel %vm946, %v935, %v955
      %v957 = vsel %vm948, %v936, %v956
      %v958 = vsel %vm950, %v937, %v957
      %v959 = vpack.c.b16 %v951, %v951
      %v960 = vpack.c.b16 %v958, %v958
      %963 = vst [vmem:[%s280] sm:$0xf] %v959
      %964 = vst [vmem:[%s280 + $0x4] sm:$0xf] %v960
      %s965 = smul.u32 2, %s18
      %p966 = scmp.lt.s32.totalorder %s965, 3
      %s967 = scalar_select %p966, %s965, 3
      %s968 = smul.addr %s967, 4
      %s969 = scalar_lea.vmem %s7, %s968
      // Predicated region
      $region49: #{sa_module_forward.8} parent=47 // pred_check
        %p970 = pneg %p188
      $region50: #{sa_module_forward.8} parent=47 // pred_check_branch
        %972 = sbr.rel (%p970) target = $region52
      $region51: #{sa_module_forward.8} parent=47 // pred_region
        %s973 = smul.u32 2, %s18
      $region52: #{sa_module_forward.8} parent=47 // pred_fallthru
        _
    $region48: #{sa_module_forward.8} parent=5 // pred_fallthru
      _
    %p974 = scmp.le.s32.totalorder 2, %s13
    // Predicated region
    $region53: #{sa_module_forward.8} parent=5 // pred_check
      %p975 = pneg %p974
    $region54: #{sa_module_forward.8} parent=5 // pred_check_branch
      %977 = sbr.rel (%p975) target = $region56
    $region55: #{sa_module_forward.8} parent=5 // pred_region
      %s978 = ssub.s32 %s13, 2
      // Predicated region
      $region57: #{sa_module_forward.8} parent=55 // pred_check
        %p979 = pneg %p194
      $region58: #{sa_module_forward.8} parent=55 // pred_check_branch
        %981 = sbr.rel (%p979) target = $region60
      $region59: #{sa_module_forward.8} parent=55 // pred_region
        %s982 = smul.u32 2, %s19
        %p983 = scmp.lt.s32.totalorder %s982, 3
        %s984 = scalar_select %p983, %s982, 3
        %s985 = smul.addr %s984, 4
        %s986 = scalar_lea.vmem %s7, %s985
      $region60: #{sa_module_forward.8} parent=55 // pred_fallthru
        _
    $region56: #{sa_module_forward.8} parent=5 // pred_fallthru
      _
  $region6: #{sa_module_forward.8} parent=0 // loop_footer
    %s17 = sadd.s32 1, %s13
  $region7: #{sa_module_forward.8} parent=0 // loop_footer_branch
    %12 = sbr.rel target = $region3
  $region8: #{sa_module_forward.8} parent=0 // loop_exit
    _

// kernel: sa_module_forward.9
$region0: #{sa_module_forward.9}
  #allocation0 [shape = 'u32[]', space=smem, size = 0x4, offset = 0x4, fixed_abs, tag = 'smem constant byte address 0x4 - core index']
  #allocation1 [shape = 'u32[144,128]{1,0:T(1,128)}', space=vmem, size = 0x12000, scoped, tag = 'internal scratch']
  %s0 = inlined_call_operand.vmem [shape: f32[2,3,64], index: 0, kind: input, shape index: {}]
  %s1 = inlined_call_operand.vmem [shape: f32[2,16,3], index: 1, kind: input, shape index: {}]
  %s2 = inlined_call_operand.vmem [shape: s32[2,16,16], index: 2, kind: output, shape index: {}]
  %s3 = sld [smem:[#allocation0]]
  $region41: #{sa_module_forward.9} parent=0
    _
  %s5 = ssub.s32 1, %s3
  %s6 = scalar_select 0, %s5, %s3
  loop: start=0, step=1, limit=6
  $region2: #{sa_module_forward.9} parent=0 // loop_pre_header
    _
  $region3: #{sa_module_forward.9} parent=0 // loop_header
    %s8 = sphi 0, %s12
    %p9 = scmp.ge.s32.totalorder %s8, 6
    %s15 = sphi 0, %s27
    %s16 = sphi 0, %s23
    %s17 = sphi 0, %s15
    %s18 = sphi 0, %s16
    %s19 = sphi 0, %s17
    %s20 = sphi 0, %s18
    %s30 = sphi 0, %s32
    %s33 = sphi 0, %s30
    %s34 = sphi 0, %s33
    %s50 = sphi 0, %s34
    %s58 = sphi 0, %s60
    %s61 = sphi 0, %s58
    %s62 = sphi 0, %s61
    %s78 = sphi 0, %s62
    %s86 = sphi 0, %s88
    %s89 = sphi 0, %s86
    %s90 = sphi 0, %s89
    %s106 = sphi 0, %s90
  $region4: #{sa_module_forward.9} parent=0 // loop_header_branch
    %11 = sbr.rel (%p9) target = $region8
  $region5: #{sa_module_forward.9} parent=0 // loop_body
    %s13 = ssub.s32 %s8, 1
    %s14 = ssub.s32 %s8, 2
    %s21 = sadd.s32 1, %s16
    %p22 = scmp.ge.s32.totalorder %s21, 2
    %s23 = scalar_select %p22, 0, %s21
    %s24 = sadd.s32 1, %s15
    %s25 = scalar_select %p22, %s24, %s15
    %p26 = scmp.ge.s32.totalorder %s25, 2
    %s27 = scalar_select %p26, 0, %s25
    %s28 = ssub.s32 %s15, %s27
    %p29 = scmp.eq.s32.totalorder %s28, 0
    %s31 = sadd.s32 %s30, 1
    %s32 = scalar_select %p29, %s30, %s31
    %p35 = pneg %p29
    %p36 = scmp.eq.s32.totalorder %s8, 3
    %p37 = por %p35, %p36
    %p38 = scmp.ne.s32.totalorder %s30, %s33
    %p39 = scmp.eq.s32.totalorder %s8, 0
    %p40 = por %p38, %p39
    %p41 = scmp.ne.s32.totalorder %s30, %s33
    %p42 = scmp.eq.s32.totalorder %s13, 3
    %p43 = por %p41, %p42
    %p44 = scmp.ne.s32.totalorder %s33, %s34
    %p45 = scmp.eq.s32.totalorder %s13, 0
    %p46 = por %p44, %p45
    %p47 = scmp.ne.s32.totalorder %s33, %s34
    %p48 = scmp.eq.s32.totalorder %s14, 3
    %p49 = por %p47, %p48
    %p51 = scmp.ne.s32.totalorder %s34, %s50
    %p52 = scmp.eq.s32.totalorder %s14, 0
    %p53 = por %p51, %p52
    %s54 = ssub.s32 %s15, %s27
    %s55 = ssub.s32 %s16, %s23
    %s56 = sor.u32 %s54, %s55
    %p57 = scmp.eq.s32.totalorder %s56, 0
    %s59 = sadd.s32 %s58, 1
    %s60 = scalar_select %p57, %s58, %s59
    %p63 = pneg %p57
    %p64 = scmp.eq.s32.totalorder %s8, 3
    %p65 = por %p63, %p64
    %p66 = scmp.ne.s32.totalorder %s58, %s61
    %p67 = scmp.eq.s32.totalorder %s8, 0
    %p68 = por %p66, %p67
    %p69 = scmp.ne.s32.totalorder %s58, %s61
    %p70 = scmp.eq.s32.totalorder %s13, 3
    %p71 = por %p69, %p70
    %p72 = scmp.ne.s32.totalorder %s61, %s62
    %p73 = scmp.eq.s32.totalorder %s13, 0
    %p74 = por %p72, %p73
    %p75 = scmp.ne.s32.totalorder %s61, %s62
    %p76 = scmp.eq.s32.totalorder %s14, 3
    %p77 = por %p75, %p76
    %p79 = scmp.ne.s32.totalorder %s62, %s78
    %p80 = scmp.eq.s32.totalorder %s14, 0
    %p81 = por %p79, %p80
    %s82 = ssub.s32 %s15, %s27
    %s83 = ssub.s32 %s16, %s23
    %s84 = sor.u32 %s82, %s83
    %p85 = scmp.eq.s32.totalorder %s84, 0
    %s87 = sadd.s32 %s86, 1
    %s88 = scalar_select %p85, %s86, %s87
    %p91 = pneg %p85
    %p92 = scmp.eq.s32.totalorder %s8, 3
    %p93 = por %p91, %p92
    %p94 = scmp.ne.s32.totalorder %s86, %s89
    %p95 = scmp.eq.s32.totalorder %s8, 0
    %p96 = por %p94, %p95
    %p97 = scmp.ne.s32.totalorder %s86, %s89
    %p98 = scmp.eq.s32.totalorder %s13, 3
    %p99 = por %p97, %p98
    %p100 = scmp.ne.s32.totalorder %s89, %s90
    %p101 = scmp.eq.s32.totalorder %s13, 0
    %p102 = por %p100, %p101
    %p103 = scmp.ne.s32.totalorder %s89, %s90
    %p104 = scmp.eq.s32.totalorder %s14, 3
    %p105 = por %p103, %p104
    %p107 = scmp.ne.s32.totalorder %s90, %s106
    %p108 = scmp.eq.s32.totalorder %s14, 0
    %p109 = por %p107, %p108
    %p110 = scmp.le.s32.totalorder 1, %s8
    %p111 = scmp.lt.s32.totalorder %s8, 5
    %p112 = pnand %p110, %p111
    %p113 = pneg %p112
    // Predicated region
    $region9: #{sa_module_forward.9} parent=5 // pred_check
      _
    $region10: #{sa_module_forward.9} parent=5 // pred_check_branch
      %115 = sbr.rel (%p112) target = $region12
    $region11: #{sa_module_forward.9} parent=5 // pred_region
      %s116 = ssub.s32 %s8, 1
    $region12: #{sa_module_forward.9} parent=5 // pred_fallthru
      _
    %p117 = scmp.lt.s32.totalorder %s8, 4
    // Predicated region
    $region13: #{sa_module_forward.9} parent=5 // pred_check
      %p118 = pneg %p117
    $region14: #{sa_module_forward.9} parent=5 // pred_check_branch
      %120 = sbr.rel (%p118) target = $region16
    $region15: #{sa_module_forward.9} parent=5 // pred_region
      // Predicated region
      $region17: #{sa_module_forward.9} parent=15 // pred_check
        %p121 = pneg %p40
      $region18: #{sa_module_forward.9} parent=15 // pred_check_branch
        %123 = sbr.rel (%p121) target = $region20
      $region19: #{sa_module_forward.9} parent=15 // pred_region
        %p124 = scmp.lt.s32.totalorder %s15, 1
        %s125 = scalar_select %p124, %s15, 1
        %s126 = smul.addr %s125, 4
        %s127 = scalar_lea.vmem %s0, %s126
      $region20: #{sa_module_forward.9} parent=15 // pred_fallthru
        _
      // Predicated region
      $region21: #{sa_module_forward.9} parent=15 // pred_check
        %p128 = pneg %p68
      $region22: #{sa_module_forward.9} parent=15 // pred_check_branch
        %130 = sbr.rel (%p128) target = $region24
      $region23: #{sa_module_forward.9} parent=15 // pred_region
        %p131 = scmp.lt.s32.totalorder %s15, 1
        %s132 = scalar_select %p131, %s15, 1
        %p133 = scmp.lt.s32.totalorder %s16, 1
        %s134 = scalar_select %p133, %s16, 1
        %s135 = smul.addr %s132, 2
        %s136 = sadd.s32 %s134, %s135
        %s137 = smul.addr %s136, 8
        %s138 = scalar_lea.vmem %s1, %s137
      $region24: #{sa_module_forward.9} parent=15 // pred_fallthru
        _
    $region16: #{sa_module_forward.9} parent=5 // pred_fallthru
      _
    %p139 = scmp.le.s32.totalorder 1, %s8
    %p140 = scmp.lt.s32.totalorder %s8, 5
    %p141 = pnand %p139, %p140
    %p142 = pneg %p141
    // Predicated region
    $region25: #{sa_module_forward.9} parent=5 // pred_check
      _
    $region26: #{sa_module_forward.9} parent=5 // pred_check_branch
      %144 = sbr.rel (%p141) target = $region28
    $region27: #{sa_module_forward.9} parent=5 // pred_region
      %s145 = ssub.s32 %s8, 1
      %p146 = scmp.lt.s32.totalorder %s17, 1
      %s147 = scalar_select %p146, %s17, 1
      %s148 = smul.addr %s147, 4
      %s149 = scalar_lea.vmem %s0, %s148
      %p150 = pneg %p46
      %p151 = pneg %p43
      %p152 = scmp.lt.s32.totalorder %s17, 1
      %s153 = scalar_select %p152, %s17, 1
      %p154 = scmp.lt.s32.totalorder %s18, 1
      %s155 = scalar_select %p154, %s18, 1
      %s156 = smul.addr %s153, 2
      %s157 = sadd.s32 %s155, %s156
      %s158 = smul.addr %s157, 8
      %s159 = scalar_lea.vmem %s1, %s158
      %p160 = pneg %p74
      %p161 = pneg %p71
      %p162 = pneg %p102
      %p163 = pneg %p99
      %p164 = scmp.lt.s32.totalorder %s17, 1
      %s165 = scalar_select %p164, %s17, 1
      %p166 = scmp.lt.s32.totalorder %s18, 1
      %s167 = scalar_select %p166, %s18, 1
      %s168 = smul.addr %s165, 2
      %s169 = sadd.s32 %s167, %s168
      %s170 = smul.addr %s169, 8
      %s171 = scalar_lea.vmem %s2, %s170
      %p172 = scmp.lt.s32.totalorder %s17, 1
      %s173 = scalar_select %p172, %s17, 1
      %s174 = smul.addr %s173, 4
      %s175 = scalar_lea.vmem %s0, %s174
      %p176 = scmp.lt.s32.totalorder %s17, 1
      %s177 = scalar_select %p176, %s17, 1
      %p178 = scmp.lt.s32.totalorder %s18, 1
      %s179 = scalar_select %p178, %s18, 1
      %s180 = smul.addr %s177, 2
      %s181 = sadd.s32 %s179, %s180
      %s182 = smul.addr %s181, 8
      %s183 = scalar_lea.vmem %s1, %s182
      %p184 = scmp.lt.s32.totalorder %s17, 1
      %s185 = scalar_select %p184, %s17, 1
      %p186 = scmp.lt.s32.totalorder %s18, 1
      %s187 = scalar_select %p186, %s18, 1
      %s188 = smul.addr %s185, 2
      %s189 = sadd.s32 %s187, %s188
      %s190 = smul.addr %s189, 8
      %s191 = scalar_lea.vmem %s2, %s190
      %v192 = vld [vmem:[%s175] sm:$0x7]
      %v193 = vld [vmem:[%s183] sm:$0xff]
      %v194 = vmul.f32 %v192, %v192
      %v196 = vrot.slane %v194, 1
      %v198 = vadd.f32 %v194, %v196
      %v199 = vrot.slane %v194, 2
      %v201 = vadd.f32 %v198, %v199
      %v202 = vmul.f32 %v193, %v193
      %204 = vrot.lane.b32.xlu0 %v202, 127
      %v205 = vpop.permute.xlu0 %204
      %v207 = vadd.f32 %v202, %v205
      %208 = vrot.lane.b32.xlu0 %v202, 126
      %v209 = vpop.permute.xlu0 %208
      %v211 = vadd.f32 %v207, %v209
      %vm212 = vcmask 23552
      %v214 = vsel %vm212, %v193, 0
      %vm216 = vcmask 1042432
      %v218 = vsel %vm216, %v192, 0
      %220 = vmatprep.subr.mxu0 0.0
      %221 = vmatpush1.msra.mxu0 %v218
      %222 = vmatprep.subr.mxu0 0.0
      %223 = vmatpush1.msra.mxu0 0.0
      %224 = vmatprep.subr.mxu0 0.0
      %225 = vmatpush1.msra.mxu0 0.0
      %226 = vmatprep.subr.mxu0 0.0
      %227 = vmatpush1.msra.mxu0 0.0
      %228 = vmatprep.subr.mxu0 0.0
      %229 = vmatpush1.msra.mxu0 0.0
      %230 = vmatprep.subr.mxu0 0.0
      %231 = vmatpush1.msra.mxu0 0.0
      %232 = vmatprep.subr.mxu0 0.0
      %233 = vmatpush1.msra.mxu0 0.0
      %234 = vmatprep.subr.mxu0 0.0
      %235 = vmatpush1.msra.mxu0 0.0
      %236 = vmatprep.subr.mxu0 0.0
      %237 = vmatpush1.msra.mxu0 0.0
      %238 = vmatprep.subr.mxu0 0.0
      %239 = vmatpush1.msra.mxu0 0.0
      %240 = vmatprep.subr.mxu0 0.0
      %241 = vmatpush1.msra.mxu0 0.0
      %242 = vmatprep.subr.mxu0 0.0
      %243 = vmatpush1.msra.mxu0 0.0
      %244 = vmatprep.subr.mxu0 0.0
      %245 = vmatpush1.msra.mxu0 0.0
      %246 = vmatprep.subr.mxu0 0.0
      %247 = vmatpush1.msra.mxu0 0.0
      %248 = vmatprep.subr.mxu0 0.0
      %249 = vmatpush1.msra.mxu0 0.0
      %250 = vmatprep.subr.mxu0 0.0
      %251 = vmatpush1.msra.mxu0 0.0
      %252 = vmatprep.subr.mxu0 0.0
      %253 = vmatpush1.msra.mxu0 0.0
      %254 = vmatprep.subr.mxu0 0.0
      %255 = vmatpush1.msra.mxu0 0.0
      %256 = vmatprep.subr.mxu0 0.0
      %257 = vmatpush1.msra.mxu0 0.0
      %258 = vmatprep.subr.mxu0 0.0
      %259 = vmatpush1.msra.mxu0 0.0
      %260 = vmatprep.subr.mxu0 0.0
      %261 = vmatpush1.msra.mxu0 0.0
      %262 = vmatprep.subr.mxu0 0.0
      %263 = vmatpush1.msra.mxu0 0.0
      %264 = vmatprep.subr.mxu0 0.0
      %265 = vmatpush1.msra.mxu0 0.0
      %266 = vmatprep.subr.mxu0 0.0
      %267 = vmatpush1.msra.mxu0 0.0
      %268 = vmatprep.subr.mxu0 0.0
      %269 = vmatpush1.msra.mxu0 0.0
      %270 = vmatprep.subr.mxu0 0.0
      %271 = vmatpush1.msra.mxu0 0.0
      %272 = vmatprep.subr.mxu0 0.0
      %273 = vmatpush1.msra.mxu0 0.0
      %274 = vmatprep.subr.mxu0 0.0
      %275 = vmatpush1.msra.mxu0 0.0
      %276 = vmatprep.subr.mxu0 0.0
      %277 = vmatpush1.msra.mxu0 0.0
      %278 = vmatprep.subr.mxu0 0.0
      %279 = vmatpush1.msra.mxu0 0.0
      %280 = vmatprep.subr.mxu0 0.0
      %281 = vmatpush1.msra.mxu0 0.0
      %282 = vmatprep.subr.mxu0 0.0
      %283 = vmatpush1.msra.mxu0 0.0
      %284 = vmatprep.mubr.f32.mxu0 0.0
      %285 = vmatmul.mubr.f32.gmra.mrb[0].mxu0 %v214
      %v286 = vpop.f32.mrb[0].mxu0
      %v287 = vadd.f32 0.0, %v286
      %v288 = vpop.f32.mrb[0].mxu0
      %289 = vdwg.mxu0
      %291 = vset.pattern.permute.xlu0 0
      %292 = vperm.xlu0 %291, %v211
      %v293 = vpop.permute.xlu0 %292
      %v295 = vlaneseq
      %v296 = vshrl.u32 %v295, 7
      %v297 = vsub.s32 0, %v296
      %v298 = vrot.slane %v201, %v297
      %v299 = vadd.f32 %v293, %v298
      %v300 = vmul.f32 %v287, 2.0
      %v301 = vsub.f32 %v299, %v300
      %v302 = vlaneseq
      %v303 = vand.u32 %v302, 127
      %vm304 = vcmp.lt.f32.partialorder %v301, 0.64
      %v305 = vadd.s32 %v303, 64
      %v306 = vsel %vm304, %v303, %v305
      %vm307 = vcmask 523264
      %v308 = vsel %vm307, %v306, 2147483647
      %v309 = vand.u32 %v308, 65535
      %v310 = vshra.s32 %v308, 16
      %v311 = vcvt.s32.f32 %v309
      %v312 = vcvt.s32.f32 %v310
      %313 = vmin.xlane.f32.xlu0 %v312
      %v314 = vpop.xlane.xlu0 %313
      %vm315 = vcmp.eq.f32.partialorder %v312, %v314
      %v316 = vsel %vm315, %v311, inf
      %317 = vmin.xlane.f32.xlu0 %v316
      %v318 = vpop.xlane.xlu0 %317
      %v319 = vcvt.f32.s32 %v318
      %v320 = vcvt.f32.s32 %v314
      %v321 = vshll.u32 %v320, 16
      %v322 = vadd.s32 %v321, %v319
      %vm323 = vcmp.eq.s32.totalorder %v306, %v322
      %v324 = vsel %vm323, 128, %v306
      %v325 = vsel %vm307, %v324, 2147483647
      %v326 = vand.u32 %v325, 65535
      %v327 = vshra.s32 %v325, 16
      %v328 = vcvt.s32.f32 %v326
      %v329 = vcvt.s32.f32 %v327
      %330 = vmin.xlane.f32.xlu0 %v329
      %v331 = vpop.xlane.xlu0 %330
      %vm332 = vcmp.eq.f32.partialorder %v329, %v331
      %v333 = vsel %vm332, %v328, inf
      %334 = vmin.xlane.f32.xlu0 %v333
      %v335 = vpop.xlane.xlu0 %334
      %v336 = vcvt.f32.s32 %v335
      %v337 = vcvt.f32.s32 %v331
      %v338 = vshll.u32 %v337, 16
      %v339 = vadd.s32 %v338, %v336
      %vm340 = vcmp.eq.s32.totalorder %v324, %v339
      %v341 = vsel %vm340, 128, %v324
      %v342 = vsel %vm307, %v341, 2147483647
      %v343 = vand.u32 %v342, 65535
      %v344 = vshra.s32 %v342, 16
      %v345 = vcvt.s32.f32 %v343
      %v346 = vcvt.s32.f32 %v344
      %347 = vmin.xlane.f32.xlu0 %v346
      %v348 = vpop.xlane.xlu0 %347
      %vm349 = vcmp.eq.f32.partialorder %v346, %v348
      %v350 = vsel %vm349, %v345, inf
      %351 = vmin.xlane.f32.xlu0 %v350
      %v352 = vpop.xlane.xlu0 %351
      %v353 = vcvt.f32.s32 %v352
      %v354 = vcvt.f32.s32 %v348
      %v355 = vshll.u32 %v354, 16
      %v356 = vadd.s32 %v355, %v353
      %vm357 = vcmp.eq.s32.totalorder %v341, %v356
      %v358 = vsel %vm357, 128, %v341
      %v359 = vsel %vm307, %v358, 2147483647
      %v360 = vand.u32 %v359, 65535
      %v361 = vshra.s32 %v359, 16
      %v362 = vcvt.s32.f32 %v360
      %v363 = vcvt.s32.f32 %v361
      %364 = vmin.xlane.f32.xlu0 %v363
      %v365 = vpop.xlane.xlu0 %364
      %vm366 = vcmp.eq.f32.partialorder %v363, %v365
      %v367 = vsel %vm366, %v362, inf
      %368 = vmin.xlane.f32.xlu0 %v367
      %v369 = vpop.xlane.xlu0 %368
      %v370 = vcvt.f32.s32 %v369
      %v371 = vcvt.f32.s32 %v365
      %v372 = vshll.u32 %v371, 16
      %v373 = vadd.s32 %v372, %v370
      %vm374 = vcmp.eq.s32.totalorder %v358, %v373
      %v375 = vsel %vm374, 128, %v358
      %v376 = vsel %vm307, %v375, 2147483647
      %v377 = vand.u32 %v376, 65535
      %v378 = vshra.s32 %v376, 16
      %v379 = vcvt.s32.f32 %v377
      %v380 = vcvt.s32.f32 %v378
      %381 = vmin.xlane.f32.xlu0 %v380
      %v382 = vpop.xlane.xlu0 %381
      %vm383 = vcmp.eq.f32.partialorder %v380, %v382
      %v384 = vsel %vm383, %v379, inf
      %385 = vmin.xlane.f32.xlu0 %v384
      %v386 = vpop.xlane.xlu0 %385
      %v387 = vcvt.f32.s32 %v386
      %v388 = vcvt.f32.s32 %v382
      %v389 = vshll.u32 %v388, 16
      %v390 = vadd.s32 %v389, %v387
      %vm391 = vcmp.eq.s32.totalorder %v375, %v390
      %v392 = vsel %vm391, 128, %v375
      %v393 = vsel %vm307, %v392, 2147483647
      %v394 = vand.u32 %v393, 65535
      %v395 = vshra.s32 %v393, 16
      %v396 = vcvt.s32.f32 %v394
      %v397 = vcvt.s32.f32 %v395
      %398 = vmin.xlane.f32.xlu0 %v397
      %v399 = vpop.xlane.xlu0 %398
      %vm400 = vcmp.eq.f32.partialorder %v397, %v399
      %v401 = vsel %vm400, %v396, inf
      %402 = vmin.xlane.f32.xlu0 %v401
      %v403 = vpop.xlane.xlu0 %402
      %v404 = vcvt.f32.s32 %v403
      %v405 = vcvt.f32.s32 %v399
      %v406 = vshll.u32 %v405, 16
      %v407 = vadd.s32 %v406, %v404
      %vm408 = vcmp.eq.s32.totalorder %v392, %v407
      %v409 = vsel %vm408, 128, %v392
      %v410 = vsel %vm307, %v409, 2147483647
      %v411 = vand.u32 %v410, 65535
      %v412 = vshra.s32 %v410, 16
      %v413 = vcvt.s32.f32 %v411
      %v414 = vcvt.s32.f32 %v412
      %415 = vmin.xlane.f32.xlu0 %v414
      %v416 = vpop.xlane.xlu0 %415
      %vm417 = vcmp.eq.f32.partialorder %v414, %v416
      %v418 = vsel %vm417, %v413, inf
      %419 = vmin.xlane.f32.xlu0 %v418
      %v420 = vpop.xlane.xlu0 %419
      %v421 = vcvt.f32.s32 %v420
      %v422 = vcvt.f32.s32 %v416
      %v423 = vshll.u32 %v422, 16
      %v424 = vadd.s32 %v423, %v421
      %vm425 = vcmp.eq.s32.totalorder %v409, %v424
      %v426 = vsel %vm425, 128, %v409
      %v427 = vsel %vm307, %v426, 2147483647
      %v428 = vand.u32 %v427, 65535
      %v429 = vshra.s32 %v427, 16
      %v430 = vcvt.s32.f32 %v428
      %v431 = vcvt.s32.f32 %v429
      %432 = vmin.xlane.f32.xlu0 %v431
      %v433 = vpop.xlane.xlu0 %432
      %vm434 = vcmp.eq.f32.partialorder %v431, %v433
      %v435 = vsel %vm434, %v430, inf
      %436 = vmin.xlane.f32.xlu0 %v435
      %v437 = vpop.xlane.xlu0 %436
      %v438 = vcvt.f32.s32 %v437
      %v439 = vcvt.f32.s32 %v433
      %v440 = vshll.u32 %v439, 16
      %v441 = vadd.s32 %v440, %v438
      %vm442 = vcmp.eq.s32.totalorder %v426, %v441
      %v443 = vsel %vm442, 128, %v426
      %v444 = vsel %vm307, %v443, 2147483647
      %v445 = vand.u32 %v444, 65535
      %v446 = vshra.s32 %v444, 16
      %v447 = vcvt.s32.f32 %v445
      %v448 = vcvt.s32.f32 %v446
      %449 = vmin.xlane.f32.xlu0 %v448
      %v450 = vpop.xlane.xlu0 %449
      %vm451 = vcmp.eq.f32.partialorder %v448, %v450
      %v452 = vsel %vm451, %v447, inf
      %453 = vmin.xlane.f32.xlu0 %v452
      %v454 = vpop.xlane.xlu0 %453
      %v455 = vcvt.f32.s32 %v454
      %v456 = vcvt.f32.s32 %v450
      %v457 = vshll.u32 %v456, 16
      %v458 = vadd.s32 %v457, %v455
      %vm459 = vcmp.eq.s32.totalorder %v443, %v458
      %v460 = vsel %vm459, 128, %v443
      %v461 = vsel %vm307, %v460, 2147483647
      %v462 = vand.u32 %v461, 65535
      %v463 = vshra.s32 %v461, 16
      %v464 = vcvt.s32.f32 %v462
      %v465 = vcvt.s32.f32 %v463
      %466 = vmin.xlane.f32.xlu0 %v465
      %v467 = vpop.xlane.xlu0 %466
      %vm468 = vcmp.eq.f32.partialorder %v465, %v467
      %v469 = vsel %vm468, %v464, inf
      %470 = vmin.xlane.f32.xlu0 %v469
      %v471 = vpop.xlane.xlu0 %470
      %v472 = vcvt.f32.s32 %v471
      %v473 = vcvt.f32.s32 %v467
      %v474 = vshll.u32 %v473, 16
      %v475 = vadd.s32 %v474, %v472
      %vm476 = vcmp.eq.s32.totalorder %v460, %v475
      %v477 = vsel %vm476, 128, %v460
      %v478 = vsel %vm307, %v477, 2147483647
      %v479 = vand.u32 %v478, 65535
      %v480 = vshra.s32 %v478, 16
      %v481 = vcvt.s32.f32 %v479
      %v482 = vcvt.s32.f32 %v480
      %483 = vmin.xlane.f32.xlu0 %v482
      %v484 = vpop.xlane.xlu0 %483
      %vm485 = vcmp.eq.f32.partialorder %v482, %v484
      %v486 = vsel %vm485, %v481, inf
      %487 = vmin.xlane.f32.xlu0 %v486
      %v488 = vpop.xlane.xlu0 %487
      %v489 = vcvt.f32.s32 %v488
      %v490 = vcvt.f32.s32 %v484
      %v491 = vshll.u32 %v490, 16
      %v492 = vadd.s32 %v491, %v489
      %vm493 = vcmp.eq.s32.totalorder %v477, %v492
      %v494 = vsel %vm493, 128, %v477
      %v495 = vsel %vm307, %v494, 2147483647
      %v496 = vand.u32 %v495, 65535
      %v497 = vshra.s32 %v495, 16
      %v498 = vcvt.s32.f32 %v496
      %v499 = vcvt.s32.f32 %v497
      %500 = vmin.xlane.f32.xlu0 %v499
      %v501 = vpop.xlane.xlu0 %500
      %vm502 = vcmp.eq.f32.partialorder %v499, %v501
      %v503 = vsel %vm502, %v498, inf
      %504 = vmin.xlane.f32.xlu0 %v503
      %v505 = vpop.xlane.xlu0 %504
      %v506 = vcvt.f32.s32 %v505
      %v507 = vcvt.f32.s32 %v501
      %v508 = vshll.u32 %v507, 16
      %v509 = vadd.s32 %v508, %v506
      %vm510 = vcmp.eq.s32.totalorder %v494, %v509
      %v511 = vsel %vm510, 128, %v494
      %v512 = vsel %vm307, %v511, 2147483647
      %v513 = vand.u32 %v512, 65535
      %v514 = vshra.s32 %v512, 16
      %v515 = vcvt.s32.f32 %v513
      %v516 = vcvt.s32.f32 %v514
      %517 = vmin.xlane.f32.xlu0 %v516
      %v518 = vpop.xlane.xlu0 %517
      %vm519 = vcmp.eq.f32.partialorder %v516, %v518
      %v520 = vsel %vm519, %v515, inf
      %521 = vmin.xlane.f32.xlu0 %v520
      %v522 = vpop.xlane.xlu0 %521
      %v523 = vcvt.f32.s32 %v522
      %v524 = vcvt.f32.s32 %v518
      %v525 = vshll.u32 %v524, 16
      %v526 = vadd.s32 %v525, %v523
      %vm527 = vcmp.eq.s32.totalorder %v511, %v526
      %v528 = vsel %vm527, 128, %v511
      %v529 = vsel %vm307, %v528, 2147483647
      %v530 = vand.u32 %v529, 65535
      %v531 = vshra.s32 %v529, 16
      %v532 = vcvt.s32.f32 %v530
      %v533 = vcvt.s32.f32 %v531
      %534 = vmin.xlane.f32.xlu0 %v533
      %v535 = vpop.xlane.xlu0 %534
      %vm536 = vcmp.eq.f32.partialorder %v533, %v535
      %v537 = vsel %vm536, %v532, inf
      %538 = vmin.xlane.f32.xlu0 %v537
      %v539 = vpop.xlane.xlu0 %538
      %v540 = vcvt.f32.s32 %v539
      %v541 = vcvt.f32.s32 %v535
      %v542 = vshll.u32 %v541, 16
      %v543 = vadd.s32 %v542, %v540
      %vm544 = vcmp.eq.s32.totalorder %v528, %v543
      %v545 = vsel %vm544, 128, %v528
      %v546 = vsel %vm307, %v545, 2147483647
      %v547 = vand.u32 %v546, 65535
      %v548 = vshra.s32 %v546, 16
      %v549 = vcvt.s32.f32 %v547
      %v550 = vcvt.s32.f32 %v548
      %551 = vmin.xlane.f32.xlu0 %v550
      %v552 = vpop.xlane.xlu0 %551
      %vm553 = vcmp.eq.f32.partialorder %v550, %v552
      %v554 = vsel %vm553, %v549, inf
      %555 = vmin.xlane.f32.xlu0 %v554
      %v556 = vpop.xlane.xlu0 %555
      %v557 = vcvt.f32.s32 %v556
      %v558 = vcvt.f32.s32 %v552
      %v559 = vshll.u32 %v558, 16
      %v560 = vadd.s32 %v559, %v557
      %vm561 = vcmp.eq.s32.totalorder %v545, %v560
      %v562 = vsel %vm561, 128, %v545
      %v563 = vsel %vm307, %v562, 2147483647
      %v564 = vand.u32 %v563, 65535
      %v565 = vshra.s32 %v563, 16
      %v566 = vcvt.s32.f32 %v564
      %v567 = vcvt.s32.f32 %v565
      %568 = vmin.xlane.f32.xlu0 %v567
      %v569 = vpop.xlane.xlu0 %568
      %vm570 = vcmp.eq.f32.partialorder %v567, %v569
      %v571 = vsel %vm570, %v566, inf
      %572 = vmin.xlane.f32.xlu0 %v571
      %v573 = vpop.xlane.xlu0 %572
      %v574 = vcvt.f32.s32 %v573
      %v575 = vcvt.f32.s32 %v569
      %v576 = vshll.u32 %v575, 16
      %v577 = vadd.s32 %v576, %v574
      %vm578 = vcmask 7168
      %v579 = vsel %vm578, %v322, %v339
      %vm580 = vcmask 15360
      %v581 = vsel %vm580, %v579, %v356
      %v582 = vsel %vm212, %v581, %v373
      %vm583 = vcmask 31744
      %v584 = vsel %vm583, %v582, %v390
      %vm585 = vcmask 39936
      %v586 = vsel %vm585, %v584, %v407
      %vm587 = vcmask 48128
      %v588 = vsel %vm587, %v586, %v424
      %vm589 = vcmask 56320
      %v590 = vsel %vm589, %v588, %v441
      %vm591 = vcmask 64512
      %v592 = vsel %vm591, %v590, %v458
      %vm593 = vcmask 72704
      %v594 = vsel %vm593, %v592, %v475
      %vm595 = vcmask 80896
      %v596 = vsel %vm595, %v594, %v492
      %vm597 = vcmask 89088
      %v598 = vsel %vm597, %v596, %v509
      %vm599 = vcmask 97280
      %v600 = vsel %vm599, %v598, %v526
      %vm601 = vcmask 105472
      %v602 = vsel %vm601, %v600, %v543
      %vm603 = vcmask 113664
      %v604 = vsel %vm603, %v602, %v560
      %vm605 = vcmask 121856
      %v606 = vsel %vm605, %v604, %v577
      %vm607 = vcmp.lt.s32.totalorder %v606, 64
      %v608 = vsel %vm607, %v606, 0
      %609 = vset.pattern.permute.xlu0 0
      %610 = vperm.xlu0 %609, %v608
      %v611 = vpop.permute.xlu0 %610
      %v612 = vsel %vm607, %v606, %v611
      %vm613 = vcmask 130048
      %614 = vst.msk [vmem:[%s191] sm:$0xff] %vm613, %v612
      %p615 = scmp.lt.s32.totalorder %s17, 1
      %s616 = scalar_select %p615, %s17, 1
      %p617 = scmp.lt.s32.totalorder %s18, 1
      %s618 = scalar_select %p617, %s18, 1
      %s619 = smul.addr %s616, 2
      %s620 = sadd.s32 %s618, %s619
      %s621 = smul.addr %s620, 8
      %s622 = scalar_lea.vmem %s2, %s621
      // Predicated region
      $region29: #{sa_module_forward.9} parent=27 // pred_check
        %p623 = pneg %p99
      $region30: #{sa_module_forward.9} parent=27 // pred_check_branch
        %625 = sbr.rel (%p623) target = $region32
      $region31: #{sa_module_forward.9} parent=27 // pred_region
        _
      $region32: #{sa_module_forward.9} parent=27 // pred_fallthru
        _
    $region28: #{sa_module_forward.9} parent=5 // pred_fallthru
      _
    %p626 = scmp.le.s32.totalorder 2, %s8
    // Predicated region
    $region33: #{sa_module_forward.9} parent=5 // pred_check
      %p627 = pneg %p626
    $region34: #{sa_module_forward.9} parent=5 // pred_check_branch
      %629 = sbr.rel (%p627) target = $region36
    $region35: #{sa_module_forward.9} parent=5 // pred_region
      %s630 = ssub.s32 %s8, 2
      // Predicated region
      $region37: #{sa_module_forward.9} parent=35 // pred_check
        %p631 = pneg %p105
      $region38: #{sa_module_forward.9} parent=35 // pred_check_branch
        %633 = sbr.rel (%p631) target = $region40
      $region39: #{sa_module_forward.9} parent=35 // pred_region
        %p634 = scmp.lt.s32.totalorder %s19, 1
        %s635 = scalar_select %p634, %s19, 1
        %p636 = scmp.lt.s32.totalorder %s20, 1
        %s637 = scalar_select %p636, %s20, 1
        %s638 = smul.addr %s635, 2
        %s639 = sadd.s32 %s637, %s638
        %s640 = smul.addr %s639, 8
        %s641 = scalar_lea.vmem %s2, %s640
      $region40: #{sa_module_forward.9} parent=35 // pred_fallthru
        _
    $region36: #{sa_module_forward.9} parent=5 // pred_fallthru
      _
  $region6: #{sa_module_forward.9} parent=0 // loop_footer
    %s12 = sadd.s32 1, %s8
  $region7: #{sa_module_forward.9} parent=0 // loop_footer_branch
    %7 = sbr.rel target = $region3
  $region8: #{sa_module_forward.9} parent=0 // loop_exit
    _

// kernel: sa_module_forward.10
$region0: #{sa_module_forward.10}
  #allocation0 [shape = 'u32[]', space=smem, size = 0x4, offset = 0x4, fixed_abs, tag = 'smem constant byte address 0x4 - core index']
  #allocation1 [shape = 'u32[144,128]{1,0:T(1,128)}', space=vmem, size = 0x12000, scoped, tag = 'internal scratch']
  %s0 = inlined_call_operand.vmem [shape: bf16[512,7], index: 0, kind: input, shape index: {}]
  %s1 = inlined_call_operand.vmem [shape: bf16[7,128], index: 1, kind: input, shape index: {}]
  %s2 = inlined_call_operand.vmem [shape: f32[1,128], index: 2, kind: input, shape index: {}]
  %s3 = inlined_call_operand.vmem [shape: f32[1,128], index: 3, kind: input, shape index: {}]
  %s4 = inlined_call_operand.vmem [shape: bf16[128,128], index: 4, kind: input, shape index: {}]
  %s5 = inlined_call_operand.vmem [shape: f32[1,128], index: 5, kind: input, shape index: {}]
  %s6 = inlined_call_operand.vmem [shape: f32[1,128], index: 6, kind: input, shape index: {}]
  %s7 = inlined_call_operand.vmem [shape: bf16[32,128], index: 7, kind: output, shape index: {}]
  %s8 = sld [smem:[#allocation0]]
  $region61: #{sa_module_forward.10} parent=0
    _
  %s10 = ssub.s32 1, %s8
  %s11 = scalar_select 0, %s10, %s8
  loop: start=0, step=1, limit=4
  $region2: #{sa_module_forward.10} parent=0 // loop_pre_header
    _
  $region3: #{sa_module_forward.10} parent=0 // loop_header
    %s13 = sphi 0, %s17
    %p14 = scmp.ge.s32.totalorder %s13, 4
    %s23 = sphi 0, %s25
    %s26 = sphi 0, %s23
    %s27 = sphi 0, %s26
    %s43 = sphi 0, %s27
    %s47 = sphi 0, %s47
    %s49 = sphi 0, %s47
    %s50 = sphi 0, %s49
    %s64 = sphi 0, %s50
    %s68 = sphi 0, %s68
    %s70 = sphi 0, %s68
    %s71 = sphi 0, %s70
    %s85 = sphi 0, %s71
    %s89 = sphi 0, %s89
    %s91 = sphi 0, %s89
    %s92 = sphi 0, %s91
    %s106 = sphi 0, %s92
    %s110 = sphi 0, %s110
    %s112 = sphi 0, %s110
    %s113 = sphi 0, %s112
    %s127 = sphi 0, %s113
    %s131 = sphi 0, %s131
    %s133 = sphi 0, %s131
    %s134 = sphi 0, %s133
    %s148 = sphi 0, %s134
    %s152 = sphi 0, %s152
    %s154 = sphi 0, %s152
    %s155 = sphi 0, %s154
    %s169 = sphi 0, %s155
    %s175 = sphi 0, %s177
    %s178 = sphi 0, %s175
    %s179 = sphi 0, %s178
    %s195 = sphi 0, %s179
  $region4: #{sa_module_forward.10} parent=0 // loop_header_branch
    %16 = sbr.rel (%p14) target = $region8
  $region5: #{sa_module_forward.10} parent=0 // loop_body
    %s18 = ssub.s32 %s13, 1
    %s19 = ssub.s32 %s13, 2
    %s20 = sadd.s32 %s13, 1
    %s21 = ssub.s32 %s13, %s20
    %p22 = scmp.eq.s32.totalorder %s21, 0
    %s24 = sadd.s32 %s23, 1
    %s25 = scalar_select %p22, %s23, %s24
    %p28 = pneg %p22
    %p29 = scmp.eq.s32.totalorder %s13, 1
    %p30 = por %p28, %p29
    %p31 = scmp.ne.s32.totalorder %s23, %s26
    %p32 = scmp.eq.s32.totalorder %s13, 0
    %p33 = por %p31, %p32
    %p34 = scmp.ne.s32.totalorder %s23, %s26
    %p35 = scmp.eq.s32.totalorder %s18, 1
    %p36 = por %p34, %p35
    %p37 = scmp.ne.s32.totalorder %s26, %s27
    %p38 = scmp.eq.s32.totalorder %s18, 0
    %p39 = por %p37, %p38
    %p40 = scmp.ne.s32.totalorder %s26, %s27
    %p41 = scmp.eq.s32.totalorder %s19, 1
    %p42 = por %p40, %p41
    %p44 = scmp.ne.s32.totalorder %s27, %s43
    %p45 = scmp.eq.s32.totalorder %s19, 0
    %p46 = por %p44, %p45
    %s48 = sadd.s32 %s47, 1
    %p51 = scmp.eq.s32.totalorder %s13, 1
    %p52 = scmp.ne.s32.totalorder %s47, %s49
    %p53 = scmp.eq.s32.totalorder %s13, 0
    %p54 = por %p52, %p53
    %p55 = scmp.ne.s32.totalorder %s47, %s49
    %p56 = scmp.eq.s32.totalorder %s18, 1
    %p57 = por %p55, %p56
    %p58 = scmp.ne.s32.totalorder %s49, %s50
    %p59 = scmp.eq.s32.totalorder %s18, 0
    %p60 = por %p58, %p59
    %p61 = scmp.ne.s32.totalorder %s49, %s50
    %p62 = scmp.eq.s32.totalorder %s19, 1
    %p63 = por %p61, %p62
    %p65 = scmp.ne.s32.totalorder %s50, %s64
    %p66 = scmp.eq.s32.totalorder %s19, 0
    %p67 = por %p65, %p66
    %s69 = sadd.s32 %s68, 1
    %p72 = scmp.eq.s32.totalorder %s13, 1
    %p73 = scmp.ne.s32.totalorder %s68, %s70
    %p74 = scmp.eq.s32.totalorder %s13, 0
    %p75 = por %p73, %p74
    %p76 = scmp.ne.s32.totalorder %s68, %s70
    %p77 = scmp.eq.s32.totalorder %s18, 1
    %p78 = por %p76, %p77
    %p79 = scmp.ne.s32.totalorder %s70, %s71
    %p80 = scmp.eq.s32.totalorder %s18, 0
    %p81 = por %p79, %p80
    %p82 = scmp.ne.s32.totalorder %s70, %s71
    %p83 = scmp.eq.s32.totalorder %s19, 1
    %p84 = por %p82, %p83
    %p86 = scmp.ne.s32.totalorder %s71, %s85
    %p87 = scmp.eq.s32.totalorder %s19, 0
    %p88 = por %p86, %p87
    %s90 = sadd.s32 %s89, 1
    %p93 = scmp.eq.s32.totalorder %s13, 1
    %p94 = scmp.ne.s32.totalorder %s89, %s91
    %p95 = scmp.eq.s32.totalorder %s13, 0
    %p96 = por %p94, %p95
    %p97 = scmp.ne.s32.totalorder %s89, %s91
    %p98 = scmp.eq.s32.totalorder %s18, 1
    %p99 = por %p97, %p98
    %p100 = scmp.ne.s32.totalorder %s91, %s92
    %p101 = scmp.eq.s32.totalorder %s18, 0
    %p102 = por %p100, %p101
    %p103 = scmp.ne.s32.totalorder %s91, %s92
    %p104 = scmp.eq.s32.totalorder %s19, 1
    %p105 = por %p103, %p104
    %p107 = scmp.ne.s32.totalorder %s92, %s106
    %p108 = scmp.eq.s32.totalorder %s19, 0
    %p109 = por %p107, %p108
    %s111 = sadd.s32 %s110, 1
    %p114 = scmp.eq.s32.totalorder %s13, 1
    %p115 = scmp.ne.s32.totalorder %s110, %s112
    %p116 = scmp.eq.s32.totalorder %s13, 0
    %p117 = por %p115, %p116
    %p118 = scmp.ne.s32.totalorder %s110, %s112
    %p119 = scmp.eq.s32.totalorder %s18, 1
    %p120 = por %p118, %p119
    %p121 = scmp.ne.s32.totalorder %s112, %s113
    %p122 = scmp.eq.s32.totalorder %s18, 0
    %p123 = por %p121, %p122
    %p124 = scmp.ne.s32.totalorder %s112, %s113
    %p125 = scmp.eq.s32.totalorder %s19, 1
    %p126 = por %p124, %p125
    %p128 = scmp.ne.s32.totalorder %s113, %s127
    %p129 = scmp.eq.s32.totalorder %s19, 0
    %p130 = por %p128, %p129
    %s132 = sadd.s32 %s131, 1
    %p135 = scmp.eq.s32.totalorder %s13, 1
    %p136 = scmp.ne.s32.totalorder %s131, %s133
    %p137 = scmp.eq.s32.totalorder %s13, 0
    %p138 = por %p136, %p137
    %p139 = scmp.ne.s32.totalorder %s131, %s133
    %p140 = scmp.eq.s32.totalorder %s18, 1
    %p141 = por %p139, %p140
    %p142 = scmp.ne.s32.totalorder %s133, %s134
    %p143 = scmp.eq.s32.totalorder %s18, 0
    %p144 = por %p142, %p143
    %p145 = scmp.ne.s32.totalorder %s133, %s134
    %p146 = scmp.eq.s32.totalorder %s19, 1
    %p147 = por %p145, %p146
    %p149 = scmp.ne.s32.totalorder %s134, %s148
    %p150 = scmp.eq.s32.totalorder %s19, 0
    %p151 = por %p149, %p150
    %s153 = sadd.s32 %s152, 1
    %p156 = scmp.eq.s32.totalorder %s13, 1
    %p157 = scmp.ne.s32.totalorder %s152, %s154
    %p158 = scmp.eq.s32.totalorder %s13, 0
    %p159 = por %p157, %p158
    %p160 = scmp.ne.s32.totalorder %s152, %s154
    %p161 = scmp.eq.s32.totalorder %s18, 1
    %p162 = por %p160, %p161
    %p163 = scmp.ne.s32.totalorder %s154, %s155
    %p164 = scmp.eq.s32.totalorder %s18, 0
    %p165 = por %p163, %p164
    %p166 = scmp.ne.s32.totalorder %s154, %s155
    %p167 = scmp.eq.s32.totalorder %s19, 1
    %p168 = por %p166, %p167
    %p170 = scmp.ne.s32.totalorder %s155, %s169
    %p171 = scmp.eq.s32.totalorder %s19, 0
    %p172 = por %p170, %p171
    %s173 = ssub.s32 %s13, %s20
    %p174 = scmp.eq.s32.totalorder %s173, 0
    %s176 = sadd.s32 %s175, 1
    %s177 = scalar_select %p174, %s175, %s176
    %p180 = pneg %p174
    %p181 = scmp.eq.s32.totalorder %s13, 1
    %p182 = por %p180, %p181
    %p183 = scmp.ne.s32.totalorder %s175, %s178
    %p184 = scmp.eq.s32.totalorder %s13, 0
    %p185 = por %p183, %p184
    %p186 = scmp.ne.s32.totalorder %s175, %s178
    %p187 = scmp.eq.s32.totalorder %s18, 1
    %p188 = por %p186, %p187
    %p189 = scmp.ne.s32.totalorder %s178, %s179
    %p190 = scmp.eq.s32.totalorder %s18, 0
    %p191 = por %p189, %p190
    %p192 = scmp.ne.s32.totalorder %s178, %s179
    %p193 = scmp.eq.s32.totalorder %s19, 1
    %p194 = por %p192, %p193
    %p196 = scmp.ne.s32.totalorder %s179, %s195
    %p197 = scmp.eq.s32.totalorder %s19, 0
    %p198 = por %p196, %p197
    %p199 = scmp.le.s32.totalorder 1, %s13
    %p200 = scmp.lt.s32.totalorder %s13, 3
    %p201 = pnand %p199, %p200
    %p202 = pneg %p201
    // Predicated region
    $region9: #{sa_module_forward.10} parent=5 // pred_check
      _
    $region10: #{sa_module_forward.10} parent=5 // pred_check_branch
      %204 = sbr.rel (%p201) target = $region12
    $region11: #{sa_module_forward.10} parent=5 // pred_region
      %s205 = ssub.s32 %s13, 1
      // Predicated region
      $region13: #{sa_module_forward.10} parent=11 // pred_check
        %p206 = pneg %p60
      $region14: #{sa_module_forward.10} parent=11 // pred_check_branch
        %208 = sbr.rel (%p206) target = $region16
      $region15: #{sa_module_forward.10} parent=11 // pred_region
        _
      $region16: #{sa_module_forward.10} parent=11 // pred_fallthru
        _
      // Predicated region
      $region17: #{sa_module_forward.10} parent=11 // pred_check
        %p209 = pneg %p81
      $region18: #{sa_module_forward.10} parent=11 // pred_check_branch
        %211 = sbr.rel (%p209) target = $region20
      $region19: #{sa_module_forward.10} parent=11 // pred_region
        _
      $region20: #{sa_module_forward.10} parent=11 // pred_fallthru
        _
      // Predicated region
      $region21: #{sa_module_forward.10} parent=11 // pred_check
        %p212 = pneg %p102
      $region22: #{sa_module_forward.10} parent=11 // pred_check_branch
        %214 = sbr.rel (%p212) target = $region24
      $region23: #{sa_module_forward.10} parent=11 // pred_region
        _
      $region24: #{sa_module_forward.10} parent=11 // pred_fallthru
        _
      // Predicated region
      $region25: #{sa_module_forward.10} parent=11 // pred_check
        %p215 = pneg %p123
      $region26: #{sa_module_forward.10} parent=11 // pred_check_branch
        %217 = sbr.rel (%p215) target = $region28
      $region27: #{sa_module_forward.10} parent=11 // pred_region
        _
      $region28: #{sa_module_forward.10} parent=11 // pred_fallthru
        _
      // Predicated region
      $region29: #{sa_module_forward.10} parent=11 // pred_check
        %p218 = pneg %p144
      $region30: #{sa_module_forward.10} parent=11 // pred_check_branch
        %220 = sbr.rel (%p218) target = $region32
      $region31: #{sa_module_forward.10} parent=11 // pred_region
        _
      $region32: #{sa_module_forward.10} parent=11 // pred_fallthru
        _
      // Predicated region
      $region33: #{sa_module_forward.10} parent=11 // pred_check
        %p221 = pneg %p165
      $region34: #{sa_module_forward.10} parent=11 // pred_check_branch
        %223 = sbr.rel (%p221) target = $region36
      $region35: #{sa_module_forward.10} parent=11 // pred_region
        _
      $region36: #{sa_module_forward.10} parent=11 // pred_fallthru
        _
    $region12: #{sa_module_forward.10} parent=5 // pred_fallthru
      _
    %p224 = scmp.lt.s32.totalorder %s13, 2
    // Predicated region
    $region37: #{sa_module_forward.10} parent=5 // pred_check
      %p225 = pneg %p224
    $region38: #{sa_module_forward.10} parent=5 // pred_check_branch
      %227 = sbr.rel (%p225) target = $region40
    $region39: #{sa_module_forward.10} parent=5 // pred_region
      // Predicated region
      $region41: #{sa_module_forward.10} parent=39 // pred_check
        %p228 = pneg %p33
      $region42: #{sa_module_forward.10} parent=39 // pred_check_branch
        %230 = sbr.rel (%p228) target = $region44
      $region43: #{sa_module_forward.10} parent=39 // pred_region
        %s231 = smul.u32 32, %s13
        %p232 = scmp.lt.s32.totalorder %s231, 63
        %s233 = scalar_select %p232, %s231, 63
        %s234 = smul.addr %s233, 4
        %s235 = scalar_lea.vmem %s0, %s234
        %s236 = smul.u32 32, %s13
      $region44: #{sa_module_forward.10} parent=39 // pred_fallthru
        _
    $region40: #{sa_module_forward.10} parent=5 // pred_fallthru
      _
    %p237 = scmp.le.s32.totalorder 1, %s13
    %p238 = scmp.lt.s32.totalorder %s13, 3
    %p239 = pnand %p237, %p238
    %p240 = pneg %p239
    // Predicated region
    $region45: #{sa_module_forward.10} parent=5 // pred_check
      _
    $region46: #{sa_module_forward.10} parent=5 // pred_check_branch
      %242 = sbr.rel (%p239) target = $region48
    $region47: #{sa_module_forward.10} parent=5 // pred_region
      %s243 = ssub.s32 %s13, 1
      %s244 = smul.u32 32, %s18
      %p245 = scmp.lt.s32.totalorder %s244, 63
      %s246 = scalar_select %p245, %s244, 63
      %s247 = smul.addr %s246, 4
      %s248 = scalar_lea.vmem %s0, %s247
      %p249 = pneg %p39
      %p250 = pneg %p36
      %p251 = pneg %p60
      %p252 = pneg %p57
      %p253 = pneg %p81
      %p254 = pneg %p78
      %p255 = pneg %p102
      %p256 = pneg %p99
      %p257 = pneg %p123
      %p258 = pneg %p120
      %p259 = pneg %p144
      %p260 = pneg %p141
      %p261 = pneg %p165
      %p262 = pneg %p162
      %p263 = pneg %p191
      %p264 = pneg %p188
      %s265 = smul.u32 2, %s18
      %p266 = scmp.lt.s32.totalorder %s265, 3
      %s267 = scalar_select %p266, %s265, 3
      %s268 = smul.addr %s267, 4
      %s269 = scalar_lea.vmem %s7, %s268
      %s270 = smul.u32 32, %s18
      %p271 = scmp.lt.s32.totalorder %s270, 63
      %s272 = scalar_select %p271, %s270, 63
      %s273 = smul.addr %s272, 4
      %s274 = scalar_lea.vmem %s0, %s273
      %s275 = smul.u32 32, %s18
      %s276 = smul.u32 2, %s18
      %p277 = scmp.lt.s32.totalorder %s276, 3
      %s278 = scalar_select %p277, %s276, 3
      %s279 = smul.addr %s278, 4
      %s280 = scalar_lea.vmem %s7, %s279
      %s281 = smul.u32 2, %s18
      %v283 = vld [vmem:[%s274] sm:$0xf]
      %v284 = vld [vmem:[%s274 + $0x4] sm:$0xf]
      %v285 = vld [vmem:[%s274 + $0x8] sm:$0xf]
      %v286 = vld [vmem:[%s274 + $0xc] sm:$0xf]
      %v287 = vld [vmem:[%s274 + $0x10] sm:$0xf]
      %v288 = vld [vmem:[%s274 + $0x14] sm:$0xf]
      %v289 = vld [vmem:[%s274 + $0x18] sm:$0xf]
      %v290 = vld [vmem:[%s274 + $0x1c] sm:$0xf]
      %v291 = vld [vmem:[%s274 + $0x20] sm:$0xf]
      %v292 = vld [vmem:[%s274 + $0x24] sm:$0xf]
      %v293 = vld [vmem:[%s274 + $0x28] sm:$0xf]
      %v294 = vld [vmem:[%s274 + $0x2c] sm:$0xf]
      %v295 = vld [vmem:[%s274 + $0x30] sm:$0xf]
      %v296 = vld [vmem:[%s274 + $0x34] sm:$0xf]
      %v297 = vld [vmem:[%s274 + $0x38] sm:$0xf]
      %v298 = vld [vmem:[%s274 + $0x3c] sm:$0xf]
      %v299 = vld [vmem:[%s274 + $0x40] sm:$0xf]
      %v300 = vld [vmem:[%s274 + $0x44] sm:$0xf]
      %v301 = vld [vmem:[%s274 + $0x48] sm:$0xf]
      %v302 = vld [vmem:[%s274 + $0x4c] sm:$0xf]
      %v303 = vld [vmem:[%s274 + $0x50] sm:$0xf]
      %v304 = vld [vmem:[%s274 + $0x54] sm:$0xf]
      %v305 = vld [vmem:[%s274 + $0x58] sm:$0xf]
      %v306 = vld [vmem:[%s274 + $0x5c] sm:$0xf]
      %v307 = vld [vmem:[%s274 + $0x60] sm:$0xf]
      %v308 = vld [vmem:[%s274 + $0x64] sm:$0xf]
      %v309 = vld [vmem:[%s274 + $0x68] sm:$0xf]
      %v310 = vld [vmem:[%s274 + $0x6c] sm:$0xf]
      %v311 = vld [vmem:[%s274 + $0x70] sm:$0xf]
      %v312 = vld [vmem:[%s274 + $0x74] sm:$0xf]
      %v313 = vld [vmem:[%s274 + $0x78] sm:$0xf]
      %v314 = vld [vmem:[%s274 + $0x7c] sm:$0xf]
      %v315 = vld [vmem:[%s1] sm:$0xf]
      %v316 = vld [vmem:[%s2] sm:$0x1]
      %v317 = vld [vmem:[%s3] sm:$0x1]
      %v350 = vunpack.c.l.b16 %v283
      %v351 = vunpack.c.l.b16 %v284
      %v352 = vunpack.c.l.b16 %v285
      %v353 = vunpack.c.l.b16 %v286
      %v354 = vunpack.c.l.b16 %v287
      %v355 = vunpack.c.l.b16 %v288
      %v356 = vunpack.c.l.b16 %v289
      %v357 = vunpack.c.l.b16 %v290
      %v358 = vunpack.c.l.b16 %v291
      %v359 = vunpack.c.l.b16 %v292
      %v360 = vunpack.c.l.b16 %v293
      %v361 = vunpack.c.l.b16 %v294
      %v362 = vunpack.c.l.b16 %v295
      %v363 = vunpack.c.l.b16 %v296
      %v364 = vunpack.c.l.b16 %v297
      %v365 = vunpack.c.l.b16 %v298
      %v366 = vunpack.c.l.b16 %v299
      %v367 = vunpack.c.l.b16 %v300
      %v368 = vunpack.c.l.b16 %v301
      %v369 = vunpack.c.l.b16 %v302
      %v370 = vunpack.c.l.b16 %v303
      %v371 = vunpack.c.l.b16 %v304
      %v372 = vunpack.c.l.b16 %v305
      %v373 = vunpack.c.l.b16 %v306
      %v374 = vunpack.c.l.b16 %v307
      %v375 = vunpack.c.l.b16 %v308
      %v376 = vunpack.c.l.b16 %v309
      %v377 = vunpack.c.l.b16 %v310
      %v378 = vunpack.c.l.b16 %v311
      %v379 = vunpack.c.l.b16 %v312
      %v380 = vunpack.c.l.b16 %v313
      %v381 = vunpack.c.l.b16 %v314
      %v382 = vpack.c.b16 %v351, %v350
      %v383 = vpack.c.b16 %v353, %v352
      %v384 = vpack.c.b16 %v355, %v354
      %v385 = vpack.c.b16 %v357, %v356
      %v386 = vpack.c.b16 %v359, %v358
      %v387 = vpack.c.b16 %v361, %v360
      %v388 = vpack.c.b16 %v363, %v362
      %v389 = vpack.c.b16 %v365, %v364
      %v390 = vpack.c.b16 %v367, %v366
      %v391 = vpack.c.b16 %v369, %v368
      %v392 = vpack.c.b16 %v371, %v370
      %v393 = vpack.c.b16 %v373, %v372
      %v394 = vpack.c.b16 %v375, %v374
      %v395 = vpack.c.b16 %v377, %v376
      %v396 = vpack.c.b16 %v379, %v378
      %v397 = vpack.c.b16 %v381, %v380
      %vm398 = vcmask 56320
      %v400 = vsel %vm398, %v382, 0
      %v403 = vsel %vm398, %v383, 0
      %v406 = vsel %vm398, %v384, 0
      %v409 = vsel %vm398, %v385, 0
      %v412 = vsel %vm398, %v386, 0
      %v415 = vsel %vm398, %v387, 0
      %v418 = vsel %vm398, %v388, 0
      %v421 = vsel %vm398, %v389, 0
      %v424 = vsel %vm398, %v390, 0
      %v427 = vsel %vm398, %v391, 0
      %v430 = vsel %vm398, %v392, 0
      %v433 = vsel %vm398, %v393, 0
      %v436 = vsel %vm398, %v394, 0
      %v439 = vsel %vm398, %v395, 0
      %v442 = vsel %vm398, %v396, 0
      %v445 = vsel %vm398, %v397, 0
      %vm447 = vcmask 1042432
      %vm448 = vcmask 1043456
      %v449 = vsel %vm447, 4294967295, 65535
      %v450 = vsel %vm448, %v449, 0
      %v452 = vand.u32 %v315, %v450
      %454 = vmatprep.subr.bf16.mxu0 0
      %455 = vmatpush1.bf16.msra.mxu0 %v452
      %456 = vmatprep.subr.bf16.mxu0 0
      %457 = vmatpush1.bf16.msra.mxu0 0
      %458 = vmatprep.subr.bf16.mxu0 0
      %459 = vmatpush1.bf16.msra.mxu0 0
      %460 = vmatprep.subr.bf16.mxu0 0
      %461 = vmatpush1.bf16.msra.mxu0 0
      %462 = vmatprep.subr.bf16.mxu0 0
      %463 = vmatpush1.bf16.msra.mxu0 0
      %464 = vmatprep.subr.bf16.mxu0 0
      %465 = vmatpush1.bf16.msra.mxu0 0
      %466 = vmatprep.subr.bf16.mxu0 0
      %467 = vmatpush1.bf16.msra.mxu0 0
      %468 = vmatprep.subr.bf16.mxu0 0
      %469 = vmatpush1.bf16.msra.mxu0 0
      %470 = vmatprep.subr.bf16.mxu0 0
      %471 = vmatpush1.bf16.msra.mxu0 0
      %472 = vmatprep.subr.bf16.mxu0 0
      %473 = vmatpush1.bf16.msra.mxu0 0
      %474 = vmatprep.subr.bf16.mxu0 0
      %475 = vmatpush1.bf16.msra.mxu0 0
      %476 = vmatprep.subr.bf16.mxu0 0
      %477 = vmatpush1.bf16.msra.mxu0 0
      %478 = vmatprep.subr.bf16.mxu0 0
      %479 = vmatpush1.bf16.msra.mxu0 0
      %480 = vmatprep.subr.bf16.mxu0 0
      %481 = vmatpush1.bf16.msra.mxu0 0
      %482 = vmatprep.subr.bf16.mxu0 0
      %483 = vmatpush1.bf16.msra.mxu0 0
      %484 = vmatprep.subr.bf16.mxu0 0
      %485 = vmatpush1.bf16.msra.mxu0 0
      %486 = vmatprep.mubr.bf16.mxu0 0
      %487 = vmatmul.mubr.bf16.gmra.mrb[0].mxu0 %v400
      %v488 = vpop.f32.mrb[0].mxu0
      %v489 = vadd.f32 0.0, %v488
      %v490 = vpop.f32.mrb[0].mxu0
      %v491 = vpop.f32.mrb[0].mxu0
      %v492 = vadd.f32 0.0, %v491
      %v493 = vpop.f32.mrb[0].mxu0
      %494 = vmatprep.mubr.bf16.mxu0 0
      %495 = vmatmul.mubr.bf16.gmra.mrb[0].mxu0 %v403
      %v496 = vpop.f32.mrb[0].mxu0
      %v497 = vadd.f32 0.0, %v496
      %v498 = vpop.f32.mrb[0].mxu0
      %v499 = vpop.f32.mrb[0].mxu0
      %v500 = vadd.f32 0.0, %v499
      %v501 = vpop.f32.mrb[0].mxu0
      %502 = vmatprep.mubr.bf16.mxu0 0
      %503 = vmatmul.mubr.bf16.gmra.mrb[0].mxu0 %v406
      %v504 = vpop.f32.mrb[0].mxu0
      %v505 = vadd.f32 0.0, %v504
      %v506 = vpop.f32.mrb[0].mxu0
      %v507 = vpop.f32.mrb[0].mxu0
      %v508 = vadd.f32 0.0, %v507
      %v509 = vpop.f32.mrb[0].mxu0
      %510 = vmatprep.mubr.bf16.mxu0 0
      %511 = vmatmul.mubr.bf16.gmra.mrb[0].mxu0 %v409
      %v512 = vpop.f32.mrb[0].mxu0
      %v513 = vadd.f32 0.0, %v512
      %v514 = vpop.f32.mrb[0].mxu0
      %v515 = vpop.f32.mrb[0].mxu0
      %v516 = vadd.f32 0.0, %v515
      %v517 = vpop.f32.mrb[0].mxu0
      %518 = vmatprep.mubr.bf16.mxu0 0
      %519 = vmatmul.mubr.bf16.gmra.mrb[0].mxu0 %v412
      %v520 = vpop.f32.mrb[0].mxu0
      %v521 = vadd.f32 0.0, %v520
      %v522 = vpop.f32.mrb[0].mxu0
      %v523 = vpop.f32.mrb[0].mxu0
      %v524 = vadd.f32 0.0, %v523
      %v525 = vpop.f32.mrb[0].mxu0
      %526 = vmatprep.mubr.bf16.mxu0 0
      %527 = vmatmul.mubr.bf16.gmra.mrb[0].mxu0 %v415
      %v528 = vpop.f32.mrb[0].mxu0
      %v529 = vadd.f32 0.0, %v528
      %v530 = vpop.f32.mrb[0].mxu0
      %v531 = vpop.f32.mrb[0].mxu0
      %v532 = vadd.f32 0.0, %v531
      %v533 = vpop.f32.mrb[0].mxu0
      %534 = vmatprep.mubr.bf16.mxu0 0
      %535 = vmatmul.mubr.bf16.gmra.mrb[0].mxu0 %v418
      %v536 = vpop.f32.mrb[0].mxu0
      %v537 = vadd.f32 0.0, %v536
      %v538 = vpop.f32.mrb[0].mxu0
      %v539 = vpop.f32.mrb[0].mxu0
      %v540 = vadd.f32 0.0, %v539
      %v541 = vpop.f32.mrb[0].mxu0
      %542 = vmatprep.mubr.bf16.mxu0 0
      %543 = vmatmul.mubr.bf16.gmra.mrb[0].mxu0 %v421
      %v544 = vpop.f32.mrb[0].mxu0
      %v545 = vadd.f32 0.0, %v544
      %v546 = vpop.f32.mrb[0].mxu0
      %v547 = vpop.f32.mrb[0].mxu0
      %v548 = vadd.f32 0.0, %v547
      %v549 = vpop.f32.mrb[0].mxu0
      %550 = vmatprep.mubr.bf16.mxu0 0
      %551 = vmatmul.mubr.bf16.gmra.mrb[0].mxu0 %v424
      %v552 = vpop.f32.mrb[0].mxu0
      %v553 = vadd.f32 0.0, %v552
      %v554 = vpop.f32.mrb[0].mxu0
      %v555 = vpop.f32.mrb[0].mxu0
      %v556 = vadd.f32 0.0, %v555
      %v557 = vpop.f32.mrb[0].mxu0
      %558 = vmatprep.mubr.bf16.mxu0 0
      %559 = vmatmul.mubr.bf16.gmra.mrb[0].mxu0 %v427
      %v560 = vpop.f32.mrb[0].mxu0
      %v561 = vadd.f32 0.0, %v560
      %v562 = vpop.f32.mrb[0].mxu0
      %v563 = vpop.f32.mrb[0].mxu0
      %v564 = vadd.f32 0.0, %v563
      %v565 = vpop.f32.mrb[0].mxu0
      %566 = vmatprep.mubr.bf16.mxu0 0
      %567 = vmatmul.mubr.bf16.gmra.mrb[0].mxu0 %v430
      %v568 = vpop.f32.mrb[0].mxu0
      %v569 = vadd.f32 0.0, %v568
      %v570 = vpop.f32.mrb[0].mxu0
      %v571 = vpop.f32.mrb[0].mxu0
      %v572 = vadd.f32 0.0, %v571
      %v573 = vpop.f32.mrb[0].mxu0
      %574 = vmatprep.mubr.bf16.mxu0 0
      %575 = vmatmul.mubr.bf16.gmra.mrb[0].mxu0 %v433
      %v576 = vpop.f32.mrb[0].mxu0
      %v577 = vadd.f32 0.0, %v576
      %v578 = vpop.f32.mrb[0].mxu0
      %v579 = vpop.f32.mrb[0].mxu0
      %v580 = vadd.f32 0.0, %v579
      %v581 = vpop.f32.mrb[0].mxu0
      %582 = vmatprep.mubr.bf16.mxu0 0
      %583 = vmatmul.mubr.bf16.gmra.mrb[0].mxu0 %v436
      %v584 = vpop.f32.mrb[0].mxu0
      %v585 = vadd.f32 0.0, %v584
      %v586 = vpop.f32.mrb[0].mxu0
      %v587 = vpop.f32.mrb[0].mxu0
      %v588 = vadd.f32 0.0, %v587
      %v589 = vpop.f32.mrb[0].mxu0
      %590 = vmatprep.mubr.bf16.mxu0 0
      %591 = vmatmul.mubr.bf16.gmra.mrb[0].mxu0 %v439
      %v592 = vpop.f32.mrb[0].mxu0
      %v593 = vadd.f32 0.0, %v592
      %v594 = vpop.f32.mrb[0].mxu0
      %v595 = vpop.f32.mrb[0].mxu0
      %v596 = vadd.f32 0.0, %v595
      %v597 = vpop.f32.mrb[0].mxu0
      %598 = vmatprep.mubr.bf16.mxu0 0
      %599 = vmatmul.mubr.bf16.gmra.mrb[0].mxu0 %v442
      %v600 = vpop.f32.mrb[0].mxu0
      %v601 = vadd.f32 0.0, %v600
      %v602 = vpop.f32.mrb[0].mxu0
      %v603 = vpop.f32.mrb[0].mxu0
      %v604 = vadd.f32 0.0, %v603
      %v605 = vpop.f32.mrb[0].mxu0
      %606 = vmatprep.mubr.bf16.mxu0 0
      %607 = vmatmul.mubr.bf16.gmra.mrb[0].mxu0 %v445
      %v608 = vpop.f32.mrb[0].mxu0
      %v609 = vadd.f32 0.0, %v608
      %v610 = vpop.f32.mrb[0].mxu0
      %v611 = vpop.f32.mrb[0].mxu0
      %v612 = vadd.f32 0.0, %v611
      %v613 = vpop.f32.mrb[0].mxu0
      %614 = vdwg.mxu0
      %v616 = vlaneseq
      %v617 = vshrl.u32 %v616, 7
      %v618 = vsub.s32 0, %v617
      %v619 = vrot.slane %v316, %v618
      %v621 = vmul.f32 %v489, %v619
      %v622 = vmul.f32 %v492, %v619
      %v623 = vmul.f32 %v497, %v619
      %v624 = vmul.f32 %v500, %v619
      %v625 = vmul.f32 %v505, %v619
      %v626 = vmul.f32 %v508, %v619
      %v627 = vmul.f32 %v513, %v619
      %v628 = vmul.f32 %v516, %v619
      %v629 = vmul.f32 %v521, %v619
      %v630 = vmul.f32 %v524, %v619
      %v631 = vmul.f32 %v529, %v619
      %v632 = vmul.f32 %v532, %v619
      %v633 = vmul.f32 %v537, %v619
      %v634 = vmul.f32 %v540, %v619
      %v635 = vmul.f32 %v545, %v619
      %v636 = vmul.f32 %v548, %v619
      %v637 = vmul.f32 %v553, %v619
      %v638 = vmul.f32 %v556, %v619
      %v639 = vmul.f32 %v561, %v619
      %v640 = vmul.f32 %v564, %v619
      %v641 = vmul.f32 %v569, %v619
      %v642 = vmul.f32 %v572, %v619
      %v643 = vmul.f32 %v577, %v619
      %v644 = vmul.f32 %v580, %v619
      %v645 = vmul.f32 %v585, %v619
      %v646 = vmul.f32 %v588, %v619
      %v647 = vmul.f32 %v593, %v619
      %v648 = vmul.f32 %v596, %v619
      %v649 = vmul.f32 %v601, %v619
      %v650 = vmul.f32 %v604, %v619
      %v651 = vmul.f32 %v609, %v619
      %v652 = vmul.f32 %v612, %v619
      %v654 = vlaneseq
      %v655 = vshrl.u32 %v654, 7
      %v656 = vsub.s32 0, %v655
      %v657 = vrot.slane %v317, %v656
      %v659 = vadd.f32 %v621, %v657
      %v660 = vadd.f32 %v622, %v657
      %v661 = vadd.f32 %v623, %v657
      %v662 = vadd.f32 %v624, %v657
      %v663 = vadd.f32 %v625, %v657
      %v664 = vadd.f32 %v626, %v657
      %v665 = vadd.f32 %v627, %v657
      %v666 = vadd.f32 %v628, %v657
      %v667 = vadd.f32 %v629, %v657
      %v668 = vadd.f32 %v630, %v657
      %v669 = vadd.f32 %v631, %v657
      %v670 = vadd.f32 %v632, %v657
      %v671 = vadd.f32 %v633, %v657
      %v672 = vadd.f32 %v634, %v657
      %v673 = vadd.f32 %v635, %v657
      %v674 = vadd.f32 %v636, %v657
      %v675 = vadd.f32 %v637, %v657
      %v676 = vadd.f32 %v638, %v657
      %v677 = vadd.f32 %v639, %v657
      %v678 = vadd.f32 %v640, %v657
      %v679 = vadd.f32 %v641, %v657
      %v680 = vadd.f32 %v642, %v657
      %v681 = vadd.f32 %v643, %v657
      %v682 = vadd.f32 %v644, %v657
      %v683 = vadd.f32 %v645, %v657
      %v684 = vadd.f32 %v646, %v657
      %v685 = vadd.f32 %v647, %v657
      %v686 = vadd.f32 %v648, %v657
      %v687 = vadd.f32 %v649, %v657
      %v688 = vadd.f32 %v650, %v657
      %v689 = vadd.f32 %v651, %v657
      %v690 = vadd.f32 %v652, %v657
      %v691 = vmax.f32 %v659, 0.0
      %v692 = vmax.f32 %v660, 0.0
      %v693 = vmax.f32 %v661, 0.0
      %v694 = vmax.f32 %v662, 0.0
      %v695 = vmax.f32 %v663, 0.0
      %v696 = vmax.f32 %v664, 0.0
      %v697 = vmax.f32 %v665, 0.0
      %v698 = vmax.f32 %v666, 0.0
      %v699 = vmax.f32 %v667, 0.0
      %v700 = vmax.f32 %v668, 0.0
      %v701 = vmax.f32 %v669, 0.0
      %v702 = vmax.f32 %v670, 0.0
      %v703 = vmax.f32 %v671, 0.0
      %v704 = vmax.f32 %v672, 0.0
      %v705 = vmax.f32 %v673, 0.0
      %v706 = vmax.f32 %v674, 0.0
      %v707 = vmax.f32 %v675, 0.0
      %v708 = vmax.f32 %v676, 0.0
      %v709 = vmax.f32 %v677, 0.0
      %v710 = vmax.f32 %v678, 0.0
      %v711 = vmax.f32 %v679, 0.0
      %v712 = vmax.f32 %v680, 0.0
      %v713 = vmax.f32 %v681, 0.0
      %v714 = vmax.f32 %v682, 0.0
      %v715 = vmax.f32 %v683, 0.0
      %v716 = vmax.f32 %v684, 0.0
      %v717 = vmax.f32 %v685, 0.0
      %v718 = vmax.f32 %v686, 0.0
      %v719 = vmax.f32 %v687, 0.0
      %v720 = vmax.f32 %v688, 0.0
      %v721 = vmax.f32 %v689, 0.0
      %v722 = vmax.f32 %v690, 0.0
      %v723 = vpack.c.bf16 %v692, %v691
      %v724 = vpack.c.bf16 %v694, %v693
      %v725 = vpack.c.bf16 %v696, %v695
      %v726 = vpack.c.bf16 %v698, %v697
      %v727 = vpack.c.bf16 %v700, %v699
      %v728 = vpack.c.bf16 %v702, %v701
      %v729 = vpack.c.bf16 %v704, %v703
      %v730 = vpack.c.bf16 %v706, %v705
      %v731 = vpack.c.bf16 %v708, %v707
      %v732 = vpack.c.bf16 %v710, %v709
      %v733 = vpack.c.bf16 %v712, %v711
      %v734 = vpack.c.bf16 %v714, %v713
      %v735 = vpack.c.bf16 %v716, %v715
      %v736 = vpack.c.bf16 %v718, %v717
      %v737 = vpack.c.bf16 %v720, %v719
      %v738 = vpack.c.bf16 %v722, %v721
      %v739 = vld [vmem:[%s4] sm:$0xf]
      %v740 = vld [vmem:[%s4 + $0x4] sm:$0xf]
      %v741 = vld [vmem:[%s4 + $0x8] sm:$0xf]
      %v742 = vld [vmem:[%s4 + $0xc] sm:$0xf]
      %v743 = vld [vmem:[%s4 + $0x10] sm:$0xf]
      %v744 = vld [vmem:[%s4 + $0x14] sm:$0xf]
      %v745 = vld [vmem:[%s4 + $0x18] sm:$0xf]
      %v746 = vld [vmem:[%s4 + $0x1c] sm:$0xf]
      %v747 = vld [vmem:[%s4 + $0x20] sm:$0xf]
      %v748 = vld [vmem:[%s4 + $0x24] sm:$0xf]
      %v749 = vld [vmem:[%s4 + $0x28] sm:$0xf]
      %v750 = vld [vmem:[%s4 + $0x2c] sm:$0xf]
      %v751 = vld [vmem:[%s4 + $0x30] sm:$0xf]
      %v752 = vld [vmem:[%s4 + $0x34] sm:$0xf]
      %v753 = vld [vmem:[%s4 + $0x38] sm:$0xf]
      %v754 = vld [vmem:[%s4 + $0x3c] sm:$0xf]
      %v755 = vld [vmem:[%s5] sm:$0x1]
      %v756 = vld [vmem:[%s6] sm:$0x1]
      %v773 = vunpack.c.l.b16 %v739
      %v774 = vunpack.c.l.b16 %v740
      %v775 = vunpack.c.l.b16 %v741
      %v776 = vunpack.c.l.b16 %v742
      %v777 = vunpack.c.l.b16 %v743
      %v778 = vunpack.c.l.b16 %v744
      %v779 = vunpack.c.l.b16 %v745
      %v780 = vunpack.c.l.b16 %v746
      %v781 = vunpack.c.l.b16 %v747
      %v782 = vunpack.c.l.b16 %v748
      %v783 = vunpack.c.l.b16 %v749
      %v784 = vunpack.c.l.b16 %v750
      %v785 = vunpack.c.l.b16 %v751
      %v786 = vunpack.c.l.b16 %v752
      %v787 = vunpack.c.l.b16 %v753
      %v788 = vunpack.c.l.b16 %v754
      %v789 = vpack.c.b16 %v774, %v773
      %v790 = vpack.c.b16 %v776, %v775
      %v791 = vpack.c.b16 %v778, %v777
      %v792 = vpack.c.b16 %v780, %v779
      %v793 = vpack.c.b16 %v782, %v781
      %v794 = vpack.c.b16 %v784, %v783
      %v795 = vpack.c.b16 %v786, %v785
      %v796 = vpack.c.b16 %v788, %v787
      %805 = vmatprep.subr.bf16.mxu0 0
      %806 = vmatpush1.bf16.msra.mxu0 %v789
      %807 = vmatprep.subr.bf16.mxu0 0
      %808 = vmatpush1.bf16.msra.mxu0 %v790
      %809 = vmatprep.subr.bf16.mxu0 0
      %810 = vmatpush1.bf16.msra.mxu0 %v791
      %811 = vmatprep.subr.bf16.mxu0 0
      %812 = vmatpush1.bf16.msra.mxu0 %v792
      %813 = vmatprep.subr.bf16.mxu0 0
      %814 = vmatpush1.bf16.msra.mxu0 %v793
      %815 = vmatprep.subr.bf16.mxu0 0
      %816 = vmatpush1.bf16.msra.mxu0 %v794
      %817 = vmatprep.subr.bf16.mxu0 0
      %818 = vmatpush1.bf16.msra.mxu0 %v795
      %819 = vmatprep.subr.bf16.mxu0 0
      %820 = vmatpush1.bf16.msra.mxu0 %v796
      %821 = vmatprep.subr.bf16.mxu0 0
      %822 = vmatpush1.bf16.msra.mxu0 0
      %823 = vmatprep.subr.bf16.mxu0 0
      %824 = vmatpush1.bf16.msra.mxu0 0
      %825 = vmatprep.subr.bf16.mxu0 0
      %826 = vmatpush1.bf16.msra.mxu0 0
      %827 = vmatprep.subr.bf16.mxu0 0
      %828 = vmatpush1.bf16.msra.mxu0 0
      %829 = vmatprep.subr.bf16.mxu0 0
      %830 = vmatpush1.bf16.msra.mxu0 0
      %831 = vmatprep.subr.bf16.mxu0 0
      %832 = vmatpush1.bf16.msra.mxu0 0
      %833 = vmatprep.subr.bf16.mxu0 0
      %834 = vmatpush1.bf16.msra.mxu0 0
      %835 = vmatprep.subr.bf16.mxu0 0
      %836 = vmatpush1.bf16.msra.mxu0 0
      %837 = vmatprep.mubr.bf16.mxu0 0
      %838 = vmatmul.mubr.bf16.gmra.mrb[0].mxu0 %v723
      %v839 = vpop.f32.mrb[0].mxu0
      %v840 = vadd.f32 0.0, %v839
      %v841 = vpop.f32.mrb[0].mxu0
      %v842 = vpop.f32.mrb[0].mxu0
      %v843 = vadd.f32 0.0, %v842
      %v844 = vpop.f32.mrb[0].mxu0
      %845 = vmatprep.mubr.bf16.mxu0 0
      %846 = vmatmul.mubr.bf16.gmra.mrb[0].mxu0 %v724
      %v847 = vpop.f32.mrb[0].mxu0
      %v848 = vadd.f32 0.0, %v847
      %v849 = vpop.f32.mrb[0].mxu0
      %v850 = vpop.f32.mrb[0].mxu0
      %v851 = vadd.f32 0.0, %v850
      %v852 = vpop.f32.mrb[0].mxu0
      %853 = vmatprep.mubr.bf16.mxu0 0
      %854 = vmatmul.mubr.bf16.gmra.mrb[0].mxu0 %v725
      %v855 = vpop.f32.mrb[0].mxu0
      %v856 = vadd.f32 0.0, %v855
      %v857 = vpop.f32.mrb[0].mxu0
      %v858 = vpop.f32.mrb[0].mxu0
      %v859 = vadd.f32 0.0, %v858
      %v860 = vpop.f32.mrb[0].mxu0
      %861 = vmatprep.mubr.bf16.mxu0 0
      %862 = vmatmul.mubr.bf16.gmra.mrb[0].mxu0 %v726
      %v863 = vpop.f32.mrb[0].mxu0
      %v864 = vadd.f32 0.0, %v863
      %v865 = vpop.f32.mrb[0].mxu0
      %v866 = vpop.f32.mrb[0].mxu0
      %v867 = vadd.f32 0.0, %v866
      %v868 = vpop.f32.mrb[0].mxu0
      %869 = vmatprep.mubr.bf16.mxu0 0
      %870 = vmatmul.mubr.bf16.gmra.mrb[0].mxu0 %v727
      %v871 = vpop.f32.mrb[0].mxu0
      %v872 = vadd.f32 0.0, %v871
      %v873 = vpop.f32.mrb[0].mxu0
      %v874 = vpop.f32.mrb[0].mxu0
      %v875 = vadd.f32 0.0, %v874
      %v876 = vpop.f32.mrb[0].mxu0
      %877 = vmatprep.mubr.bf16.mxu0 0
      %878 = vmatmul.mubr.bf16.gmra.mrb[0].mxu0 %v728
      %v879 = vpop.f32.mrb[0].mxu0
      %v880 = vadd.f32 0.0, %v879
      %v881 = vpop.f32.mrb[0].mxu0
      %v882 = vpop.f32.mrb[0].mxu0
      %v883 = vadd.f32 0.0, %v882
      %v884 = vpop.f32.mrb[0].mxu0
      %885 = vmatprep.mubr.bf16.mxu0 0
      %886 = vmatmul.mubr.bf16.gmra.mrb[0].mxu0 %v729
      %v887 = vpop.f32.mrb[0].mxu0
      %v888 = vadd.f32 0.0, %v887
      %v889 = vpop.f32.mrb[0].mxu0
      %v890 = vpop.f32.mrb[0].mxu0
      %v891 = vadd.f32 0.0, %v890
      %v892 = vpop.f32.mrb[0].mxu0
      %893 = vmatprep.mubr.bf16.mxu0 0
      %894 = vmatmul.mubr.bf16.gmra.mrb[0].mxu0 %v730
      %v895 = vpop.f32.mrb[0].mxu0
      %v896 = vadd.f32 0.0, %v895
      %v897 = vpop.f32.mrb[0].mxu0
      %v898 = vpop.f32.mrb[0].mxu0
      %v899 = vadd.f32 0.0, %v898
      %v900 = vpop.f32.mrb[0].mxu0
      %901 = vmatprep.mubr.bf16.mxu0 0
      %902 = vmatmul.mubr.bf16.gmra.mrb[0].mxu0 %v731
      %v903 = vpop.f32.mrb[0].mxu0
      %v904 = vadd.f32 0.0, %v903
      %v905 = vpop.f32.mrb[0].mxu0
      %v906 = vpop.f32.mrb[0].mxu0
      %v907 = vadd.f32 0.0, %v906
      %v908 = vpop.f32.mrb[0].mxu0
      %909 = vmatprep.mubr.bf16.mxu0 0
      %910 = vmatmul.mubr.bf16.gmra.mrb[0].mxu0 %v732
      %v911 = vpop.f32.mrb[0].mxu0
      %v912 = vadd.f32 0.0, %v911
      %v913 = vpop.f32.mrb[0].mxu0
      %v914 = vpop.f32.mrb[0].mxu0
      %v915 = vadd.f32 0.0, %v914
      %v916 = vpop.f32.mrb[0].mxu0
      %917 = vmatprep.mubr.bf16.mxu0 0
      %918 = vmatmul.mubr.bf16.gmra.mrb[0].mxu0 %v733
      %v919 = vpop.f32.mrb[0].mxu0
      %v920 = vadd.f32 0.0, %v919
      %v921 = vpop.f32.mrb[0].mxu0
      %v922 = vpop.f32.mrb[0].mxu0
      %v923 = vadd.f32 0.0, %v922
      %v924 = vpop.f32.mrb[0].mxu0
      %925 = vmatprep.mubr.bf16.mxu0 0
      %926 = vmatmul.mubr.bf16.gmra.mrb[0].mxu0 %v734
      %v927 = vpop.f32.mrb[0].mxu0
      %v928 = vadd.f32 0.0, %v927
      %v929 = vpop.f32.mrb[0].mxu0
      %v930 = vpop.f32.mrb[0].mxu0
      %v931 = vadd.f32 0.0, %v930
      %v932 = vpop.f32.mrb[0].mxu0
      %933 = vmatprep.mubr.bf16.mxu0 0
      %934 = vmatmul.mubr.bf16.gmra.mrb[0].mxu0 %v735
      %v935 = vpop.f32.mrb[0].mxu0
      %v936 = vadd.f32 0.0, %v935
      %v937 = vpop.f32.mrb[0].mxu0
      %v938 = vpop.f32.mrb[0].mxu0
      %v939 = vadd.f32 0.0, %v938
      %v940 = vpop.f32.mrb[0].mxu0
      %941 = vmatprep.mubr.bf16.mxu0 0
      %942 = vmatmul.mubr.bf16.gmra.mrb[0].mxu0 %v736
      %v943 = vpop.f32.mrb[0].mxu0
      %v944 = vadd.f32 0.0, %v943
      %v945 = vpop.f32.mrb[0].mxu0
      %v946 = vpop.f32.mrb[0].mxu0
      %v947 = vadd.f32 0.0, %v946
      %v948 = vpop.f32.mrb[0].mxu0
      %949 = vmatprep.mubr.bf16.mxu0 0
      %950 = vmatmul.mubr.bf16.gmra.mrb[0].mxu0 %v737
      %v951 = vpop.f32.mrb[0].mxu0
      %v952 = vadd.f32 0.0, %v951
      %v953 = vpop.f32.mrb[0].mxu0
      %v954 = vpop.f32.mrb[0].mxu0
      %v955 = vadd.f32 0.0, %v954
      %v956 = vpop.f32.mrb[0].mxu0
      %957 = vmatprep.mubr.bf16.mxu0 0
      %958 = vmatmul.mubr.bf16.gmra.mrb[0].mxu0 %v738
      %v959 = vpop.f32.mrb[0].mxu0
      %v960 = vadd.f32 0.0, %v959
      %v961 = vpop.f32.mrb[0].mxu0
      %v962 = vpop.f32.mrb[0].mxu0
      %v963 = vadd.f32 0.0, %v962
      %v964 = vpop.f32.mrb[0].mxu0
      %965 = vdwg.mxu0
      %v967 = vlaneseq
      %v968 = vshrl.u32 %v967, 7
      %v969 = vsub.s32 0, %v968
      %v970 = vrot.slane %v755, %v969
      %v972 = vmul.f32 %v840, %v970
      %v973 = vmul.f32 %v843, %v970
      %v974 = vmul.f32 %v848, %v970
      %v975 = vmul.f32 %v851, %v970
      %v976 = vmul.f32 %v856, %v970
      %v977 = vmul.f32 %v859, %v970
      %v978 = vmul.f32 %v864, %v970
      %v979 = vmul.f32 %v867, %v970
      %v980 = vmul.f32 %v872, %v970
      %v981 = vmul.f32 %v875, %v970
      %v982 = vmul.f32 %v880, %v970
      %v983 = vmul.f32 %v883, %v970
      %v984 = vmul.f32 %v888, %v970
      %v985 = vmul.f32 %v891, %v970
      %v986 = vmul.f32 %v896, %v970
      %v987 = vmul.f32 %v899, %v970
      %v988 = vmul.f32 %v904, %v970
      %v989 = vmul.f32 %v907, %v970
      %v990 = vmul.f32 %v912, %v970
      %v991 = vmul.f32 %v915, %v970
      %v992 = vmul.f32 %v920, %v970
      %v993 = vmul.f32 %v923, %v970
      %v994 = vmul.f32 %v928, %v970
      %v995 = vmul.f32 %v931, %v970
      %v996 = vmul.f32 %v936, %v970
      %v997 = vmul.f32 %v939, %v970
      %v998 = vmul.f32 %v944, %v970
      %v999 = vmul.f32 %v947, %v970
      %v1000 = vmul.f32 %v952, %v970
      %v1001 = vmul.f32 %v955, %v970
      %v1002 = vmul.f32 %v960, %v970
      %v1003 = vmul.f32 %v963, %v970
      %v1005 = vlaneseq
      %v1006 = vshrl.u32 %v1005, 7
      %v1007 = vsub.s32 0, %v1006
      %v1008 = vrot.slane %v756, %v1007
      %v1010 = vadd.f32 %v972, %v1008
      %v1011 = vadd.f32 %v973, %v1008
      %v1012 = vadd.f32 %v974, %v1008
      %v1013 = vadd.f32 %v975, %v1008
      %v1014 = vadd.f32 %v976, %v1008
      %v1015 = vadd.f32 %v977, %v1008
      %v1016 = vadd.f32 %v978, %v1008
      %v1017 = vadd.f32 %v979, %v1008
      %v1018 = vadd.f32 %v980, %v1008
      %v1019 = vadd.f32 %v981, %v1008
      %v1020 = vadd.f32 %v982, %v1008
      %v1021 = vadd.f32 %v983, %v1008
      %v1022 = vadd.f32 %v984, %v1008
      %v1023 = vadd.f32 %v985, %v1008
      %v1024 = vadd.f32 %v986, %v1008
      %v1025 = vadd.f32 %v987, %v1008
      %v1026 = vadd.f32 %v988, %v1008
      %v1027 = vadd.f32 %v989, %v1008
      %v1028 = vadd.f32 %v990, %v1008
      %v1029 = vadd.f32 %v991, %v1008
      %v1030 = vadd.f32 %v992, %v1008
      %v1031 = vadd.f32 %v993, %v1008
      %v1032 = vadd.f32 %v994, %v1008
      %v1033 = vadd.f32 %v995, %v1008
      %v1034 = vadd.f32 %v996, %v1008
      %v1035 = vadd.f32 %v997, %v1008
      %v1036 = vadd.f32 %v998, %v1008
      %v1037 = vadd.f32 %v999, %v1008
      %v1038 = vadd.f32 %v1000, %v1008
      %v1039 = vadd.f32 %v1001, %v1008
      %v1040 = vadd.f32 %v1002, %v1008
      %v1041 = vadd.f32 %v1003, %v1008
      %v1042 = vmax.f32 %v1010, 0.0
      %v1043 = vmax.f32 %v1011, 0.0
      %v1044 = vmax.f32 %v1012, 0.0
      %v1045 = vmax.f32 %v1013, 0.0
      %v1046 = vmax.f32 %v1014, 0.0
      %v1047 = vmax.f32 %v1015, 0.0
      %v1048 = vmax.f32 %v1016, 0.0
      %v1049 = vmax.f32 %v1017, 0.0
      %v1050 = vmax.f32 %v1018, 0.0
      %v1051 = vmax.f32 %v1019, 0.0
      %v1052 = vmax.f32 %v1020, 0.0
      %v1053 = vmax.f32 %v1021, 0.0
      %v1054 = vmax.f32 %v1022, 0.0
      %v1055 = vmax.f32 %v1023, 0.0
      %v1056 = vmax.f32 %v1024, 0.0
      %v1057 = vmax.f32 %v1025, 0.0
      %v1058 = vmax.f32 %v1026, 0.0
      %v1059 = vmax.f32 %v1027, 0.0
      %v1060 = vmax.f32 %v1028, 0.0
      %v1061 = vmax.f32 %v1029, 0.0
      %v1062 = vmax.f32 %v1030, 0.0
      %v1063 = vmax.f32 %v1031, 0.0
      %v1064 = vmax.f32 %v1032, 0.0
      %v1065 = vmax.f32 %v1033, 0.0
      %v1066 = vmax.f32 %v1034, 0.0
      %v1067 = vmax.f32 %v1035, 0.0
      %v1068 = vmax.f32 %v1036, 0.0
      %v1069 = vmax.f32 %v1037, 0.0
      %v1070 = vmax.f32 %v1038, 0.0
      %v1071 = vmax.f32 %v1039, 0.0
      %v1072 = vmax.f32 %v1040, 0.0
      %v1073 = vmax.f32 %v1041, 0.0
      %v1074 = vmax.f32 %v1042, %v1043
      %v1075 = vrot.slane %v1074, 4
      %v1076 = vmax.f32 %v1074, %v1075
      %v1077 = vrot.slane %v1076, 2
      %v1078 = vmax.f32 %v1076, %v1077
      %v1079 = vrot.slane %v1078, 1
      %v1080 = vmax.f32 %v1078, %v1079
      %v1081 = vmax.f32 %v1044, %v1045
      %v1082 = vrot.slane %v1081, 4
      %v1083 = vmax.f32 %v1081, %v1082
      %v1084 = vrot.slane %v1083, 2
      %v1085 = vmax.f32 %v1083, %v1084
      %v1086 = vrot.slane %v1085, 1
      %v1087 = vmax.f32 %v1085, %v1086
      %v1088 = vmax.f32 %v1046, %v1047
      %v1089 = vrot.slane %v1088, 4
      %v1090 = vmax.f32 %v1088, %v1089
      %v1091 = vrot.slane %v1090, 2
      %v1092 = vmax.f32 %v1090, %v1091
      %v1093 = vrot.slane %v1092, 1
      %v1094 = vmax.f32 %v1092, %v1093
      %v1095 = vmax.f32 %v1048, %v1049
      %v1096 = vrot.slane %v1095, 4
      %v1097 = vmax.f32 %v1095, %v1096
      %v1098 = vrot.slane %v1097, 2
      %v1099 = vmax.f32 %v1097, %v1098
      %v1100 = vrot.slane %v1099, 1
      %v1101 = vmax.f32 %v1099, %v1100
      %v1102 = vmax.f32 %v1050, %v1051
      %v1103 = vrot.slane %v1102, 4
      %v1104 = vmax.f32 %v1102, %v1103
      %v1105 = vrot.slane %v1104, 2
      %v1106 = vmax.f32 %v1104, %v1105
      %v1107 = vrot.slane %v1106, 1
      %v1108 = vmax.f32 %v1106, %v1107
      %v1109 = vmax.f32 %v1052, %v1053
      %v1110 = vrot.slane %v1109, 4
      %v1111 = vmax.f32 %v1109, %v1110
      %v1112 = vrot.slane %v1111, 2
      %v1113 = vmax.f32 %v1111, %v1112
      %v1114 = vrot.slane %v1113, 1
      %v1115 = vmax.f32 %v1113, %v1114
      %v1116 = vmax.f32 %v1054, %v1055
      %v1117 = vrot.slane %v1116, 4
      %v1118 = vmax.f32 %v1116, %v1117
      %v1119 = vrot.slane %v1118, 2
      %v1120 = vmax.f32 %v1118, %v1119
      %v1121 = vrot.slane %v1120, 1
      %v1122 = vmax.f32 %v1120, %v1121
      %v1123 = vmax.f32 %v1056, %v1057
      %v1124 = vrot.slane %v1123, 4
      %v1125 = vmax.f32 %v1123, %v1124
      %v1126 = vrot.slane %v1125, 2
      %v1127 = vmax.f32 %v1125, %v1126
      %v1128 = vrot.slane %v1127, 1
      %v1129 = vmax.f32 %v1127, %v1128
      %v1130 = vmax.f32 %v1058, %v1059
      %v1131 = vrot.slane %v1130, 4
      %v1132 = vmax.f32 %v1130, %v1131
      %v1133 = vrot.slane %v1132, 2
      %v1134 = vmax.f32 %v1132, %v1133
      %v1135 = vrot.slane %v1134, 1
      %v1136 = vmax.f32 %v1134, %v1135
      %v1137 = vmax.f32 %v1060, %v1061
      %v1138 = vrot.slane %v1137, 4
      %v1139 = vmax.f32 %v1137, %v1138
      %v1140 = vrot.slane %v1139, 2
      %v1141 = vmax.f32 %v1139, %v1140
      %v1142 = vrot.slane %v1141, 1
      %v1143 = vmax.f32 %v1141, %v1142
      %v1144 = vmax.f32 %v1062, %v1063
      %v1145 = vrot.slane %v1144, 4
      %v1146 = vmax.f32 %v1144, %v1145
      %v1147 = vrot.slane %v1146, 2
      %v1148 = vmax.f32 %v1146, %v1147
      %v1149 = vrot.slane %v1148, 1
      %v1150 = vmax.f32 %v1148, %v1149
      %v1151 = vmax.f32 %v1064, %v1065
      %v1152 = vrot.slane %v1151, 4
      %v1153 = vmax.f32 %v1151, %v1152
      %v1154 = vrot.slane %v1153, 2
      %v1155 = vmax.f32 %v1153, %v1154
      %v1156 = vrot.slane %v1155, 1
      %v1157 = vmax.f32 %v1155, %v1156
      %v1158 = vmax.f32 %v1066, %v1067
      %v1159 = vrot.slane %v1158, 4
      %v1160 = vmax.f32 %v1158, %v1159
      %v1161 = vrot.slane %v1160, 2
      %v1162 = vmax.f32 %v1160, %v1161
      %v1163 = vrot.slane %v1162, 1
      %v1164 = vmax.f32 %v1162, %v1163
      %v1165 = vmax.f32 %v1068, %v1069
      %v1166 = vrot.slane %v1165, 4
      %v1167 = vmax.f32 %v1165, %v1166
      %v1168 = vrot.slane %v1167, 2
      %v1169 = vmax.f32 %v1167, %v1168
      %v1170 = vrot.slane %v1169, 1
      %v1171 = vmax.f32 %v1169, %v1170
      %v1172 = vmax.f32 %v1070, %v1071
      %v1173 = vrot.slane %v1172, 4
      %v1174 = vmax.f32 %v1172, %v1173
      %v1175 = vrot.slane %v1174, 2
      %v1176 = vmax.f32 %v1174, %v1175
      %v1177 = vrot.slane %v1176, 1
      %v1178 = vmax.f32 %v1176, %v1177
      %v1179 = vmax.f32 %v1072, %v1073
      %v1180 = vrot.slane %v1179, 4
      %v1181 = vmax.f32 %v1179, %v1180
      %v1182 = vrot.slane %v1181, 2
      %v1183 = vmax.f32 %v1181, %v1182
      %v1184 = vrot.slane %v1183, 1
      %v1185 = vmax.f32 %v1183, %v1184
      %v1186 = vpack.c.bf16 %v1080, %v1080
      %v1187 = vpack.c.bf16 %v1087, %v1087
      %v1188 = vpack.c.bf16 %v1094, %v1094
      %v1189 = vpack.c.bf16 %v1101, %v1101
      %v1190 = vpack.c.bf16 %v1108, %v1108
      %v1191 = vpack.c.bf16 %v1115, %v1115
      %v1192 = vpack.c.bf16 %v1122, %v1122
      %v1193 = vpack.c.bf16 %v1129, %v1129
      %v1194 = vpack.c.bf16 %v1136, %v1136
      %v1195 = vpack.c.bf16 %v1143, %v1143
      %v1196 = vpack.c.bf16 %v1150, %v1150
      %v1197 = vpack.c.bf16 %v1157, %v1157
      %v1198 = vpack.c.bf16 %v1164, %v1164
      %v1199 = vpack.c.bf16 %v1171, %v1171
      %v1200 = vpack.c.bf16 %v1178, %v1178
      %v1201 = vpack.c.bf16 %v1185, %v1185
      %v1218 = vunpack.c.l.b16 %v1186
      %v1219 = vunpack.c.l.b16 %v1187
      %v1220 = vunpack.c.l.b16 %v1188
      %v1221 = vunpack.c.l.b16 %v1189
      %v1222 = vunpack.c.l.b16 %v1190
      %v1223 = vunpack.c.l.b16 %v1191
      %v1224 = vunpack.c.l.b16 %v1192
      %v1225 = vunpack.c.l.b16 %v1193
      %v1226 = vunpack.c.l.b16 %v1194
      %v1227 = vunpack.c.l.b16 %v1195
      %v1228 = vunpack.c.l.b16 %v1196
      %v1229 = vunpack.c.l.b16 %v1197
      %v1230 = vunpack.c.l.b16 %v1198
      %v1231 = vunpack.c.l.b16 %v1199
      %v1232 = vunpack.c.l.b16 %v1200
      %v1233 = vunpack.c.l.b16 %v1201
      %v1234 = vpack.c.b16 %v1218, %v1218
      %v1235 = vpack.c.b16 %v1219, %v1219
      %v1236 = vpack.c.b16 %v1220, %v1220
      %v1237 = vpack.c.b16 %v1221, %v1221
      %v1238 = vpack.c.b16 %v1222, %v1222
      %v1239 = vpack.c.b16 %v1223, %v1223
      %v1240 = vpack.c.b16 %v1224, %v1224
      %v1241 = vpack.c.b16 %v1225, %v1225
      %v1242 = vpack.c.b16 %v1226, %v1226
      %v1243 = vpack.c.b16 %v1227, %v1227
      %v1244 = vpack.c.b16 %v1228, %v1228
      %v1245 = vpack.c.b16 %v1229, %v1229
      %v1246 = vpack.c.b16 %v1230, %v1230
      %v1247 = vpack.c.b16 %v1231, %v1231
      %v1248 = vpack.c.b16 %v1232, %v1232
      %v1249 = vpack.c.b16 %v1233, %v1233
      %v1250 = vunpack.c.l.b16 %v1234
      %v1251 = vunpack.c.l.b16 %v1235
      %v1252 = vunpack.c.l.b16 %v1236
      %v1253 = vunpack.c.l.b16 %v1237
      %v1254 = vunpack.c.l.b16 %v1238
      %v1255 = vunpack.c.l.b16 %v1239
      %v1256 = vunpack.c.l.b16 %v1240
      %v1257 = vunpack.c.l.b16 %v1241
      %v1258 = vunpack.c.l.b16 %v1242
      %v1259 = vunpack.c.l.b16 %v1243
      %v1260 = vunpack.c.l.b16 %v1244
      %v1261 = vunpack.c.l.b16 %v1245
      %v1262 = vunpack.c.l.b16 %v1246
      %v1263 = vunpack.c.l.b16 %v1247
      %v1264 = vunpack.c.l.b16 %v1248
      %v1265 = vunpack.c.l.b16 %v1249
      %vm1266 = vcmask 1041409
      %v1267 = vsel %vm1266, %v1251, %v1250
      %vm1268 = vcmask 1042434
      %v1269 = vsel %vm1268, %v1252, %v1267
      %vm1270 = vcmask 1043459
      %v1271 = vsel %vm1270, %v1253, %v1269
      %vm1272 = vcmask 1044484
      %v1273 = vsel %vm1272, %v1254, %v1271
      %vm1274 = vcmask 1045509
      %v1275 = vsel %vm1274, %v1255, %v1273
      %vm1276 = vcmask 1046534
      %v1277 = vsel %vm1276, %v1256, %v1275
      %vm1278 = vcmask 1047559
      %v1279 = vsel %vm1278, %v1257, %v1277
      %v1280 = vsel %vm1266, %v1259, %v1258
      %v1281 = vsel %vm1268, %v1260, %v1280
      %v1282 = vsel %vm1270, %v1261, %v1281
      %v1283 = vsel %vm1272, %v1262, %v1282
      %v1284 = vsel %vm1274, %v1263, %v1283
      %v1285 = vsel %vm1276, %v1264, %v1284
      %v1286 = vsel %vm1278, %v1265, %v1285
      %v1287 = vpack.c.b16 %v1279, %v1279
      %v1288 = vpack.c.b16 %v1286, %v1286
      %1291 = vst [vmem:[%s280] sm:$0xf] %v1287
      %1292 = vst [vmem:[%s280 + $0x4] sm:$0xf] %v1288
      %s1293 = smul.u32 2, %s18
      %p1294 = scmp.lt.s32.totalorder %s1293, 3
      %s1295 = scalar_select %p1294, %s1293, 3
      %s1296 = smul.addr %s1295, 4
      %s1297 = scalar_lea.vmem %s7, %s1296
      // Predicated region
      $region49: #{sa_module_forward.10} parent=47 // pred_check
        %p1298 = pneg %p188
      $region50: #{sa_module_forward.10} parent=47 // pred_check_branch
        %1300 = sbr.rel (%p1298) target = $region52
      $region51: #{sa_module_forward.10} parent=47 // pred_region
        %s1301 = smul.u32 2, %s18
      $region52: #{sa_module_forward.10} parent=47 // pred_fallthru
        _
    $region48: #{sa_module_forward.10} parent=5 // pred_fallthru
      _
    %p1302 = scmp.le.s32.totalorder 2, %s13
    // Predicated region
    $region53: #{sa_module_forward.10} parent=5 // pred_check
      %p1303 = pneg %p1302
    $region54: #{sa_module_forward.10} parent=5 // pred_check_branch
      %1305 = sbr.rel (%p1303) target = $region56
    $region55: #{sa_module_forward.10} parent=5 // pred_region
      %s1306 = ssub.s32 %s13, 2
      // Predicated region
      $region57: #{sa_module_forward.10} parent=55 // pred_check
        %p1307 = pneg %p194
      $region58: #{sa_module_forward.10} parent=55 // pred_check_branch
        %1309 = sbr.rel (%p1307) target = $region60
      $region59: #{sa_module_forward.10} parent=55 // pred_region
        %s1310 = smul.u32 2, %s19
        %p1311 = scmp.lt.s32.totalorder %s1310, 3
        %s1312 = scalar_select %p1311, %s1310, 3
        %s1313 = smul.addr %s1312, 4
        %s1314 = scalar_lea.vmem %s7, %s1313
      $region60: #{sa_module_forward.10} parent=55 // pred_fallthru
        _
    $region56: #{sa_module_forward.10} parent=5 // pred_fallthru
      _
  $region6: #{sa_module_forward.10} parent=0 // loop_footer
    %s17 = sadd.s32 1, %s13
  $region7: #{sa_module_forward.10} parent=0 // loop_footer_branch
    %12 = sbr.rel target = $region3
  $region8: #{sa_module_forward.10} parent=0 // loop_exit
    _

// kernel: sa_module_forward.11
$region0: #{sa_module_forward.11}
  #allocation0 [shape = 'u32[]', space=smem, size = 0x4, offset = 0x4, fixed_abs, tag = 'smem constant byte address 0x4 - core index']
  #allocation1 [shape = 'u32[144,128]{1,0:T(1,128)}', space=vmem, size = 0x12000, scoped, tag = 'internal scratch']
  %s0 = inlined_call_operand.vmem [shape: bf16[32,256], index: 0, kind: input, shape index: {}]
  %s1 = inlined_call_operand.vmem [shape: bf16[256,128], index: 1, kind: input, shape index: {}]
  %s2 = inlined_call_operand.vmem [shape: f32[1,128], index: 2, kind: input, shape index: {}]
  %s3 = inlined_call_operand.vmem [shape: f32[1,128], index: 3, kind: input, shape index: {}]
  %s4 = inlined_call_operand.vmem [shape: bf16[128,128], index: 4, kind: input, shape index: {}]
  %s5 = inlined_call_operand.vmem [shape: f32[1,128], index: 5, kind: input, shape index: {}]
  %s6 = inlined_call_operand.vmem [shape: f32[1,128], index: 6, kind: input, shape index: {}]
  %s7 = inlined_call_operand.vmem [shape: bf16[128,128], index: 7, kind: input, shape index: {}]
  %s8 = inlined_call_operand.vmem [shape: f32[1,128], index: 8, kind: input, shape index: {}]
  %s9 = inlined_call_operand.hbm [shape: f32[32,128], index: 9, kind: output, shape index: {0}]
  %s10 = inlined_call_operand.vmem [shape: f32[32,128], index: 10, kind: output, shape index: {1}]
  %11 = xla_tuple %s9, %s10
  %s12 = sld [smem:[#allocation0]]
  $region77: #{sa_module_forward.11} parent=0
    _
  %s14 = ssub.s32 1, %s12
  %s15 = scalar_select 0, %s14, %s12
  $region1: #{sa_module_forward.11} parent=0
    #allocation2 [shape = 'u8[16384]{0}', space=vmem, size = 0x4000, scoped, tag = 'output window, operand 0']
    #allocation3 [shape = 's32[2]{0}', space=sflag, size = 0x8, scoped, tag = 'scoped memory for sa_module_forward.11']
    %16 = vsyncpa [#allocation3], 0
    %s17 = scalar_lea.sflag [#allocation3], 1
    %18 = vsyncpa %s17, 0
    loop: start=0, step=1, limit=4
    $region2: #{sa_module_forward.11} parent=1 // loop_pre_header
      _
    $region3: #{sa_module_forward.11} parent=1 // loop_header
      %s20 = sphi 0, %s24
      %p21 = scmp.ge.s32.totalorder %s20, 4
      %s30 = sphi 0, %s32
      %s33 = sphi 0, %s30
      %s34 = sphi 0, %s33
      %s50 = sphi 0, %s34
      %s54 = sphi 0, %s54
      %s56 = sphi 0, %s54
      %s57 = sphi 0, %s56
      %s71 = sphi 0, %s57
      %s75 = sphi 0, %s75
      %s77 = sphi 0, %s75
      %s78 = sphi 0, %s77
      %s92 = sphi 0, %s78
      %s96 = sphi 0, %s96
      %s98 = sphi 0, %s96
      %s99 = sphi 0, %s98
      %s113 = sphi 0, %s99
      %s117 = sphi 0, %s117
      %s119 = sphi 0, %s117
      %s120 = sphi 0, %s119
      %s134 = sphi 0, %s120
      %s138 = sphi 0, %s138
      %s140 = sphi 0, %s138
      %s141 = sphi 0, %s140
      %s155 = sphi 0, %s141
      %s159 = sphi 0, %s159
      %s161 = sphi 0, %s159
      %s162 = sphi 0, %s161
      %s176 = sphi 0, %s162
      %s180 = sphi 0, %s180
      %s182 = sphi 0, %s180
      %s183 = sphi 0, %s182
      %s197 = sphi 0, %s183
      %s201 = sphi 0, %s201
      %s203 = sphi 0, %s201
      %s204 = sphi 0, %s203
      %s218 = sphi 0, %s204
      %s224 = sphi 0, %s226
      %s227 = sphi 0, %s224
      %s228 = sphi 0, %s227
      %s244 = sphi 0, %s228
      %s250 = sphi 0, %s252
      %s253 = sphi 0, %s250
      %s254 = sphi 0, %s253
      %s270 = sphi 0, %s254
    $region4: #{sa_module_forward.11} parent=1 // loop_header_branch
      %23 = sbr.rel (%p21) target = $region8
    $region5: #{sa_module_forward.11} parent=1 // loop_body
      %s25 = ssub.s32 %s20, 1
      %s26 = ssub.s32 %s20, 2
      %s27 = sadd.s32 %s20, 1
      %s28 = ssub.s32 %s20, %s27
      %p29 = scmp.eq.s32.totalorder %s28, 0
      %s31 = sadd.s32 %s30, 1
      %s32 = scalar_select %p29, %s30, %s31
      %p35 = pneg %p29
      %p36 = scmp.eq.s32.totalorder %s20, 1
      %p37 = por %p35, %p36
      %p38 = scmp.ne.s32.totalorder %s30, %s33
      %p39 = scmp.eq.s32.totalorder %s20, 0
      %p40 = por %p38, %p39
      %p41 = scmp.ne.s32.totalorder %s30, %s33
      %p42 = scmp.eq.s32.totalorder %s25, 1
      %p43 = por %p41, %p42
      %p44 = scmp.ne.s32.totalorder %s33, %s34
      %p45 = scmp.eq.s32.totalorder %s25, 0
      %p46 = por %p44, %p45
      %p47 = scmp.ne.s32.totalorder %s33, %s34
      %p48 = scmp.eq.s32.totalorder %s26, 1
      %p49 = por %p47, %p48
      %p51 = scmp.ne.s32.totalorder %s34, %s50
      %p52 = scmp.eq.s32.totalorder %s26, 0
      %p53 = por %p51, %p52
      %s55 = sadd.s32 %s54, 1
      %p58 = scmp.eq.s32.totalorder %s20, 1
      %p59 = scmp.ne.s32.totalorder %s54, %s56
      %p60 = scmp.eq.s32.totalorder %s20, 0
      %p61 = por %p59, %p60
      %p62 = scmp.ne.s32.totalorder %s54, %s56
      %p63 = scmp.eq.s32.totalorder %s25, 1
      %p64 = por %p62, %p63
      %p65 = scmp.ne.s32.totalorder %s56, %s57
      %p66 = scmp.eq.s32.totalorder %s25, 0
      %p67 = por %p65, %p66
      %p68 = scmp.ne.s32.totalorder %s56, %s57
      %p69 = scmp.eq.s32.totalorder %s26, 1
      %p70 = por %p68, %p69
      %p72 = scmp.ne.s32.totalorder %s57, %s71
      %p73 = scmp.eq.s32.totalorder %s26, 0
      %p74 = por %p72, %p73
      %s76 = sadd.s32 %s75, 1
      %p79 = scmp.eq.s32.totalorder %s20, 1
      %p80 = scmp.ne.s32.totalorder %s75, %s77
      %p81 = scmp.eq.s32.totalorder %s20, 0
      %p82 = por %p80, %p81
      %p83 = scmp.ne.s32.totalorder %s75, %s77
      %p84 = scmp.eq.s32.totalorder %s25, 1
      %p85 = por %p83, %p84
      %p86 = scmp.ne.s32.totalorder %s77, %s78
      %p87 = scmp.eq.s32.totalorder %s25, 0
      %p88 = por %p86, %p87
      %p89 = scmp.ne.s32.totalorder %s77, %s78
      %p90 = scmp.eq.s32.totalorder %s26, 1
      %p91 = por %p89, %p90
      %p93 = scmp.ne.s32.totalorder %s78, %s92
      %p94 = scmp.eq.s32.totalorder %s26, 0
      %p95 = por %p93, %p94
      %s97 = sadd.s32 %s96, 1
      %p100 = scmp.eq.s32.totalorder %s20, 1
      %p101 = scmp.ne.s32.totalorder %s96, %s98
      %p102 = scmp.eq.s32.totalorder %s20, 0
      %p103 = por %p101, %p102
      %p104 = scmp.ne.s32.totalorder %s96, %s98
      %p105 = scmp.eq.s32.totalorder %s25, 1
      %p106 = por %p104, %p105
      %p107 = scmp.ne.s32.totalorder %s98, %s99
      %p108 = scmp.eq.s32.totalorder %s25, 0
      %p109 = por %p107, %p108
      %p110 = scmp.ne.s32.totalorder %s98, %s99
      %p111 = scmp.eq.s32.totalorder %s26, 1
      %p112 = por %p110, %p111
      %p114 = scmp.ne.s32.totalorder %s99, %s113
      %p115 = scmp.eq.s32.totalorder %s26, 0
      %p116 = por %p114, %p115
      %s118 = sadd.s32 %s117, 1
      %p121 = scmp.eq.s32.totalorder %s20, 1
      %p122 = scmp.ne.s32.totalorder %s117, %s119
      %p123 = scmp.eq.s32.totalorder %s20, 0
      %p124 = por %p122, %p123
      %p125 = scmp.ne.s32.totalorder %s117, %s119
      %p126 = scmp.eq.s32.totalorder %s25, 1
      %p127 = por %p125, %p126
      %p128 = scmp.ne.s32.totalorder %s119, %s120
      %p129 = scmp.eq.s32.totalorder %s25, 0
      %p130 = por %p128, %p129
      %p131 = scmp.ne.s32.totalorder %s119, %s120
      %p132 = scmp.eq.s32.totalorder %s26, 1
      %p133 = por %p131, %p132
      %p135 = scmp.ne.s32.totalorder %s120, %s134
      %p136 = scmp.eq.s32.totalorder %s26, 0
      %p137 = por %p135, %p136
      %s139 = sadd.s32 %s138, 1
      %p142 = scmp.eq.s32.totalorder %s20, 1
      %p143 = scmp.ne.s32.totalorder %s138, %s140
      %p144 = scmp.eq.s32.totalorder %s20, 0
      %p145 = por %p143, %p144
      %p146 = scmp.ne.s32.totalorder %s138, %s140
      %p147 = scmp.eq.s32.totalorder %s25, 1
      %p148 = por %p146, %p147
      %p149 = scmp.ne.s32.totalorder %s140, %s141
      %p150 = scmp.eq.s32.totalorder %s25, 0
      %p151 = por %p149, %p150
      %p152 = scmp.ne.s32.totalorder %s140, %s141
      %p153 = scmp.eq.s32.totalorder %s26, 1
      %p154 = por %p152, %p153
      %p156 = scmp.ne.s32.totalorder %s141, %s155
      %p157 = scmp.eq.s32.totalorder %s26, 0
      %p158 = por %p156, %p157
      %s160 = sadd.s32 %s159, 1
      %p163 = scmp.eq.s32.totalorder %s20, 1
      %p164 = scmp.ne.s32.totalorder %s159, %s161
      %p165 = scmp.eq.s32.totalorder %s20, 0
      %p166 = por %p164, %p165
      %p167 = scmp.ne.s32.totalorder %s159, %s161
      %p168 = scmp.eq.s32.totalorder %s25, 1
      %p169 = por %p167, %p168
      %p170 = scmp.ne.s32.totalorder %s161, %s162
      %p171 = scmp.eq.s32.totalorder %s25, 0
      %p172 = por %p170, %p171
      %p173 = scmp.ne.s32.totalorder %s161, %s162
      %p174 = scmp.eq.s32.totalorder %s26, 1
      %p175 = por %p173, %p174
      %p177 = scmp.ne.s32.totalorder %s162, %s176
      %p178 = scmp.eq.s32.totalorder %s26, 0
      %p179 = por %p177, %p178
      %s181 = sadd.s32 %s180, 1
      %p184 = scmp.eq.s32.totalorder %s20, 1
      %p185 = scmp.ne.s32.totalorder %s180, %s182
      %p186 = scmp.eq.s32.totalorder %s20, 0
      %p187 = por %p185, %p186
      %p188 = scmp.ne.s32.totalorder %s180, %s182
      %p189 = scmp.eq.s32.totalorder %s25, 1
      %p190 = por %p188, %p189
      %p191 = scmp.ne.s32.totalorder %s182, %s183
      %p192 = scmp.eq.s32.totalorder %s25, 0
      %p193 = por %p191, %p192
      %p194 = scmp.ne.s32.totalorder %s182, %s183
      %p195 = scmp.eq.s32.totalorder %s26, 1
      %p196 = por %p194, %p195
      %p198 = scmp.ne.s32.totalorder %s183, %s197
      %p199 = scmp.eq.s32.totalorder %s26, 0
      %p200 = por %p198, %p199
      %s202 = sadd.s32 %s201, 1
      %p205 = scmp.eq.s32.totalorder %s20, 1
      %p206 = scmp.ne.s32.totalorder %s201, %s203
      %p207 = scmp.eq.s32.totalorder %s20, 0
      %p208 = por %p206, %p207
      %p209 = scmp.ne.s32.totalorder %s201, %s203
      %p210 = scmp.eq.s32.totalorder %s25, 1
      %p211 = por %p209, %p210
      %p212 = scmp.ne.s32.totalorder %s203, %s204
      %p213 = scmp.eq.s32.totalorder %s25, 0
      %p214 = por %p212, %p213
      %p215 = scmp.ne.s32.totalorder %s203, %s204
      %p216 = scmp.eq.s32.totalorder %s26, 1
      %p217 = por %p215, %p216
      %p219 = scmp.ne.s32.totalorder %s204, %s218
      %p220 = scmp.eq.s32.totalorder %s26, 0
      %p221 = por %p219, %p220
      %s222 = ssub.s32 %s20, %s27
      %p223 = scmp.eq.s32.totalorder %s222, 0
      %s225 = sadd.s32 %s224, 1
      %s226 = scalar_select %p223, %s224, %s225
      %p229 = pneg %p223
      %p230 = scmp.eq.s32.totalorder %s20, 1
      %p231 = por %p229, %p230
      %p232 = scmp.ne.s32.totalorder %s224, %s227
      %p233 = scmp.eq.s32.totalorder %s20, 0
      %p234 = por %p232, %p233
      %p235 = scmp.ne.s32.totalorder %s224, %s227
      %p236 = scmp.eq.s32.totalorder %s25, 1
      %p237 = por %p235, %p236
      %p238 = scmp.ne.s32.totalorder %s227, %s228
      %p239 = scmp.eq.s32.totalorder %s25, 0
      %p240 = por %p238, %p239
      %p241 = scmp.ne.s32.totalorder %s227, %s228
      %p242 = scmp.eq.s32.totalorder %s26, 1
      %p243 = por %p241, %p242
      %p245 = scmp.ne.s32.totalorder %s228, %s244
      %p246 = scmp.eq.s32.totalorder %s26, 0
      %p247 = por %p245, %p246
      %s248 = ssub.s32 %s20, %s27
      %p249 = scmp.eq.s32.totalorder %s248, 0
      %s251 = sadd.s32 %s250, 1
      %s252 = scalar_select %p249, %s250, %s251
      %p255 = pneg %p249
      %p256 = scmp.eq.s32.totalorder %s20, 1
      %p257 = por %p255, %p256
      %p258 = scmp.ne.s32.totalorder %s250, %s253
      %p259 = scmp.eq.s32.totalorder %s20, 0
      %p260 = por %p258, %p259
      %p261 = scmp.ne.s32.totalorder %s250, %s253
      %p262 = scmp.eq.s32.totalorder %s25, 1
      %p263 = por %p261, %p262
      %p264 = scmp.ne.s32.totalorder %s253, %s254
      %p265 = scmp.eq.s32.totalorder %s25, 0
      %p266 = por %p264, %p265
      %p267 = scmp.ne.s32.totalorder %s253, %s254
      %p268 = scmp.eq.s32.totalorder %s26, 1
      %p269 = por %p267, %p268
      %p271 = scmp.ne.s32.totalorder %s254, %s270
      %p272 = scmp.eq.s32.totalorder %s26, 0
      %p273 = por %p271, %p272
      %p274 = scmp.le.s32.totalorder 1, %s20
      %p275 = scmp.lt.s32.totalorder %s20, 3
      %p276 = pnand %p274, %p275
      %p277 = pneg %p276
      // Predicated region
      $region9: #{sa_module_forward.11} parent=5 // pred_check
        _
      $region10: #{sa_module_forward.11} parent=5 // pred_check_branch
        %279 = sbr.rel (%p276) target = $region12
      $region11: #{sa_module_forward.11} parent=5 // pred_region
        %s280 = ssub.s32 %s20, 1
        // Predicated region
        $region13: #{sa_module_forward.11} parent=11 // pred_check
          %p281 = pneg %p67
        $region14: #{sa_module_forward.11} parent=11 // pred_check_branch
          %283 = sbr.rel (%p281) target = $region16
        $region15: #{sa_module_forward.11} parent=11 // pred_region
          _
        $region16: #{sa_module_forward.11} parent=11 // pred_fallthru
          _
        // Predicated region
        $region17: #{sa_module_forward.11} parent=11 // pred_check
          %p284 = pneg %p88
        $region18: #{sa_module_forward.11} parent=11 // pred_check_branch
          %286 = sbr.rel (%p284) target = $region20
        $region19: #{sa_module_forward.11} parent=11 // pred_region
          _
        $region20: #{sa_module_forward.11} parent=11 // pred_fallthru
          _
        // Predicated region
        $region21: #{sa_module_forward.11} parent=11 // pred_check
          %p287 = pneg %p109
        $region22: #{sa_module_forward.11} parent=11 // pred_check_branch
          %289 = sbr.rel (%p287) target = $region24
        $region23: #{sa_module_forward.11} parent=11 // pred_region
          _
        $region24: #{sa_module_forward.11} parent=11 // pred_fallthru
          _
        // Predicated region
        $region25: #{sa_module_forward.11} parent=11 // pred_check
          %p290 = pneg %p130
        $region26: #{sa_module_forward.11} parent=11 // pred_check_branch
          %292 = sbr.rel (%p290) target = $region28
        $region27: #{sa_module_forward.11} parent=11 // pred_region
          _
        $region28: #{sa_module_forward.11} parent=11 // pred_fallthru
          _
        // Predicated region
        $region29: #{sa_module_forward.11} parent=11 // pred_check
          %p293 = pneg %p151
        $region30: #{sa_module_forward.11} parent=11 // pred_check_branch
          %295 = sbr.rel (%p293) target = $region32
        $region31: #{sa_module_forward.11} parent=11 // pred_region
          _
        $region32: #{sa_module_forward.11} parent=11 // pred_fallthru
          _
        // Predicated region
        $region33: #{sa_module_forward.11} parent=11 // pred_check
          %p296 = pneg %p172
        $region34: #{sa_module_forward.11} parent=11 // pred_check_branch
          %298 = sbr.rel (%p296) target = $region36
        $region35: #{sa_module_forward.11} parent=11 // pred_region
          _
        $region36: #{sa_module_forward.11} parent=11 // pred_fallthru
          _
        // Predicated region
        $region37: #{sa_module_forward.11} parent=11 // pred_check
          %p299 = pneg %p193
        $region38: #{sa_module_forward.11} parent=11 // pred_check_branch
          %301 = sbr.rel (%p299) target = $region40
        $region39: #{sa_module_forward.11} parent=11 // pred_region
          _
        $region40: #{sa_module_forward.11} parent=11 // pred_fallthru
          _
        // Predicated region
        $region41: #{sa_module_forward.11} parent=11 // pred_check
          %p302 = pneg %p214
        $region42: #{sa_module_forward.11} parent=11 // pred_check_branch
          %304 = sbr.rel (%p302) target = $region44
        $region43: #{sa_module_forward.11} parent=11 // pred_region
          _
        $region44: #{sa_module_forward.11} parent=11 // pred_fallthru
          _
      $region12: #{sa_module_forward.11} parent=5 // pred_fallthru
        _
      %p305 = scmp.lt.s32.totalorder %s20, 2
      // Predicated region
      $region45: #{sa_module_forward.11} parent=5 // pred_check
        %p306 = pneg %p305
      $region46: #{sa_module_forward.11} parent=5 // pred_check_branch
        %308 = sbr.rel (%p306) target = $region48
      $region47: #{sa_module_forward.11} parent=5 // pred_region
        // Predicated region
        $region49: #{sa_module_forward.11} parent=47 // pred_check
          %p309 = pneg %p40
        $region50: #{sa_module_forward.11} parent=47 // pred_check_branch
          %311 = sbr.rel (%p309) target = $region52
        $region51: #{sa_module_forward.11} parent=47 // pred_region
          %s312 = smul.u32 2, %s20
          %p313 = scmp.lt.s32.totalorder %s312, 3
          %s314 = scalar_select %p313, %s312, 3
          %s315 = smul.addr %s314, 2
          %s316 = smul.addr %s315, 4
          %s317 = scalar_lea.vmem %s0, %s316
          %s318 = smul.u32 2, %s20
        $region52: #{sa_module_forward.11} parent=47 // pred_fallthru
          _
      $region48: #{sa_module_forward.11} parent=5 // pred_fallthru
        _
      %p319 = scmp.le.s32.totalorder 1, %s20
      %p320 = scmp.lt.s32.totalorder %s20, 3
      %p321 = pnand %p319, %p320
      %p322 = pneg %p321
      // Predicated region
      $region53: #{sa_module_forward.11} parent=5 // pred_check
        _
      $region54: #{sa_module_forward.11} parent=5 // pred_check_branch
        %324 = sbr.rel (%p321) target = $region56
      $region55: #{sa_module_forward.11} parent=5 // pred_region
        %s325 = ssub.s32 %s20, 1
        %s326 = smul.u32 2, %s25
        %p327 = scmp.lt.s32.totalorder %s326, 3
        %s328 = scalar_select %p327, %s326, 3
        %s329 = smul.addr %s328, 2
        %s330 = smul.addr %s329, 4
        %s331 = scalar_lea.vmem %s0, %s330
        %p332 = pneg %p46
        %p333 = pneg %p43
        %p334 = pneg %p67
        %p335 = pneg %p64
        %p336 = pneg %p88
        %p337 = pneg %p85
        %p338 = pneg %p109
        %p339 = pneg %p106
        %p340 = pneg %p130
        %p341 = pneg %p127
        %p342 = pneg %p151
        %p343 = pneg %p148
        %p344 = pneg %p172
        %p345 = pneg %p169
        %p346 = pneg %p193
        %p347 = pneg %p190
        %p348 = pneg %p214
        %p349 = pneg %p211
        %p350 = pneg %p240
        %p351 = pneg %p237
        %s352 = sand.u32 %s227, 1
        %s353 = scalar_lea.sflag [#allocation3], %s352
        %s354 = sand.u32 %s227, 1
        %s355 = smul.addr %s354, 16
        %s356 = scalar_lea.vmem [#allocation2], %s355
        %p357 = pneg %p266
        %p358 = pneg %p263
        %s359 = smul.u32 2, %s25
        %p360 = scmp.lt.s32.totalorder %s359, 3
        %s361 = scalar_select %p360, %s359, 3
        %s362 = smul.addr %s361, 8
        %s363 = scalar_lea.vmem %s10, %s362
        %s364 = smul.u32 2, %s25
        %p365 = scmp.lt.s32.totalorder %s364, 3
        %s366 = scalar_select %p365, %s364, 3
        %s367 = smul.addr %s366, 2
        %s368 = smul.addr %s367, 4
        %s369 = scalar_lea.vmem %s0, %s368
        %s370 = smul.u32 2, %s25
        %s371 = smul.u32 2, %s25
        %s372 = smul.u32 2, %s25
        %p373 = scmp.lt.s32.totalorder %s372, 3
        %s374 = scalar_select %p373, %s372, 3
        %s375 = smul.addr %s374, 8
        %s376 = scalar_lea.vmem %s10, %s375
        %s377 = smul.u32 2, %s25
        %v379 = vld [vmem:[%s369] sm:$0xff]
        %v380 = vld [vmem:[%s369 + $0x8] sm:$0xff]
        %v381 = vld [vmem:[%s1] sm:$0xf]
        %v382 = vld [vmem:[%s1 + $0x4] sm:$0xf]
        %v383 = vld [vmem:[%s1 + $0x8] sm:$0xf]
        %v384 = vld [vmem:[%s1 + $0xc] sm:$0xf]
        %v385 = vld [vmem:[%s1 + $0x10] sm:$0xf]
        %v386 = vld [vmem:[%s1 + $0x14] sm:$0xf]
        %v387 = vld [vmem:[%s1 + $0x18] sm:$0xf]
        %v388 = vld [vmem:[%s1 + $0x1c] sm:$0xf]
        %v389 = vld [vmem:[%s1 + $0x20] sm:$0xf]
        %v390 = vld [vmem:[%s1 + $0x24] sm:$0xf]
        %v391 = vld [vmem:[%s1 + $0x28] sm:$0xf]
        %v392 = vld [vmem:[%s1 + $0x2c] sm:$0xf]
        %v393 = vld [vmem:[%s1 + $0x30] sm:$0xf]
        %v394 = vld [vmem:[%s1 + $0x34] sm:$0xf]
        %v395 = vld [vmem:[%s1 + $0x38] sm:$0xf]
        %v396 = vld [vmem:[%s1 + $0x3c] sm:$0xf]
        %v397 = vld [vmem:[%s1 + $0x40] sm:$0xf]
        %v398 = vld [vmem:[%s1 + $0x44] sm:$0xf]
        %v399 = vld [vmem:[%s1 + $0x48] sm:$0xf]
        %v400 = vld [vmem:[%s1 + $0x4c] sm:$0xf]
        %v401 = vld [vmem:[%s1 + $0x50] sm:$0xf]
        %v402 = vld [vmem:[%s1 + $0x54] sm:$0xf]
        %v403 = vld [vmem:[%s1 + $0x58] sm:$0xf]
        %v404 = vld [vmem:[%s1 + $0x5c] sm:$0xf]
        %v405 = vld [vmem:[%s1 + $0x60] sm:$0xf]
        %v406 = vld [vmem:[%s1 + $0x64] sm:$0xf]
        %v407 = vld [vmem:[%s1 + $0x68] sm:$0xf]
        %v408 = vld [vmem:[%s1 + $0x6c] sm:$0xf]
        %v409 = vld [vmem:[%s1 + $0x70] sm:$0xf]
        %v410 = vld [vmem:[%s1 + $0x74] sm:$0xf]
        %v411 = vld [vmem:[%s1 + $0x78] sm:$0xf]
        %v412 = vld [vmem:[%s1 + $0x7c] sm:$0xf]
        %v413 = vld [vmem:[%s2] sm:$0x1]
        %v414 = vld [vmem:[%s3] sm:$0x1]
        %v417 = vunpack.c.l.b16 %v379
        %v418 = vunpack.c.h.b16 %v379
        %v419 = vunpack.c.l.b16 %v380
        %v420 = vunpack.c.h.b16 %v380
        %v421 = vpack.c.b16 %v419, %v417
        %v422 = vpack.c.b16 %v420, %v418
        %v457 = vunpack.c.l.b16 %v381
        %v458 = vunpack.c.l.b16 %v382
        %v459 = vunpack.c.l.b16 %v383
        %v460 = vunpack.c.l.b16 %v384
        %v461 = vunpack.c.l.b16 %v385
        %v462 = vunpack.c.l.b16 %v386
        %v463 = vunpack.c.l.b16 %v387
        %v464 = vunpack.c.l.b16 %v388
        %v465 = vunpack.c.l.b16 %v389
        %v466 = vunpack.c.l.b16 %v390
        %v467 = vunpack.c.l.b16 %v391
        %v468 = vunpack.c.l.b16 %v392
        %v469 = vunpack.c.l.b16 %v393
        %v470 = vunpack.c.l.b16 %v394
        %v471 = vunpack.c.l.b16 %v395
        %v472 = vunpack.c.l.b16 %v396
        %v473 = vunpack.c.l.b16 %v397
        %v474 = vunpack.c.l.b16 %v398
        %v475 = vunpack.c.l.b16 %v399
        %v476 = vunpack.c.l.b16 %v400
        %v477 = vunpack.c.l.b16 %v401
        %v478 = vunpack.c.l.b16 %v402
        %v479 = vunpack.c.l.b16 %v403
        %v480 = vunpack.c.l.b16 %v404
        %v481 = vunpack.c.l.b16 %v405
        %v482 = vunpack.c.l.b16 %v406
        %v483 = vunpack.c.l.b16 %v407
        %v484 = vunpack.c.l.b16 %v408
        %v485 = vunpack.c.l.b16 %v409
        %v486 = vunpack.c.l.b16 %v410
        %v487 = vunpack.c.l.b16 %v411
        %v488 = vunpack.c.l.b16 %v412
        %v489 = vpack.c.b16 %v458, %v457
        %v490 = vpack.c.b16 %v460, %v459
        %v491 = vpack.c.b16 %v462, %v461
        %v492 = vpack.c.b16 %v464, %v463
        %v493 = vpack.c.b16 %v466, %v465
        %v494 = vpack.c.b16 %v468, %v467
        %v495 = vpack.c.b16 %v470, %v469
        %v496 = vpack.c.b16 %v472, %v471
        %v497 = vpack.c.b16 %v474, %v473
        %v498 = vpack.c.b16 %v476, %v475
        %v499 = vpack.c.b16 %v478, %v477
        %v500 = vpack.c.b16 %v480, %v479
        %v501 = vpack.c.b16 %v482, %v481
        %v502 = vpack.c.b16 %v484, %v483
        %v503 = vpack.c.b16 %v486, %v485
        %v504 = vpack.c.b16 %v488, %v487
        %521 = vmatprep.subr.bf16.mxu0 0
        %522 = vmatpush1.bf16.msra.mxu0 %v489
        %523 = vmatprep.subr.bf16.mxu0 0
        %524 = vmatpush1.bf16.msra.mxu0 %v490
        %525 = vmatprep.subr.bf16.mxu0 0
        %526 = vmatpush1.bf16.msra.mxu0 %v491
        %527 = vmatprep.subr.bf16.mxu0 0
        %528 = vmatpush1.bf16.msra.mxu0 %v492
        %529 = vmatprep.subr.bf16.mxu0 0
        %530 = vmatpush1.bf16.msra.mxu0 %v493
        %531 = vmatprep.subr.bf16.mxu0 0
        %532 = vmatpush1.bf16.msra.mxu0 %v494
        %533 = vmatprep.subr.bf16.mxu0 0
        %534 = vmatpush1.bf16.msra.mxu0 %v495
        %535 = vmatprep.subr.bf16.mxu0 0
        %536 = vmatpush1.bf16.msra.mxu0 %v496
        %537 = vmatprep.subr.bf16.mxu0 0
        %538 = vmatpush1.bf16.msra.mxu0 %v497
        %539 = vmatprep.subr.bf16.mxu0 0
        %540 = vmatpush1.bf16.msra.mxu0 %v498
        %541 = vmatprep.subr.bf16.mxu0 0
        %542 = vmatpush1.bf16.msra.mxu0 %v499
        %543 = vmatprep.subr.bf16.mxu0 0
        %544 = vmatpush1.bf16.msra.mxu0 %v500
        %545 = vmatprep.subr.bf16.mxu0 0
        %546 = vmatpush1.bf16.msra.mxu0 %v501
        %547 = vmatprep.subr.bf16.mxu0 0
        %548 = vmatpush1.bf16.msra.mxu0 %v502
        %549 = vmatprep.subr.bf16.mxu0 0
        %550 = vmatpush1.bf16.msra.mxu0 %v503
        %551 = vmatprep.subr.bf16.mxu0 0
        %552 = vmatpush1.bf16.msra.mxu0 %v504
        %553 = vmatprep.mubr.bf16.mxu0 %v422
        %554 = vmatmul.mubr.bf16.gmra.mrb[0].mxu0 %v421
        %v555 = vpop.f32.mrb[0].mxu0
        %v556 = vadd.f32 0.0, %v555
        %v557 = vpop.f32.mrb[0].mxu0
        %v558 = vpop.f32.mrb[0].mxu0
        %v559 = vadd.f32 0.0, %v558
        %v560 = vpop.f32.mrb[0].mxu0
        %561 = vdwg.mxu0
        %v563 = vlaneseq
        %v564 = vshrl.u32 %v563, 7
        %v565 = vsub.s32 0, %v564
        %v566 = vrot.slane %v413, %v565
        %v568 = vmul.f32 %v556, %v566
        %v569 = vmul.f32 %v559, %v566
        %v571 = vlaneseq
        %v572 = vshrl.u32 %v571, 7
        %v573 = vsub.s32 0, %v572
        %v574 = vrot.slane %v414, %v573
        %v576 = vadd.f32 %v568, %v574
        %v577 = vadd.f32 %v569, %v574
        %v578 = vmax.f32 %v576, 0.0
        %v579 = vmax.f32 %v577, 0.0
        %v580 = vpack.c.bf16 %v579, %v578
        %581 = vst [vmem:[%s356] sm:$0xff] %v578
        %582 = vst [vmem:[%s356 + $0x8] sm:$0xff] %v579
        %v583 = vld [vmem:[%s4] sm:$0xf]
        %v584 = vld [vmem:[%s4 + $0x4] sm:$0xf]
        %v585 = vld [vmem:[%s4 + $0x8] sm:$0xf]
        %v586 = vld [vmem:[%s4 + $0xc] sm:$0xf]
        %v587 = vld [vmem:[%s4 + $0x10] sm:$0xf]
        %v588 = vld [vmem:[%s4 + $0x14] sm:$0xf]
        %v589 = vld [vmem:[%s4 + $0x18] sm:$0xf]
        %v590 = vld [vmem:[%s4 + $0x1c] sm:$0xf]
        %v591 = vld [vmem:[%s4 + $0x20] sm:$0xf]
        %v592 = vld [vmem:[%s4 + $0x24] sm:$0xf]
        %v593 = vld [vmem:[%s4 + $0x28] sm:$0xf]
        %v594 = vld [vmem:[%s4 + $0x2c] sm:$0xf]
        %v595 = vld [vmem:[%s4 + $0x30] sm:$0xf]
        %v596 = vld [vmem:[%s4 + $0x34] sm:$0xf]
        %v597 = vld [vmem:[%s4 + $0x38] sm:$0xf]
        %v598 = vld [vmem:[%s4 + $0x3c] sm:$0xf]
        %v599 = vld [vmem:[%s5] sm:$0x1]
        %v600 = vld [vmem:[%s6] sm:$0x1]
        %v617 = vunpack.c.l.b16 %v583
        %v618 = vunpack.c.l.b16 %v584
        %v619 = vunpack.c.l.b16 %v585
        %v620 = vunpack.c.l.b16 %v586
        %v621 = vunpack.c.l.b16 %v587
        %v622 = vunpack.c.l.b16 %v588
        %v623 = vunpack.c.l.b16 %v589
        %v624 = vunpack.c.l.b16 %v590
        %v625 = vunpack.c.l.b16 %v591
        %v626 = vunpack.c.l.b16 %v592
        %v627 = vunpack.c.l.b16 %v593
        %v628 = vunpack.c.l.b16 %v594
        %v629 = vunpack.c.l.b16 %v595
        %v630 = vunpack.c.l.b16 %v596
        %v631 = vunpack.c.l.b16 %v597
        %v632 = vunpack.c.l.b16 %v598
        %v633 = vpack.c.b16 %v618, %v617
        %v634 = vpack.c.b16 %v620, %v619
        %v635 = vpack.c.b16 %v622, %v621
        %v636 = vpack.c.b16 %v624, %v623
        %v637 = vpack.c.b16 %v626, %v625
        %v638 = vpack.c.b16 %v628, %v627
        %v639 = vpack.c.b16 %v630, %v629
        %v640 = vpack.c.b16 %v632, %v631
        %649 = vmatprep.subr.bf16.mxu0 0
        %650 = vmatpush1.bf16.msra.mxu0 %v633
        %651 = vmatprep.subr.bf16.mxu0 0
        %652 = vmatpush1.bf16.msra.mxu0 %v634
        %653 = vmatprep.subr.bf16.mxu0 0
        %654 = vmatpush1.bf16.msra.mxu0 %v635
        %655 = vmatprep.subr.bf16.mxu0 0
        %656 = vmatpush1.bf16.msra.mxu0 %v636
        %657 = vmatprep.subr.bf16.mxu0 0
        %658 = vmatpush1.bf16.msra.mxu0 %v637
        %659 = vmatprep.subr.bf16.mxu0 0
        %660 = vmatpush1.bf16.msra.mxu0 %v638
        %661 = vmatprep.subr.bf16.mxu0 0
        %662 = vmatpush1.bf16.msra.mxu0 %v639
        %663 = vmatprep.subr.bf16.mxu0 0
        %664 = vmatpush1.bf16.msra.mxu0 %v640
        %665 = vmatprep.subr.bf16.mxu0 0
        %666 = vmatpush1.bf16.msra.mxu0 0
        %667 = vmatprep.subr.bf16.mxu0 0
        %668 = vmatpush1.bf16.msra.mxu0 0
        %669 = vmatprep.subr.bf16.mxu0 0
        %670 = vmatpush1.bf16.msra.mxu0 0
        %671 = vmatprep.subr.bf16.mxu0 0
        %672 = vmatpush1.bf16.msra.mxu0 0
        %673 = vmatprep.subr.bf16.mxu0 0
        %674 = vmatpush1.bf16.msra.mxu0 0
        %675 = vmatprep.subr.bf16.mxu0 0
        %676 = vmatpush1.bf16.msra.mxu0 0
        %677 = vmatprep.subr.bf16.mxu0 0
        %678 = vmatpush1.bf16.msra.mxu0 0
        %679 = vmatprep.subr.bf16.mxu0 0
        %680 = vmatpush1.bf16.msra.mxu0 0
        %681 = vmatprep.mubr.bf16.mxu0 0
        %682 = vmatmul.mubr.bf16.gmra.mrb[0].mxu0 %v580
        %v683 = vpop.f32.mrb[0].mxu0
        %v684 = vadd.f32 0.0, %v683
        %v685 = vpop.f32.mrb[0].mxu0
        %v686 = vpop.f32.mrb[0].mxu0
        %v687 = vadd.f32 0.0, %v686
        %v688 = vpop.f32.mrb[0].mxu0
        %689 = vdwg.mxu0
        %v691 = vlaneseq
        %v692 = vshrl.u32 %v691, 7
        %v693 = vsub.s32 0, %v692
        %v694 = vrot.slane %v599, %v693
        %v696 = vmul.f32 %v684, %v694
        %v697 = vmul.f32 %v687, %v694
        %v699 = vlaneseq
        %v700 = vshrl.u32 %v699, 7
        %v701 = vsub.s32 0, %v700
        %v702 = vrot.slane %v600, %v701
        %v704 = vadd.f32 %v696, %v702
        %v705 = vadd.f32 %v697, %v702
        %v706 = vmax.f32 %v704, 0.0
        %v707 = vmax.f32 %v705, 0.0
        %v708 = vpack.c.bf16 %v707, %v706
        %v709 = vld [vmem:[%s7] sm:$0xf]
        %v710 = vld [vmem:[%s7 + $0x4] sm:$0xf]
        %v711 = vld [vmem:[%s7 + $0x8] sm:$0xf]
        %v712 = vld [vmem:[%s7 + $0xc] sm:$0xf]
        %v713 = vld [vmem:[%s7 + $0x10] sm:$0xf]
        %v714 = vld [vmem:[%s7 + $0x14] sm:$0xf]
        %v715 = vld [vmem:[%s7 + $0x18] sm:$0xf]
        %v716 = vld [vmem:[%s7 + $0x1c] sm:$0xf]
        %v717 = vld [vmem:[%s7 + $0x20] sm:$0xf]
        %v718 = vld [vmem:[%s7 + $0x24] sm:$0xf]
        %v719 = vld [vmem:[%s7 + $0x28] sm:$0xf]
        %v720 = vld [vmem:[%s7 + $0x2c] sm:$0xf]
        %v721 = vld [vmem:[%s7 + $0x30] sm:$0xf]
        %v722 = vld [vmem:[%s7 + $0x34] sm:$0xf]
        %v723 = vld [vmem:[%s7 + $0x38] sm:$0xf]
        %v724 = vld [vmem:[%s7 + $0x3c] sm:$0xf]
        %v725 = vld [vmem:[%s8] sm:$0x1]
        %v727 = vlaneseq
        %v728 = vshrl.u32 %v727, 7
        %v729 = vsub.s32 0, %v728
        %v730 = vrot.slane %v725, %v729
        %v748 = vunpack.c.l.b16 %v709
        %v749 = vunpack.c.l.b16 %v710
        %v750 = vunpack.c.l.b16 %v711
        %v751 = vunpack.c.l.b16 %v712
        %v752 = vunpack.c.l.b16 %v713
        %v753 = vunpack.c.l.b16 %v714
        %v754 = vunpack.c.l.b16 %v715
        %v755 = vunpack.c.l.b16 %v716
        %v756 = vunpack.c.l.b16 %v717
        %v757 = vunpack.c.l.b16 %v718
        %v758 = vunpack.c.l.b16 %v719
        %v759 = vunpack.c.l.b16 %v720
        %v760 = vunpack.c.l.b16 %v721
        %v761 = vunpack.c.l.b16 %v722
        %v762 = vunpack.c.l.b16 %v723
        %v763 = vunpack.c.l.b16 %v724
        %v764 = vpack.c.b16 %v749, %v748
        %v765 = vpack.c.b16 %v751, %v750
        %v766 = vpack.c.b16 %v753, %v752
        %v767 = vpack.c.b16 %v755, %v754
        %v768 = vpack.c.b16 %v757, %v756
        %v769 = vpack.c.b16 %v759, %v758
        %v770 = vpack.c.b16 %v761, %v760
        %v771 = vpack.c.b16 %v763, %v762
        %780 = vmatprep.subr.bf16.mxu0 0
        %781 = vmatpush1.bf16.msra.mxu0 %v764
        %782 = vmatprep.subr.bf16.mxu0 0
        %783 = vmatpush1.bf16.msra.mxu0 %v765
        %784 = vmatprep.subr.bf16.mxu0 0
        %785 = vmatpush1.bf16.msra.mxu0 %v766
        %786 = vmatprep.subr.bf16.mxu0 0
        %787 = vmatpush1.bf16.msra.mxu0 %v767
        %788 = vmatprep.subr.bf16.mxu0 0
        %789 = vmatpush1.bf16.msra.mxu0 %v768
        %790 = vmatprep.subr.bf16.mxu0 0
        %791 = vmatpush1.bf16.msra.mxu0 %v769
        %792 = vmatprep.subr.bf16.mxu0 0
        %793 = vmatpush1.bf16.msra.mxu0 %v770
        %794 = vmatprep.subr.bf16.mxu0 0
        %795 = vmatpush1.bf16.msra.mxu0 %v771
        %796 = vmatprep.subr.bf16.mxu0 0
        %797 = vmatpush1.bf16.msra.mxu0 0
        %798 = vmatprep.subr.bf16.mxu0 0
        %799 = vmatpush1.bf16.msra.mxu0 0
        %800 = vmatprep.subr.bf16.mxu0 0
        %801 = vmatpush1.bf16.msra.mxu0 0
        %802 = vmatprep.subr.bf16.mxu0 0
        %803 = vmatpush1.bf16.msra.mxu0 0
        %804 = vmatprep.subr.bf16.mxu0 0
        %805 = vmatpush1.bf16.msra.mxu0 0
        %806 = vmatprep.subr.bf16.mxu0 0
        %807 = vmatpush1.bf16.msra.mxu0 0
        %808 = vmatprep.subr.bf16.mxu0 0
        %809 = vmatpush1.bf16.msra.mxu0 0
        %810 = vmatprep.subr.bf16.mxu0 0
        %811 = vmatpush1.bf16.msra.mxu0 0
        %812 = vmatprep.mubr.bf16.mxu0 0
        %813 = vmatmul.mubr.bf16.gmra.mrb[0].mxu0 %v708
        %v814 = vpop.f32.mrb[0].mxu0
        %v815 = vadd.f32 %v730, %v814
        %v816 = vpop.f32.mrb[0].mxu0
        %v817 = vpop.f32.mrb[0].mxu0
        %v818 = vadd.f32 %v730, %v817
        %v819 = vpop.f32.mrb[0].mxu0
        %820 = vdwg.mxu0
        %821 = vst [vmem:[%s376] sm:$0xff] %v815
        %822 = vst [vmem:[%s376 + $0x8] sm:$0xff] %v818
        %s823 = sand.u32 %s227, 1
        %s824 = scalar_lea.sflag [#allocation3], %s823
        %s825 = sand.u32 %s227, 1
        %s826 = smul.addr %s825, 16
        %s827 = scalar_lea.vmem [#allocation2], %s826
        %s828 = smul.u32 2, %s25
        %p829 = scmp.lt.s32.totalorder %s828, 3
        %s830 = scalar_select %p829, %s828, 3
        %s831 = smul.addr %s830, 8
        %s832 = scalar_lea.vmem %s10, %s831
        // Predicated region
        $region57: #{sa_module_forward.11} parent=55 // pred_check
          %p833 = pneg %p237
        $region58: #{sa_module_forward.11} parent=55 // pred_check_branch
          %835 = sbr.rel (%p833) target = $region60
        $region59: #{sa_module_forward.11} parent=55 // pred_region
          %s836 = smul.u32 2, %s25
          %s838 = ssub.s32 256, 256
          %839 = vsyncadd %s824, %s838
          %s840 = smul.addr %s836, 128
          %s841 = scalar_lea.hbm %s9, %s840
          %s842 = sshll.u32 %s827, 4
          %s843 = int_to_ptr.vmem [resolvable:$true] %s842
          %848 = dma.vmem_to_hbm [thread:$0]  %s843, 256, %s841, %s824, 128, 128, 8
        $region60: #{sa_module_forward.11} parent=55 // pred_fallthru
          _
        // Predicated region
        $region61: #{sa_module_forward.11} parent=55 // pred_check
          %p849 = pneg %p263
        $region62: #{sa_module_forward.11} parent=55 // pred_check_branch
          %851 = sbr.rel (%p849) target = $region64
        $region63: #{sa_module_forward.11} parent=55 // pred_region
          %s852 = smul.u32 2, %s25
        $region64: #{sa_module_forward.11} parent=55 // pred_fallthru
          _
      $region56: #{sa_module_forward.11} parent=5 // pred_fallthru
        _
      %p853 = scmp.le.s32.totalorder 2, %s20
      // Predicated region
      $region65: #{sa_module_forward.11} parent=5 // pred_check
        %p854 = pneg %p853
      $region66: #{sa_module_forward.11} parent=5 // pred_check_branch
        %856 = sbr.rel (%p854) target = $region68
      $region67: #{sa_module_forward.11} parent=5 // pred_region
        %s857 = ssub.s32 %s20, 2
        // Predicated region
        $region69: #{sa_module_forward.11} parent=67 // pred_check
          %p858 = pneg %p243
        $region70: #{sa_module_forward.11} parent=67 // pred_check_branch
          %860 = sbr.rel (%p858) target = $region72
        $region71: #{sa_module_forward.11} parent=67 // pred_region
          %s861 = sand.u32 %s228, 1
          %s862 = scalar_lea.sflag [#allocation3], %s861
          %s863 = sand.u32 %s228, 1
          %s864 = smul.addr %s863, 16
          %s865 = scalar_lea.vmem [#allocation2], %s864
          %866 = dma.done %s862, 256
        $region72: #{sa_module_forward.11} parent=67 // pred_fallthru
          _
        // Predicated region
        $region73: #{sa_module_forward.11} parent=67 // pred_check
          %p867 = pneg %p269
        $region74: #{sa_module_forward.11} parent=67 // pred_check_branch
          %869 = sbr.rel (%p867) target = $region76
        $region75: #{sa_module_forward.11} parent=67 // pred_region
          %s870 = smul.u32 2, %s26
          %p871 = scmp.lt.s32.totalorder %s870, 3
          %s872 = scalar_select %p871, %s870, 3
          %s873 = smul.addr %s872, 8
          %s874 = scalar_lea.vmem %s10, %s873
        $region76: #{sa_module_forward.11} parent=67 // pred_fallthru
          _
      $region68: #{sa_module_forward.11} parent=5 // pred_fallthru
        _
    $region6: #{sa_module_forward.11} parent=1 // loop_footer
      %s24 = sadd.s32 1, %s20
    $region7: #{sa_module_forward.11} parent=1 // loop_footer_branch
      %19 = sbr.rel target = $region3
    $region8: #{sa_module_forward.11} parent=1 // loop_exit
      _
    %875 = vsyncpa [#allocation3], 1
    %s876 = scalar_lea.sflag [#allocation3], 1
    %877 = vsyncpa %s876, 1

</llo_original>
